<compile_context>
chip_gen: v7x
topology: tpu7x:2x2x1
jax: 0.10.0
libtpu: 0.0.40
codegen_flags: <defaults>
</compile_context>

<pallas_src>
import numpy as np

import jax
import jax.numpy as jnp
from jax.experimental import pallas as pl
from jax.experimental.pallas import tpu as pltpu


# ---------------- fixed geometry implied by the PyTorch module -----------------
H0, W0, C0 = 32, 32, 3
K = 5
OC1, OC2 = 6, 16
HO1, WO1 = H0 - K + 1, W0 - K + 1          # 28, 28  (conv1 output)
HP1, WP1 = HO1 // 2, WO1 // 2              # 14, 14  (after pool)
HO2, WO2 = HP1 - K + 1, WP1 - K + 1        # 10, 10  (conv2 output)
HP2, WP2 = HO2 // 2, WO2 // 2              # 5, 5    (after pool)
FC1_IN, FC1_OUT, FC2_OUT, FC3_OUT = OC2 * HP2 * WP2, 120, 84, 10


# ------------------------------- fused kernel ----------------------------------
def _lenet_kernel(x_ref, w1_ref, b1_ref, w2_ref, b2_ref,
                  wf1_ref, bf1_ref, wf2_ref, bf2_ref, wf3_ref, bf3_ref,
                  o_ref, a1_ref):
    """One image per grid step.  Activation layout: rows = H, lanes = W*C."""
    f32 = jnp.float32

    # ---- conv1 (+ W-direction of the 2x2 max-pool via even/odd banded weights) ----
    ye = jnp.zeros((HO1, WP1 * OC1), f32)
    yo = jnp.zeros((HO1, WP1 * OC1), f32)
    for di in range(K):
        xs = x_ref[0, di:di + HO1, :]                          # (28, 96) bf16
        ye += jnp.dot(xs, w1_ref[di, 0], preferred_element_type=f32)
        yo += jnp.dot(xs, w1_ref[di, 1], preferred_element_type=f32)
    ym = jnp.maximum(ye, yo)                                   # (28, 84) W-pooled
    b1 = b1_ref[...]                                           # (1, 84)

    # ---- H-direction pool + bias + ReLU -> (14, 14*6) activation in scratch ----
    for hp in range(HP1):
        r = jnp.maximum(ym[2 * hp:2 * hp + 1, :], ym[2 * hp + 1:2 * hp + 2, :]) + b1
        a1_ref[hp:hp + 1, :] = jnp.maximum(r, 0.0)

    # ---- conv2 (+ W-pool), same banded scheme ----
    ye2 = jnp.zeros((HO2, WP2 * OC2), f32)
    yo2 = jnp.zeros((HO2, WP2 * OC2), f32)
    for di in range(K):
        a = a1_ref[di:di + HO2, :].astype(jnp.bfloat16)        # (10, 84)
        ye2 += jnp.dot(a, w2_ref[di, 0], preferred_element_type=f32)
        yo2 += jnp.dot(a, w2_ref[di, 1], preferred_element_type=f32)
    ym2 = jnp.maximum(ye2, yo2)                                # (10, 80) W-pooled
    b2 = b2_ref[...]                                           # (1, 80)

    # ---- H-pool + bias + ReLU; each pooled row feeds fc1 directly (no flatten) ----
    acc = bf1_ref[...]                                         # (1, 120) f32
    for hp in range(HP2):
        r = jnp.maximum(ym2[2 * hp:2 * hp + 1, :], ym2[2 * hp + 1:2 * hp + 2, :]) + b2
        r = jnp.maximum(r, 0.0).astype(jnp.bfloat16)           # (1, 80)
        acc = acc + jnp.dot(r, wf1_ref[hp], preferred_element_type=f32)

    h1 = jnp.maximum(acc, 0.0).astype(jnp.bfloat16)            # (1, 120)
    h2 = jnp.dot(h1, wf2_ref[...], preferred_element_type=f32) + bf2_ref[...]
    h2 = jnp.maximum(h2, 0.0).astype(jnp.bfloat16)             # (1, 84)
    o = jnp.dot(h2, wf3_ref[...], preferred_element_type=f32) + bf3_ref[...]
    o_ref[0] = o                                               # (1, 10)


# ----------------------- host-side weight preparation --------------------------
def _banded_conv_weight(w_oihw, in_w, out_wp):
    """Fold im2col + the W-half of MaxPool2d(2,2) into one (K, 2, in_w*IC, out_wp*OC)
    weight.  Input lanes are (w, c) c-fastest; output lanes are (w_pooled, oc)
    oc-fastest.  Entry [di, p, (2jp+p+dj)*IC+ic, jp*OC+oc] = w[oc, ic, di, dj]."""
    oc, ic, kh, kw = w_oihw.shape
    wt = np.zeros((kh, 2, in_w * ic, out_wp * oc), np.float32)
    for di in range(kh):
        for p in range(2):
            for jp in range(out_wp):
                for dj in range(kw):
                    col = 2 * jp + p + dj
                    wt[di, p, col * ic:(col + 1) * ic, jp * oc:(jp + 1) * oc] = \
                        w_oihw[:, :, di, dj].T
    return wt


def pack_params(params):
    p = {k: np.asarray(v, np.float32) for k, v in params.items()}
    w1 = _banded_conv_weight(p["conv1_w"], W0, WP1)            # (5, 2, 96, 84)
    w2 = _banded_conv_weight(p["conv2_w"], WP1, WP2)           # (5, 2, 84, 80)
    b1 = np.tile(p["conv1_b"], WP1).reshape(1, WP1 * OC1)
    b2 = np.tile(p["conv2_b"], WP2).reshape(1, WP2 * OC2)
    # fc1 weight stored (in=400, out=120) with torch's CHW flatten on `in`;
    # re-order once to (h, w*OC2 + c, out) to match the kernel's HWC row layout.
    wf1 = p["fc1_w"].reshape(OC2, HP2, WP2, FC1_OUT).transpose(1, 2, 0, 3)
    wf1 = wf1.reshape(HP2, WP2 * OC2, FC1_OUT)                 # (5, 80, 120)
    bf16, f32 = jnp.bfloat16, jnp.float32
    return dict(
        w1=jnp.asarray(w1, bf16), b1=jnp.asarray(b1, f32),
        w2=jnp.asarray(w2, bf16), b2=jnp.asarray(b2, f32),
        wf1=jnp.asarray(wf1, bf16), bf1=jnp.asarray(p["fc1_b"].reshape(1, -1), f32),
        wf2=jnp.asarray(p["fc2_w"], bf16), bf2=jnp.asarray(p["fc2_b"].reshape(1, -1), f32),
        wf3=jnp.asarray(p["fc3_w"], bf16), bf3=jnp.asarray(p["fc3_b"].reshape(1, -1), f32),
    )


# --------------------------------- forward -------------------------------------
@jax.jit
def net_forward(packed, x_nchw):
    n = x_nchw.shape[0]
    # NCHW -> (N, H, W*C) row-slab layout, bf16 MXU operands (one tiny XLA op).
    x2 = jnp.transpose(x_nchw, (0, 2, 3, 1)).reshape(n, H0, W0 * C0).astype(jnp.bfloat16)

    def full(nd):
        return lambda i: (0,) * nd

    out = pl.pallas_call(
        _lenet_kernel,
        out_shape=jax.ShapeDtypeStruct((n, 1, FC3_OUT), jnp.float32),
        grid=(n,),
        in_specs=[
            pl.BlockSpec((1, H0, W0 * C0), lambda i: (i, 0, 0)),
            pl.BlockSpec((K, 2, W0 * C0, WP1 * OC1), full(4)),
            pl.BlockSpec((1, WP1 * OC1), full(2)),
            pl.BlockSpec((K, 2, WP1 * OC1, WP2 * OC2), full(4)),
            pl.BlockSpec((1, WP2 * OC2), full(2)),
            pl.BlockSpec((HP2, WP2 * OC2, FC1_OUT), full(3)),
            pl.BlockSpec((1, FC1_OUT), full(2)),
            pl.BlockSpec((FC1_OUT, FC2_OUT), full(2)),
            pl.BlockSpec((1, FC2_OUT), full(2)),
            pl.BlockSpec((FC2_OUT, FC3_OUT), full(2)),
            pl.BlockSpec((1, FC3_OUT), full(2)),
        ],
        out_specs=pl.BlockSpec((1, 1, FC3_OUT), lambda i: (i, 0, 0)),
        scratch_shapes=[pltpu.VMEM((HP1, WP1 * OC1), jnp.float32)],
        compiler_params=pltpu.CompilerParams(dimension_semantics=("parallel",)),
    )(x2, packed["w1"], packed["b1"], packed["w2"], packed["b2"],
      packed["wf1"], packed["bf1"], packed["wf2"], packed["bf2"],
      packed["wf3"], packed["bf3"])
    return out.reshape(n, FC3_OUT)


# ------------------------------ params / reference -----------------------------
def init_params(key):
    ks = jax.random.split(key, 10)

    def u(k, shape, fan_in):
        bound = 1.0 / jnp.sqrt(jnp.float32(fan_in))
        return jax.random.uniform(k, shape, jnp.float32, -bound, bound)

    return dict(
        conv1_w=u(ks[0], (6, 3, 5, 5), 3 * 5 * 5),
        conv1_b=u(ks[1], (6,), 3 * 5 * 5),
        conv2_w=u(ks[2], (16, 6, 5, 5), 6 * 5 * 5),
        conv2_b=u(ks[3], (16,), 6 * 5 * 5),
        fc1_w=u(ks[4], (16 * 5 * 5, 120), 16 * 5 * 5),   # stored as (in, out)
        fc1_b=u(ks[5], (120,), 16 * 5 * 5),
        fc2_w=u(ks[6], (120, 84), 120),
        fc2_b=u(ks[7], (84,), 120),
        fc3_w=u(ks[8], (84, 10), 84),
        fc3_b=u(ks[9], (10,), 84),
    )


def reference_forward(params, x_nchw):
    """Plain-JAX f32 reference with the exact PyTorch semantics (for validation)."""
    x = jnp.transpose(x_nchw, (0, 2, 3, 1))

    def conv_relu(x, w_oihw, b):
        w = jnp.transpose(w_oihw, (2, 3, 1, 0))     # OIHW -> HWIO
        y = jax.lax.conv_general_dilated(
            x, w, window_strides=(1, 1), padding="VALID",
            dimension_numbers=("NHWC", "HWIO", "NHWC"))
        return jax.nn.relu(y + b)

    def pool(x):
        return jax.lax.reduce_window(x, -jnp.inf, jax.lax.max,
                                     (1, 2, 2, 1), (1, 2, 2, 1), "VALID")

    x = pool(conv_relu(x, params["conv1_w"], params["conv1_b"]))
    x = pool(conv_relu(x, params["conv2_w"], params["conv2_b"]))
    nb = x.shape[0]
    x = jnp.transpose(x, (0, 3, 1, 2)).reshape(nb, FC1_IN)    # torch view(-1, 400)
    x = jax.nn.relu(x @ params["fc1_w"] + params["fc1_b"])
    x = jax.nn.relu(x @ params["fc2_w"] + params["fc2_b"])
    return x @ params["fc3_w"] + params["fc3_b"]


if __name__ == "__main__":
    key = jax.random.PRNGKey(0)
    k_params, k_x = jax.random.split(key)
    params = init_params(k_params)
    packed = pack_params(params)
    # batch=2, CIFAR-style input implied by fc1 in-features = 16*5*5
    x = jax.random.normal(k_x, (2, 3, 32, 32), dtype=jnp.float32)

    out = jax.block_until_ready(net_forward(packed, x))
    assert out.shape == (2, 10)
    assert bool(jnp.all(jnp.isfinite(out)))

    ref = jax.block_until_ready(reference_forward(params, x))
    max_err = float(jnp.max(jnp.abs(out - ref)))
    assert max_err < 7e-2, f"kernel deviates from f32 reference: {max_err}"

    print("KERNEL_OK")
</pallas_src>

<mosaic_0001>
module attributes {stable_mosaic.version = 11 : i64} {
  func.func @_lenet_kernel(%arg0: i32, %arg1: memref<1x32x96xbf16, #tpu.memory_space<vmem>>, %arg2: memref<5x2x96x84xbf16, #tpu.memory_space<vmem>>, %arg3: memref<1x84xf32, #tpu.memory_space<vmem>>, %arg4: memref<5x2x84x80xbf16, #tpu.memory_space<vmem>>, %arg5: memref<1x80xf32, #tpu.memory_space<vmem>>, %arg6: memref<5x80x120xbf16, #tpu.memory_space<vmem>>, %arg7: memref<1x120xf32, #tpu.memory_space<vmem>>, %arg8: memref<120x84xbf16, #tpu.memory_space<vmem>>, %arg9: memref<1x84xf32, #tpu.memory_space<vmem>>, %arg10: memref<84x10xbf16, #tpu.memory_space<vmem>>, %arg11: memref<1x10xf32, #tpu.memory_space<vmem>>, %arg12: memref<1x1x10xf32, #tpu.memory_space<vmem>>, %arg13: memref<14x84xf32, #tpu.memory_space<vmem>>) attributes {dimension_semantics = [#tpu.dimension_semantics<parallel>], iteration_bounds = array<i64: 2>, scalar_prefetch = 0 : i64, scratch_operands = 1 : i64, tpu.core_type = #tpu.core_type<tc>, window_params = [{transform_indices = @transform_0, window_bounds = array<i64: 1, 32, 96>}, {pipeline_mode = #tpu.pipeline_mode<synchronous>, transform_indices = @transform_1, window_bounds = array<i64: 5, 2, 96, 84>}, {pipeline_mode = #tpu.pipeline_mode<synchronous>, transform_indices = @transform_2, window_bounds = array<i64: 1, 84>}, {pipeline_mode = #tpu.pipeline_mode<synchronous>, transform_indices = @transform_3, window_bounds = array<i64: 5, 2, 84, 80>}, {pipeline_mode = #tpu.pipeline_mode<synchronous>, transform_indices = @transform_4, window_bounds = array<i64: 1, 80>}, {pipeline_mode = #tpu.pipeline_mode<synchronous>, transform_indices = @transform_5, window_bounds = array<i64: 5, 80, 120>}, {pipeline_mode = #tpu.pipeline_mode<synchronous>, transform_indices = @transform_6, window_bounds = array<i64: 1, 120>}, {pipeline_mode = #tpu.pipeline_mode<synchronous>, transform_indices = @transform_7, window_bounds = array<i64: 120, 84>}, {pipeline_mode = #tpu.pipeline_mode<synchronous>, transform_indices = @transform_8, window_bounds = array<i64: 1, 84>}, {pipeline_mode = #tpu.pipeline_mode<synchronous>, transform_indices = @transform_9, window_bounds = array<i64: 84, 10>}, {pipeline_mode = #tpu.pipeline_mode<synchronous>, transform_indices = @transform_10, window_bounds = array<i64: 1, 10>}, {transform_indices = @transform_11, window_bounds = array<i64: 1, 1, 10>}]} {
    %cst = arith.constant 0.000000e+00 : f32
    %0 = vector.broadcast %cst : f32 to vector<28x84xf32>
    %cst_0 = arith.constant 0.000000e+00 : f32
    %1 = vector.broadcast %cst_0 : f32 to vector<28x84xf32>
    %c0 = arith.constant 0 : index
    %c0_1 = arith.constant 0 : index
    %c0_2 = arith.constant 0 : index
    %2 = vector.load %arg1[%c0, %c0_1, %c0_2] : memref<1x32x96xbf16, #tpu.memory_space<vmem>>, vector<1x28x96xbf16>
    %3 = vector.shape_cast %2 : vector<1x28x96xbf16> to vector<28x96xbf16>
    %c0_3 = arith.constant 0 : index
    %c0_4 = arith.constant 0 : index
    %c0_5 = arith.constant 0 : index
    %c0_6 = arith.constant 0 : index
    %4 = vector.load %arg2[%c0_3, %c0_4, %c0_5, %c0_6] : memref<5x2x96x84xbf16, #tpu.memory_space<vmem>>, vector<1x1x96x84xbf16>
    %5 = vector.shape_cast %4 : vector<1x1x96x84xbf16> to vector<96x84xbf16>
    %cst_7 = arith.constant dense<0.000000e+00> : vector<28x84xf32>
    %6 = tpu.matmul %3, %5, %cst_7 {dimension_numbers = #tpu.dot_dimension_numbers<[1], [0], [0], [1], [0, 0, 1, 1], [], []>} : vector<28x96xbf16>, vector<96x84xbf16>, vector<28x84xf32> -> vector<28x84xf32>
    %7 = arith.addf %0, %6 : vector<28x84xf32>
    %c0_8 = arith.constant 0 : index
    %c1 = arith.constant 1 : index
    %c0_9 = arith.constant 0 : index
    %c0_10 = arith.constant 0 : index
    %8 = vector.load %arg2[%c0_8, %c1, %c0_9, %c0_10] : memref<5x2x96x84xbf16, #tpu.memory_space<vmem>>, vector<1x1x96x84xbf16>
    %9 = vector.shape_cast %8 : vector<1x1x96x84xbf16> to vector<96x84xbf16>
    %cst_11 = arith.constant dense<0.000000e+00> : vector<28x84xf32>
    %10 = tpu.matmul %3, %9, %cst_11 {dimension_numbers = #tpu.dot_dimension_numbers<[1], [0], [0], [1], [0, 0, 1, 1], [], []>} : vector<28x96xbf16>, vector<96x84xbf16>, vector<28x84xf32> -> vector<28x84xf32>
    %11 = arith.addf %1, %10 : vector<28x84xf32>
    %c0_12 = arith.constant 0 : index
    %c1_13 = arith.constant 1 : index
    %c0_14 = arith.constant 0 : index
    %12 = vector.load %arg1[%c0_12, %c1_13, %c0_14] : memref<1x32x96xbf16, #tpu.memory_space<vmem>>, vector<1x28x96xbf16>
    %13 = vector.shape_cast %12 : vector<1x28x96xbf16> to vector<28x96xbf16>
    %c1_15 = arith.constant 1 : index
    %c0_16 = arith.constant 0 : index
    %c0_17 = arith.constant 0 : index
    %c0_18 = arith.constant 0 : index
    %14 = vector.load %arg2[%c1_15, %c0_16, %c0_17, %c0_18] : memref<5x2x96x84xbf16, #tpu.memory_space<vmem>>, vector<1x1x96x84xbf16>
    %15 = vector.shape_cast %14 : vector<1x1x96x84xbf16> to vector<96x84xbf16>
    %cst_19 = arith.constant dense<0.000000e+00> : vector<28x84xf32>
    %16 = tpu.matmul %13, %15, %cst_19 {dimension_numbers = #tpu.dot_dimension_numbers<[1], [0], [0], [1], [0, 0, 1, 1], [], []>} : vector<28x96xbf16>, vector<96x84xbf16>, vector<28x84xf32> -> vector<28x84xf32>
    %17 = arith.addf %7, %16 : vector<28x84xf32>
    %c1_20 = arith.constant 1 : index
    %c1_21 = arith.constant 1 : index
    %c0_22 = arith.constant 0 : index
    %c0_23 = arith.constant 0 : index
    %18 = vector.load %arg2[%c1_20, %c1_21, %c0_22, %c0_23] : memref<5x2x96x84xbf16, #tpu.memory_space<vmem>>, vector<1x1x96x84xbf16>
    %19 = vector.shape_cast %18 : vector<1x1x96x84xbf16> to vector<96x84xbf16>
    %cst_24 = arith.constant dense<0.000000e+00> : vector<28x84xf32>
    %20 = tpu.matmul %13, %19, %cst_24 {dimension_numbers = #tpu.dot_dimension_numbers<[1], [0], [0], [1], [0, 0, 1, 1], [], []>} : vector<28x96xbf16>, vector<96x84xbf16>, vector<28x84xf32> -> vector<28x84xf32>
    %21 = arith.addf %11, %20 : vector<28x84xf32>
    %c0_25 = arith.constant 0 : index
    %c2 = arith.constant 2 : index
    %c0_26 = arith.constant 0 : index
    %22 = vector.load %arg1[%c0_25, %c2, %c0_26] : memref<1x32x96xbf16, #tpu.memory_space<vmem>>, vector<1x28x96xbf16>
    %23 = vector.shape_cast %22 : vector<1x28x96xbf16> to vector<28x96xbf16>
    %c2_27 = arith.constant 2 : index
    %c0_28 = arith.constant 0 : index
    %c0_29 = arith.constant 0 : index
    %c0_30 = arith.constant 0 : index
    %24 = vector.load %arg2[%c2_27, %c0_28, %c0_29, %c0_30] : memref<5x2x96x84xbf16, #tpu.memory_space<vmem>>, vector<1x1x96x84xbf16>
    %25 = vector.shape_cast %24 : vector<1x1x96x84xbf16> to vector<96x84xbf16>
    %cst_31 = arith.constant dense<0.000000e+00> : vector<28x84xf32>
    %26 = tpu.matmul %23, %25, %cst_31 {dimension_numbers = #tpu.dot_dimension_numbers<[1], [0], [0], [1], [0, 0, 1, 1], [], []>} : vector<28x96xbf16>, vector<96x84xbf16>, vector<28x84xf32> -> vector<28x84xf32>
    %27 = arith.addf %17, %26 : vector<28x84xf32>
    %c2_32 = arith.constant 2 : index
    %c1_33 = arith.constant 1 : index
    %c0_34 = arith.constant 0 : index
    %c0_35 = arith.constant 0 : index
    %28 = vector.load %arg2[%c2_32, %c1_33, %c0_34, %c0_35] : memref<5x2x96x84xbf16, #tpu.memory_space<vmem>>, vector<1x1x96x84xbf16>
    %29 = vector.shape_cast %28 : vector<1x1x96x84xbf16> to vector<96x84xbf16>
    %cst_36 = arith.constant dense<0.000000e+00> : vector<28x84xf32>
    %30 = tpu.matmul %23, %29, %cst_36 {dimension_numbers = #tpu.dot_dimension_numbers<[1], [0], [0], [1], [0, 0, 1, 1], [], []>} : vector<28x96xbf16>, vector<96x84xbf16>, vector<28x84xf32> -> vector<28x84xf32>
    %31 = arith.addf %21, %30 : vector<28x84xf32>
    %c0_37 = arith.constant 0 : index
    %c3 = arith.constant 3 : index
    %c0_38 = arith.constant 0 : index
    %32 = vector.load %arg1[%c0_37, %c3, %c0_38] : memref<1x32x96xbf16, #tpu.memory_space<vmem>>, vector<1x28x96xbf16>
    %33 = vector.shape_cast %32 : vector<1x28x96xbf16> to vector<28x96xbf16>
    %c3_39 = arith.constant 3 : index
    %c0_40 = arith.constant 0 : index
    %c0_41 = arith.constant 0 : index
    %c0_42 = arith.constant 0 : index
    %34 = vector.load %arg2[%c3_39, %c0_40, %c0_41, %c0_42] : memref<5x2x96x84xbf16, #tpu.memory_space<vmem>>, vector<1x1x96x84xbf16>
    %35 = vector.shape_cast %34 : vector<1x1x96x84xbf16> to vector<96x84xbf16>
    %cst_43 = arith.constant dense<0.000000e+00> : vector<28x84xf32>
    %36 = tpu.matmul %33, %35, %cst_43 {dimension_numbers = #tpu.dot_dimension_numbers<[1], [0], [0], [1], [0, 0, 1, 1], [], []>} : vector<28x96xbf16>, vector<96x84xbf16>, vector<28x84xf32> -> vector<28x84xf32>
    %37 = arith.addf %27, %36 : vector<28x84xf32>
    %c3_44 = arith.constant 3 : index
    %c1_45 = arith.constant 1 : index
    %c0_46 = arith.constant 0 : index
    %c0_47 = arith.constant 0 : index
    %38 = vector.load %arg2[%c3_44, %c1_45, %c0_46, %c0_47] : memref<5x2x96x84xbf16, #tpu.memory_space<vmem>>, vector<1x1x96x84xbf16>
    %39 = vector.shape_cast %38 : vector<1x1x96x84xbf16> to vector<96x84xbf16>
    %cst_48 = arith.constant dense<0.000000e+00> : vector<28x84xf32>
    %40 = tpu.matmul %33, %39, %cst_48 {dimension_numbers = #tpu.dot_dimension_numbers<[1], [0], [0], [1], [0, 0, 1, 1], [], []>} : vector<28x96xbf16>, vector<96x84xbf16>, vector<28x84xf32> -> vector<28x84xf32>
    %41 = arith.addf %31, %40 : vector<28x84xf32>
    %c0_49 = arith.constant 0 : index
    %c4 = arith.constant 4 : index
    %c0_50 = arith.constant 0 : index
    %42 = vector.load %arg1[%c0_49, %c4, %c0_50] : memref<1x32x96xbf16, #tpu.memory_space<vmem>>, vector<1x28x96xbf16>
    %43 = vector.shape_cast %42 : vector<1x28x96xbf16> to vector<28x96xbf16>
    %c4_51 = arith.constant 4 : index
    %c0_52 = arith.constant 0 : index
    %c0_53 = arith.constant 0 : index
    %c0_54 = arith.constant 0 : index
    %44 = vector.load %arg2[%c4_51, %c0_52, %c0_53, %c0_54] : memref<5x2x96x84xbf16, #tpu.memory_space<vmem>>, vector<1x1x96x84xbf16>
    %45 = vector.shape_cast %44 : vector<1x1x96x84xbf16> to vector<96x84xbf16>
    %cst_55 = arith.constant dense<0.000000e+00> : vector<28x84xf32>
    %46 = tpu.matmul %43, %45, %cst_55 {dimension_numbers = #tpu.dot_dimension_numbers<[1], [0], [0], [1], [0, 0, 1, 1], [], []>} : vector<28x96xbf16>, vector<96x84xbf16>, vector<28x84xf32> -> vector<28x84xf32>
    %47 = arith.addf %37, %46 : vector<28x84xf32>
    %c4_56 = arith.constant 4 : index
    %c1_57 = arith.constant 1 : index
    %c0_58 = arith.constant 0 : index
    %c0_59 = arith.constant 0 : index
    %48 = vector.load %arg2[%c4_56, %c1_57, %c0_58, %c0_59] : memref<5x2x96x84xbf16, #tpu.memory_space<vmem>>, vector<1x1x96x84xbf16>
    %49 = vector.shape_cast %48 : vector<1x1x96x84xbf16> to vector<96x84xbf16>
    %cst_60 = arith.constant dense<0.000000e+00> : vector<28x84xf32>
    %50 = tpu.matmul %43, %49, %cst_60 {dimension_numbers = #tpu.dot_dimension_numbers<[1], [0], [0], [1], [0, 0, 1, 1], [], []>} : vector<28x96xbf16>, vector<96x84xbf16>, vector<28x84xf32> -> vector<28x84xf32>
    %51 = arith.addf %41, %50 : vector<28x84xf32>
    %52 = arith.maximumf %47, %51 : vector<28x84xf32>
    %c0_61 = arith.constant 0 : index
    %c0_62 = arith.constant 0 : index
    %53 = vector.load %arg3[%c0_61, %c0_62] : memref<1x84xf32, #tpu.memory_space<vmem>>, vector<1x84xf32>
    %54 = vector.extract_strided_slice %52 {offsets = [0, 0], sizes = [1, 84], strides = [1, 1]} : vector<28x84xf32> to vector<1x84xf32>
    %55 = vector.extract_strided_slice %52 {offsets = [1, 0], sizes = [1, 84], strides = [1, 1]} : vector<28x84xf32> to vector<1x84xf32>
    %56 = arith.maximumf %54, %55 : vector<1x84xf32>
    %57 = arith.addf %56, %53 : vector<1x84xf32>
    %cst_63 = arith.constant 0.000000e+00 : f32
    %58 = vector.broadcast %cst_63 : f32 to vector<1x84xf32>
    %59 = arith.maximumf %57, %58 : vector<1x84xf32>
    %c0_64 = arith.constant 0 : index
    %c0_65 = arith.constant 0 : index
    %60 = vector.load %arg13[%c0_64, %c0_65] : memref<14x84xf32, #tpu.memory_space<vmem>>, vector<1x84xf32>
    tpu.vector_store %arg13[%c0_64, %c0_65], %59 {strides = array<i32>} : memref<14x84xf32, #tpu.memory_space<vmem>>, vector<1x84xf32>,
    %61 = vector.extract_strided_slice %52 {offsets = [2, 0], sizes = [1, 84], strides = [1, 1]} : vector<28x84xf32> to vector<1x84xf32>
    %62 = vector.extract_strided_slice %52 {offsets = [3, 0], sizes = [1, 84], strides = [1, 1]} : vector<28x84xf32> to vector<1x84xf32>
    %63 = arith.maximumf %61, %62 : vector<1x84xf32>
    %64 = arith.addf %63, %53 : vector<1x84xf32>
    %cst_66 = arith.constant 0.000000e+00 : f32
    %65 = vector.broadcast %cst_66 : f32 to vector<1x84xf32>
    %66 = arith.maximumf %64, %65 : vector<1x84xf32>
    %c1_67 = arith.constant 1 : index
    %c0_68 = arith.constant 0 : index
    %67 = vector.load %arg13[%c1_67, %c0_68] : memref<14x84xf32, #tpu.memory_space<vmem>>, vector<1x84xf32>
    tpu.vector_store %arg13[%c1_67, %c0_68], %66 {strides = array<i32>} : memref<14x84xf32, #tpu.memory_space<vmem>>, vector<1x84xf32>,
    %68 = vector.extract_strided_slice %52 {offsets = [4, 0], sizes = [1, 84], strides = [1, 1]} : vector<28x84xf32> to vector<1x84xf32>
    %69 = vector.extract_strided_slice %52 {offsets = [5, 0], sizes = [1, 84], strides = [1, 1]} : vector<28x84xf32> to vector<1x84xf32>
    %70 = arith.maximumf %68, %69 : vector<1x84xf32>
    %71 = arith.addf %70, %53 : vector<1x84xf32>
    %cst_69 = arith.constant 0.000000e+00 : f32
    %72 = vector.broadcast %cst_69 : f32 to vector<1x84xf32>
    %73 = arith.maximumf %71, %72 : vector<1x84xf32>
    %c2_70 = arith.constant 2 : index
    %c0_71 = arith.constant 0 : index
    %74 = vector.load %arg13[%c2_70, %c0_71] : memref<14x84xf32, #tpu.memory_space<vmem>>, vector<1x84xf32>
    tpu.vector_store %arg13[%c2_70, %c0_71], %73 {strides = array<i32>} : memref<14x84xf32, #tpu.memory_space<vmem>>, vector<1x84xf32>,
    %75 = vector.extract_strided_slice %52 {offsets = [6, 0], sizes = [1, 84], strides = [1, 1]} : vector<28x84xf32> to vector<1x84xf32>
    %76 = vector.extract_strided_slice %52 {offsets = [7, 0], sizes = [1, 84], strides = [1, 1]} : vector<28x84xf32> to vector<1x84xf32>
    %77 = arith.maximumf %75, %76 : vector<1x84xf32>
    %78 = arith.addf %77, %53 : vector<1x84xf32>
    %cst_72 = arith.constant 0.000000e+00 : f32
    %79 = vector.broadcast %cst_72 : f32 to vector<1x84xf32>
    %80 = arith.maximumf %78, %79 : vector<1x84xf32>
    %c3_73 = arith.constant 3 : index
    %c0_74 = arith.constant 0 : index
    %81 = vector.load %arg13[%c3_73, %c0_74] : memref<14x84xf32, #tpu.memory_space<vmem>>, vector<1x84xf32>
    tpu.vector_store %arg13[%c3_73, %c0_74], %80 {strides = array<i32>} : memref<14x84xf32, #tpu.memory_space<vmem>>, vector<1x84xf32>,
    %82 = vector.extract_strided_slice %52 {offsets = [8, 0], sizes = [1, 84], strides = [1, 1]} : vector<28x84xf32> to vector<1x84xf32>
    %83 = vector.extract_strided_slice %52 {offsets = [9, 0], sizes = [1, 84], strides = [1, 1]} : vector<28x84xf32> to vector<1x84xf32>
    %84 = arith.maximumf %82, %83 : vector<1x84xf32>
    %85 = arith.addf %84, %53 : vector<1x84xf32>
    %cst_75 = arith.constant 0.000000e+00 : f32
    %86 = vector.broadcast %cst_75 : f32 to vector<1x84xf32>
    %87 = arith.maximumf %85, %86 : vector<1x84xf32>
    %c4_76 = arith.constant 4 : index
    %c0_77 = arith.constant 0 : index
    %88 = vector.load %arg13[%c4_76, %c0_77] : memref<14x84xf32, #tpu.memory_space<vmem>>, vector<1x84xf32>
    tpu.vector_store %arg13[%c4_76, %c0_77], %87 {strides = array<i32>} : memref<14x84xf32, #tpu.memory_space<vmem>>, vector<1x84xf32>,
    %89 = vector.extract_strided_slice %52 {offsets = [10, 0], sizes = [1, 84], strides = [1, 1]} : vector<28x84xf32> to vector<1x84xf32>
    %90 = vector.extract_strided_slice %52 {offsets = [11, 0], sizes = [1, 84], strides = [1, 1]} : vector<28x84xf32> to vector<1x84xf32>
    %91 = arith.maximumf %89, %90 : vector<1x84xf32>
    %92 = arith.addf %91, %53 : vector<1x84xf32>
    %cst_78 = arith.constant 0.000000e+00 : f32
    %93 = vector.broadcast %cst_78 : f32 to vector<1x84xf32>
    %94 = arith.maximumf %92, %93 : vector<1x84xf32>
    %c5 = arith.constant 5 : index
    %c0_79 = arith.constant 0 : index
    %95 = vector.load %arg13[%c5, %c0_79] : memref<14x84xf32, #tpu.memory_space<vmem>>, vector<1x84xf32>
    tpu.vector_store %arg13[%c5, %c0_79], %94 {strides = array<i32>} : memref<14x84xf32, #tpu.memory_space<vmem>>, vector<1x84xf32>,
    %96 = vector.extract_strided_slice %52 {offsets = [12, 0], sizes = [1, 84], strides = [1, 1]} : vector<28x84xf32> to vector<1x84xf32>
    %97 = vector.extract_strided_slice %52 {offsets = [13, 0], sizes = [1, 84], strides = [1, 1]} : vector<28x84xf32> to vector<1x84xf32>
    %98 = arith.maximumf %96, %97 : vector<1x84xf32>
    %99 = arith.addf %98, %53 : vector<1x84xf32>
    %cst_80 = arith.constant 0.000000e+00 : f32
    %100 = vector.broadcast %cst_80 : f32 to vector<1x84xf32>
    %101 = arith.maximumf %99, %100 : vector<1x84xf32>
    %c6 = arith.constant 6 : index
    %c0_81 = arith.constant 0 : index
    %102 = vector.load %arg13[%c6, %c0_81] : memref<14x84xf32, #tpu.memory_space<vmem>>, vector<1x84xf32>
    tpu.vector_store %arg13[%c6, %c0_81], %101 {strides = array<i32>} : memref<14x84xf32, #tpu.memory_space<vmem>>, vector<1x84xf32>,
    %103 = vector.extract_strided_slice %52 {offsets = [14, 0], sizes = [1, 84], strides = [1, 1]} : vector<28x84xf32> to vector<1x84xf32>
    %104 = vector.extract_strided_slice %52 {offsets = [15, 0], sizes = [1, 84], strides = [1, 1]} : vector<28x84xf32> to vector<1x84xf32>
    %105 = arith.maximumf %103, %104 : vector<1x84xf32>
    %106 = arith.addf %105, %53 : vector<1x84xf32>
    %cst_82 = arith.constant 0.000000e+00 : f32
    %107 = vector.broadcast %cst_82 : f32 to vector<1x84xf32>
    %108 = arith.maximumf %106, %107 : vector<1x84xf32>
    %c7 = arith.constant 7 : index
    %c0_83 = arith.constant 0 : index
    %109 = vector.load %arg13[%c7, %c0_83] : memref<14x84xf32, #tpu.memory_space<vmem>>, vector<1x84xf32>
    tpu.vector_store %arg13[%c7, %c0_83], %108 {strides = array<i32>} : memref<14x84xf32, #tpu.memory_space<vmem>>, vector<1x84xf32>,
    %110 = vector.extract_strided_slice %52 {offsets = [16, 0], sizes = [1, 84], strides = [1, 1]} : vector<28x84xf32> to vector<1x84xf32>
    %111 = vector.extract_strided_slice %52 {offsets = [17, 0], sizes = [1, 84], strides = [1, 1]} : vector<28x84xf32> to vector<1x84xf32>
    %112 = arith.maximumf %110, %111 : vector<1x84xf32>
    %113 = arith.addf %112, %53 : vector<1x84xf32>
    %cst_84 = arith.constant 0.000000e+00 : f32
    %114 = vector.broadcast %cst_84 : f32 to vector<1x84xf32>
    %115 = arith.maximumf %113, %114 : vector<1x84xf32>
    %c8 = arith.constant 8 : index
    %c0_85 = arith.constant 0 : index
    %116 = vector.load %arg13[%c8, %c0_85] : memref<14x84xf32, #tpu.memory_space<vmem>>, vector<1x84xf32>
    tpu.vector_store %arg13[%c8, %c0_85], %115 {strides = array<i32>} : memref<14x84xf32, #tpu.memory_space<vmem>>, vector<1x84xf32>,
    %117 = vector.extract_strided_slice %52 {offsets = [18, 0], sizes = [1, 84], strides = [1, 1]} : vector<28x84xf32> to vector<1x84xf32>
    %118 = vector.extract_strided_slice %52 {offsets = [19, 0], sizes = [1, 84], strides = [1, 1]} : vector<28x84xf32> to vector<1x84xf32>
    %119 = arith.maximumf %117, %118 : vector<1x84xf32>
    %120 = arith.addf %119, %53 : vector<1x84xf32>
    %cst_86 = arith.constant 0.000000e+00 : f32
    %121 = vector.broadcast %cst_86 : f32 to vector<1x84xf32>
    %122 = arith.maximumf %120, %121 : vector<1x84xf32>
    %c9 = arith.constant 9 : index
    %c0_87 = arith.constant 0 : index
    %123 = vector.load %arg13[%c9, %c0_87] : memref<14x84xf32, #tpu.memory_space<vmem>>, vector<1x84xf32>
    tpu.vector_store %arg13[%c9, %c0_87], %122 {strides = array<i32>} : memref<14x84xf32, #tpu.memory_space<vmem>>, vector<1x84xf32>,
    %124 = vector.extract_strided_slice %52 {offsets = [20, 0], sizes = [1, 84], strides = [1, 1]} : vector<28x84xf32> to vector<1x84xf32>
    %125 = vector.extract_strided_slice %52 {offsets = [21, 0], sizes = [1, 84], strides = [1, 1]} : vector<28x84xf32> to vector<1x84xf32>
    %126 = arith.maximumf %124, %125 : vector<1x84xf32>
    %127 = arith.addf %126, %53 : vector<1x84xf32>
    %cst_88 = arith.constant 0.000000e+00 : f32
    %128 = vector.broadcast %cst_88 : f32 to vector<1x84xf32>
    %129 = arith.maximumf %127, %128 : vector<1x84xf32>
    %c10 = arith.constant 10 : index
    %c0_89 = arith.constant 0 : index
    %130 = vector.load %arg13[%c10, %c0_89] : memref<14x84xf32, #tpu.memory_space<vmem>>, vector<1x84xf32>
    tpu.vector_store %arg13[%c10, %c0_89], %129 {strides = array<i32>} : memref<14x84xf32, #tpu.memory_space<vmem>>, vector<1x84xf32>,
    %131 = vector.extract_strided_slice %52 {offsets = [22, 0], sizes = [1, 84], strides = [1, 1]} : vector<28x84xf32> to vector<1x84xf32>
    %132 = vector.extract_strided_slice %52 {offsets = [23, 0], sizes = [1, 84], strides = [1, 1]} : vector<28x84xf32> to vector<1x84xf32>
    %133 = arith.maximumf %131, %132 : vector<1x84xf32>
    %134 = arith.addf %133, %53 : vector<1x84xf32>
    %cst_90 = arith.constant 0.000000e+00 : f32
    %135 = vector.broadcast %cst_90 : f32 to vector<1x84xf32>
    %136 = arith.maximumf %134, %135 : vector<1x84xf32>
    %c11 = arith.constant 11 : index
    %c0_91 = arith.constant 0 : index
    %137 = vector.load %arg13[%c11, %c0_91] : memref<14x84xf32, #tpu.memory_space<vmem>>, vector<1x84xf32>
    tpu.vector_store %arg13[%c11, %c0_91], %136 {strides = array<i32>} : memref<14x84xf32, #tpu.memory_space<vmem>>, vector<1x84xf32>,
    %138 = vector.extract_strided_slice %52 {offsets = [24, 0], sizes = [1, 84], strides = [1, 1]} : vector<28x84xf32> to vector<1x84xf32>
    %139 = vector.extract_strided_slice %52 {offsets = [25, 0], sizes = [1, 84], strides = [1, 1]} : vector<28x84xf32> to vector<1x84xf32>
    %140 = arith.maximumf %138, %139 : vector<1x84xf32>
    %141 = arith.addf %140, %53 : vector<1x84xf32>
    %cst_92 = arith.constant 0.000000e+00 : f32
    %142 = vector.broadcast %cst_92 : f32 to vector<1x84xf32>
    %143 = arith.maximumf %141, %142 : vector<1x84xf32>
    %c12 = arith.constant 12 : index
    %c0_93 = arith.constant 0 : index
    %144 = vector.load %arg13[%c12, %c0_93] : memref<14x84xf32, #tpu.memory_space<vmem>>, vector<1x84xf32>
    tpu.vector_store %arg13[%c12, %c0_93], %143 {strides = array<i32>} : memref<14x84xf32, #tpu.memory_space<vmem>>, vector<1x84xf32>,
    %145 = vector.extract_strided_slice %52 {offsets = [26, 0], sizes = [1, 84], strides = [1, 1]} : vector<28x84xf32> to vector<1x84xf32>
    %146 = vector.extract_strided_slice %52 {offsets = [27, 0], sizes = [1, 84], strides = [1, 1]} : vector<28x84xf32> to vector<1x84xf32>
    %147 = arith.maximumf %145, %146 : vector<1x84xf32>
    %148 = arith.addf %147, %53 : vector<1x84xf32>
    %cst_94 = arith.constant 0.000000e+00 : f32
    %149 = vector.broadcast %cst_94 : f32 to vector<1x84xf32>
    %150 = arith.maximumf %148, %149 : vector<1x84xf32>
    %c13 = arith.constant 13 : index
    %c0_95 = arith.constant 0 : index
    %151 = vector.load %arg13[%c13, %c0_95] : memref<14x84xf32, #tpu.memory_space<vmem>>, vector<1x84xf32>
    tpu.vector_store %arg13[%c13, %c0_95], %150 {strides = array<i32>} : memref<14x84xf32, #tpu.memory_space<vmem>>, vector<1x84xf32>,
    %cst_96 = arith.constant 0.000000e+00 : f32
    %152 = vector.broadcast %cst_96 : f32 to vector<10x80xf32>
    %cst_97 = arith.constant 0.000000e+00 : f32
    %153 = vector.broadcast %cst_97 : f32 to vector<10x80xf32>
    %c0_98 = arith.constant 0 : index
    %c0_99 = arith.constant 0 : index
    %154 = vector.load %arg13[%c0_98, %c0_99] : memref<14x84xf32, #tpu.memory_space<vmem>>, vector<10x84xf32>
    %155 = arith.truncf %154 : vector<10x84xf32> to vector<10x84xbf16>
    %c0_100 = arith.constant 0 : index
    %c0_101 = arith.constant 0 : index
    %c0_102 = arith.constant 0 : index
    %c0_103 = arith.constant 0 : index
    %156 = vector.load %arg4[%c0_100, %c0_101, %c0_102, %c0_103] : memref<5x2x84x80xbf16, #tpu.memory_space<vmem>>, vector<1x1x84x80xbf16>
    %157 = vector.shape_cast %156 : vector<1x1x84x80xbf16> to vector<84x80xbf16>
    %cst_104 = arith.constant dense<0.000000e+00> : vector<10x80xf32>
    %158 = tpu.matmul %155, %157, %cst_104 {dimension_numbers = #tpu.dot_dimension_numbers<[1], [0], [0], [1], [0, 0, 1, 1], [], []>} : vector<10x84xbf16>, vector<84x80xbf16>, vector<10x80xf32> -> vector<10x80xf32>
    %159 = arith.addf %152, %158 : vector<10x80xf32>
    %c0_105 = arith.constant 0 : index
    %c1_106 = arith.constant 1 : index
    %c0_107 = arith.constant 0 : index
    %c0_108 = arith.constant 0 : index
    %160 = vector.load %arg4[%c0_105, %c1_106, %c0_107, %c0_108] : memref<5x2x84x80xbf16, #tpu.memory_space<vmem>>, vector<1x1x84x80xbf16>
    %161 = vector.shape_cast %160 : vector<1x1x84x80xbf16> to vector<84x80xbf16>
    %cst_109 = arith.constant dense<0.000000e+00> : vector<10x80xf32>
    %162 = tpu.matmul %155, %161, %cst_109 {dimension_numbers = #tpu.dot_dimension_numbers<[1], [0], [0], [1], [0, 0, 1, 1], [], []>} : vector<10x84xbf16>, vector<84x80xbf16>, vector<10x80xf32> -> vector<10x80xf32>
    %163 = arith.addf %153, %162 : vector<10x80xf32>
    %c1_110 = arith.constant 1 : index
    %c0_111 = arith.constant 0 : index
    %164 = vector.load %arg13[%c1_110, %c0_111] : memref<14x84xf32, #tpu.memory_space<vmem>>, vector<10x84xf32>
    %165 = arith.truncf %164 : vector<10x84xf32> to vector<10x84xbf16>
    %c1_112 = arith.constant 1 : index
    %c0_113 = arith.constant 0 : index
    %c0_114 = arith.constant 0 : index
    %c0_115 = arith.constant 0 : index
    %166 = vector.load %arg4[%c1_112, %c0_113, %c0_114, %c0_115] : memref<5x2x84x80xbf16, #tpu.memory_space<vmem>>, vector<1x1x84x80xbf16>
    %167 = vector.shape_cast %166 : vector<1x1x84x80xbf16> to vector<84x80xbf16>
    %cst_116 = arith.constant dense<0.000000e+00> : vector<10x80xf32>
    %168 = tpu.matmul %165, %167, %cst_116 {dimension_numbers = #tpu.dot_dimension_numbers<[1], [0], [0], [1], [0, 0, 1, 1], [], []>} : vector<10x84xbf16>, vector<84x80xbf16>, vector<10x80xf32> -> vector<10x80xf32>
    %169 = arith.addf %159, %168 : vector<10x80xf32>
    %c1_117 = arith.constant 1 : index
    %c1_118 = arith.constant 1 : index
    %c0_119 = arith.constant 0 : index
    %c0_120 = arith.constant 0 : index
    %170 = vector.load %arg4[%c1_117, %c1_118, %c0_119, %c0_120] : memref<5x2x84x80xbf16, #tpu.memory_space<vmem>>, vector<1x1x84x80xbf16>
    %171 = vector.shape_cast %170 : vector<1x1x84x80xbf16> to vector<84x80xbf16>
    %cst_121 = arith.constant dense<0.000000e+00> : vector<10x80xf32>
    %172 = tpu.matmul %165, %171, %cst_121 {dimension_numbers = #tpu.dot_dimension_numbers<[1], [0], [0], [1], [0, 0, 1, 1], [], []>} : vector<10x84xbf16>, vector<84x80xbf16>, vector<10x80xf32> -> vector<10x80xf32>
    %173 = arith.addf %163, %172 : vector<10x80xf32>
    %c2_122 = arith.constant 2 : index
    %c0_123 = arith.constant 0 : index
    %174 = vector.load %arg13[%c2_122, %c0_123] : memref<14x84xf32, #tpu.memory_space<vmem>>, vector<10x84xf32>
    %175 = arith.truncf %174 : vector<10x84xf32> to vector<10x84xbf16>
    %c2_124 = arith.constant 2 : index
    %c0_125 = arith.constant 0 : index
    %c0_126 = arith.constant 0 : index
    %c0_127 = arith.constant 0 : index
    %176 = vector.load %arg4[%c2_124, %c0_125, %c0_126, %c0_127] : memref<5x2x84x80xbf16, #tpu.memory_space<vmem>>, vector<1x1x84x80xbf16>
    %177 = vector.shape_cast %176 : vector<1x1x84x80xbf16> to vector<84x80xbf16>
    %cst_128 = arith.constant dense<0.000000e+00> : vector<10x80xf32>
    %178 = tpu.matmul %175, %177, %cst_128 {dimension_numbers = #tpu.dot_dimension_numbers<[1], [0], [0], [1], [0, 0, 1, 1], [], []>} : vector<10x84xbf16>, vector<84x80xbf16>, vector<10x80xf32> -> vector<10x80xf32>
    %179 = arith.addf %169, %178 : vector<10x80xf32>
    %c2_129 = arith.constant 2 : index
    %c1_130 = arith.constant 1 : index
    %c0_131 = arith.constant 0 : index
    %c0_132 = arith.constant 0 : index
    %180 = vector.load %arg4[%c2_129, %c1_130, %c0_131, %c0_132] : memref<5x2x84x80xbf16, #tpu.memory_space<vmem>>, vector<1x1x84x80xbf16>
    %181 = vector.shape_cast %180 : vector<1x1x84x80xbf16> to vector<84x80xbf16>
    %cst_133 = arith.constant dense<0.000000e+00> : vector<10x80xf32>
    %182 = tpu.matmul %175, %181, %cst_133 {dimension_numbers = #tpu.dot_dimension_numbers<[1], [0], [0], [1], [0, 0, 1, 1], [], []>} : vector<10x84xbf16>, vector<84x80xbf16>, vector<10x80xf32> -> vector<10x80xf32>
    %183 = arith.addf %173, %182 : vector<10x80xf32>
    %c3_134 = arith.constant 3 : index
    %c0_135 = arith.constant 0 : index
    %184 = vector.load %arg13[%c3_134, %c0_135] : memref<14x84xf32, #tpu.memory_space<vmem>>, vector<10x84xf32>
    %185 = arith.truncf %184 : vector<10x84xf32> to vector<10x84xbf16>
    %c3_136 = arith.constant 3 : index
    %c0_137 = arith.constant 0 : index
    %c0_138 = arith.constant 0 : index
    %c0_139 = arith.constant 0 : index
    %186 = vector.load %arg4[%c3_136, %c0_137, %c0_138, %c0_139] : memref<5x2x84x80xbf16, #tpu.memory_space<vmem>>, vector<1x1x84x80xbf16>
    %187 = vector.shape_cast %186 : vector<1x1x84x80xbf16> to vector<84x80xbf16>
    %cst_140 = arith.constant dense<0.000000e+00> : vector<10x80xf32>
    %188 = tpu.matmul %185, %187, %cst_140 {dimension_numbers = #tpu.dot_dimension_numbers<[1], [0], [0], [1], [0, 0, 1, 1], [], []>} : vector<10x84xbf16>, vector<84x80xbf16>, vector<10x80xf32> -> vector<10x80xf32>
    %189 = arith.addf %179, %188 : vector<10x80xf32>
    %c3_141 = arith.constant 3 : index
    %c1_142 = arith.constant 1 : index
    %c0_143 = arith.constant 0 : index
    %c0_144 = arith.constant 0 : index
    %190 = vector.load %arg4[%c3_141, %c1_142, %c0_143, %c0_144] : memref<5x2x84x80xbf16, #tpu.memory_space<vmem>>, vector<1x1x84x80xbf16>
    %191 = vector.shape_cast %190 : vector<1x1x84x80xbf16> to vector<84x80xbf16>
    %cst_145 = arith.constant dense<0.000000e+00> : vector<10x80xf32>
    %192 = tpu.matmul %185, %191, %cst_145 {dimension_numbers = #tpu.dot_dimension_numbers<[1], [0], [0], [1], [0, 0, 1, 1], [], []>} : vector<10x84xbf16>, vector<84x80xbf16>, vector<10x80xf32> -> vector<10x80xf32>
    %193 = arith.addf %183, %192 : vector<10x80xf32>
    %c4_146 = arith.constant 4 : index
    %c0_147 = arith.constant 0 : index
    %194 = vector.load %arg13[%c4_146, %c0_147] : memref<14x84xf32, #tpu.memory_space<vmem>>, vector<10x84xf32>
    %195 = arith.truncf %194 : vector<10x84xf32> to vector<10x84xbf16>
    %c4_148 = arith.constant 4 : index
    %c0_149 = arith.constant 0 : index
    %c0_150 = arith.constant 0 : index
    %c0_151 = arith.constant 0 : index
    %196 = vector.load %arg4[%c4_148, %c0_149, %c0_150, %c0_151] : memref<5x2x84x80xbf16, #tpu.memory_space<vmem>>, vector<1x1x84x80xbf16>
    %197 = vector.shape_cast %196 : vector<1x1x84x80xbf16> to vector<84x80xbf16>
    %cst_152 = arith.constant dense<0.000000e+00> : vector<10x80xf32>
    %198 = tpu.matmul %195, %197, %cst_152 {dimension_numbers = #tpu.dot_dimension_numbers<[1], [0], [0], [1], [0, 0, 1, 1], [], []>} : vector<10x84xbf16>, vector<84x80xbf16>, vector<10x80xf32> -> vector<10x80xf32>
    %199 = arith.addf %189, %198 : vector<10x80xf32>
    %c4_153 = arith.constant 4 : index
    %c1_154 = arith.constant 1 : index
    %c0_155 = arith.constant 0 : index
    %c0_156 = arith.constant 0 : index
    %200 = vector.load %arg4[%c4_153, %c1_154, %c0_155, %c0_156] : memref<5x2x84x80xbf16, #tpu.memory_space<vmem>>, vector<1x1x84x80xbf16>
    %201 = vector.shape_cast %200 : vector<1x1x84x80xbf16> to vector<84x80xbf16>
    %cst_157 = arith.constant dense<0.000000e+00> : vector<10x80xf32>
    %202 = tpu.matmul %195, %201, %cst_157 {dimension_numbers = #tpu.dot_dimension_numbers<[1], [0], [0], [1], [0, 0, 1, 1], [], []>} : vector<10x84xbf16>, vector<84x80xbf16>, vector<10x80xf32> -> vector<10x80xf32>
    %203 = arith.addf %193, %202 : vector<10x80xf32>
    %204 = arith.maximumf %199, %203 : vector<10x80xf32>
    %c0_158 = arith.constant 0 : index
    %c0_159 = arith.constant 0 : index
    %205 = vector.load %arg5[%c0_158, %c0_159] : memref<1x80xf32, #tpu.memory_space<vmem>>, vector<1x80xf32>
    %c0_160 = arith.constant 0 : index
    %c0_161 = arith.constant 0 : index
    %206 = vector.load %arg7[%c0_160, %c0_161] : memref<1x120xf32, #tpu.memory_space<vmem>>, vector<1x120xf32>
    %207 = vector.extract_strided_slice %204 {offsets = [0, 0], sizes = [1, 80], strides = [1, 1]} : vector<10x80xf32> to vector<1x80xf32>
    %208 = vector.extract_strided_slice %204 {offsets = [1, 0], sizes = [1, 80], strides = [1, 1]} : vector<10x80xf32> to vector<1x80xf32>
    %209 = arith.maximumf %207, %208 : vector<1x80xf32>
    %210 = arith.addf %209, %205 : vector<1x80xf32>
    %cst_162 = arith.constant 0.000000e+00 : f32
    %211 = vector.broadcast %cst_162 : f32 to vector<1x80xf32>
    %212 = arith.maximumf %210, %211 : vector<1x80xf32>
    %213 = arith.truncf %212 : vector<1x80xf32> to vector<1x80xbf16>
    %c0_163 = arith.constant 0 : index
    %c0_164 = arith.constant 0 : index
    %c0_165 = arith.constant 0 : index
    %214 = vector.load %arg6[%c0_163, %c0_164, %c0_165] : memref<5x80x120xbf16, #tpu.memory_space<vmem>>, vector<1x80x120xbf16>
    %215 = vector.shape_cast %214 : vector<1x80x120xbf16> to vector<80x120xbf16>
    %cst_166 = arith.constant dense<0.000000e+00> : vector<1x120xf32>
    %216 = tpu.matmul %213, %215, %cst_166 {dimension_numbers = #tpu.dot_dimension_numbers<[1], [0], [0], [1], [0, 0, 1, 1], [], []>} : vector<1x80xbf16>, vector<80x120xbf16>, vector<1x120xf32> -> vector<1x120xf32>
    %217 = arith.addf %206, %216 : vector<1x120xf32>
    %218 = vector.extract_strided_slice %204 {offsets = [2, 0], sizes = [1, 80], strides = [1, 1]} : vector<10x80xf32> to vector<1x80xf32>
    %219 = vector.extract_strided_slice %204 {offsets = [3, 0], sizes = [1, 80], strides = [1, 1]} : vector<10x80xf32> to vector<1x80xf32>
    %220 = arith.maximumf %218, %219 : vector<1x80xf32>
    %221 = arith.addf %220, %205 : vector<1x80xf32>
    %cst_167 = arith.constant 0.000000e+00 : f32
    %222 = vector.broadcast %cst_167 : f32 to vector<1x80xf32>
    %223 = arith.maximumf %221, %222 : vector<1x80xf32>
    %224 = arith.truncf %223 : vector<1x80xf32> to vector<1x80xbf16>
    %c1_168 = arith.constant 1 : index
    %c0_169 = arith.constant 0 : index
    %c0_170 = arith.constant 0 : index
    %225 = vector.load %arg6[%c1_168, %c0_169, %c0_170] : memref<5x80x120xbf16, #tpu.memory_space<vmem>>, vector<1x80x120xbf16>
    %226 = vector.shape_cast %225 : vector<1x80x120xbf16> to vector<80x120xbf16>
    %cst_171 = arith.constant dense<0.000000e+00> : vector<1x120xf32>
    %227 = tpu.matmul %224, %226, %cst_171 {dimension_numbers = #tpu.dot_dimension_numbers<[1], [0], [0], [1], [0, 0, 1, 1], [], []>} : vector<1x80xbf16>, vector<80x120xbf16>, vector<1x120xf32> -> vector<1x120xf32>
    %228 = arith.addf %217, %227 : vector<1x120xf32>
    %229 = vector.extract_strided_slice %204 {offsets = [4, 0], sizes = [1, 80], strides = [1, 1]} : vector<10x80xf32> to vector<1x80xf32>
    %230 = vector.extract_strided_slice %204 {offsets = [5, 0], sizes = [1, 80], strides = [1, 1]} : vector<10x80xf32> to vector<1x80xf32>
    %231 = arith.maximumf %229, %230 : vector<1x80xf32>
    %232 = arith.addf %231, %205 : vector<1x80xf32>
    %cst_172 = arith.constant 0.000000e+00 : f32
    %233 = vector.broadcast %cst_172 : f32 to vector<1x80xf32>
    %234 = arith.maximumf %232, %233 : vector<1x80xf32>
    %235 = arith.truncf %234 : vector<1x80xf32> to vector<1x80xbf16>
    %c2_173 = arith.constant 2 : index
    %c0_174 = arith.constant 0 : index
    %c0_175 = arith.constant 0 : index
    %236 = vector.load %arg6[%c2_173, %c0_174, %c0_175] : memref<5x80x120xbf16, #tpu.memory_space<vmem>>, vector<1x80x120xbf16>
    %237 = vector.shape_cast %236 : vector<1x80x120xbf16> to vector<80x120xbf16>
    %cst_176 = arith.constant dense<0.000000e+00> : vector<1x120xf32>
    %238 = tpu.matmul %235, %237, %cst_176 {dimension_numbers = #tpu.dot_dimension_numbers<[1], [0], [0], [1], [0, 0, 1, 1], [], []>} : vector<1x80xbf16>, vector<80x120xbf16>, vector<1x120xf32> -> vector<1x120xf32>
    %239 = arith.addf %228, %238 : vector<1x120xf32>
    %240 = vector.extract_strided_slice %204 {offsets = [6, 0], sizes = [1, 80], strides = [1, 1]} : vector<10x80xf32> to vector<1x80xf32>
    %241 = vector.extract_strided_slice %204 {offsets = [7, 0], sizes = [1, 80], strides = [1, 1]} : vector<10x80xf32> to vector<1x80xf32>
    %242 = arith.maximumf %240, %241 : vector<1x80xf32>
    %243 = arith.addf %242, %205 : vector<1x80xf32>
    %cst_177 = arith.constant 0.000000e+00 : f32
    %244 = vector.broadcast %cst_177 : f32 to vector<1x80xf32>
    %245 = arith.maximumf %243, %244 : vector<1x80xf32>
    %246 = arith.truncf %245 : vector<1x80xf32> to vector<1x80xbf16>
    %c3_178 = arith.constant 3 : index
    %c0_179 = arith.constant 0 : index
    %c0_180 = arith.constant 0 : index
    %247 = vector.load %arg6[%c3_178, %c0_179, %c0_180] : memref<5x80x120xbf16, #tpu.memory_space<vmem>>, vector<1x80x120xbf16>
    %248 = vector.shape_cast %247 : vector<1x80x120xbf16> to vector<80x120xbf16>
    %cst_181 = arith.constant dense<0.000000e+00> : vector<1x120xf32>
    %249 = tpu.matmul %246, %248, %cst_181 {dimension_numbers = #tpu.dot_dimension_numbers<[1], [0], [0], [1], [0, 0, 1, 1], [], []>} : vector<1x80xbf16>, vector<80x120xbf16>, vector<1x120xf32> -> vector<1x120xf32>
    %250 = arith.addf %239, %249 : vector<1x120xf32>
    %251 = vector.extract_strided_slice %204 {offsets = [8, 0], sizes = [1, 80], strides = [1, 1]} : vector<10x80xf32> to vector<1x80xf32>
    %252 = vector.extract_strided_slice %204 {offsets = [9, 0], sizes = [1, 80], strides = [1, 1]} : vector<10x80xf32> to vector<1x80xf32>
    %253 = arith.maximumf %251, %252 : vector<1x80xf32>
    %254 = arith.addf %253, %205 : vector<1x80xf32>
    %cst_182 = arith.constant 0.000000e+00 : f32
    %255 = vector.broadcast %cst_182 : f32 to vector<1x80xf32>
    %256 = arith.maximumf %254, %255 : vector<1x80xf32>
    %257 = arith.truncf %256 : vector<1x80xf32> to vector<1x80xbf16>
    %c4_183 = arith.constant 4 : index
    %c0_184 = arith.constant 0 : index
    %c0_185 = arith.constant 0 : index
    %258 = vector.load %arg6[%c4_183, %c0_184, %c0_185] : memref<5x80x120xbf16, #tpu.memory_space<vmem>>, vector<1x80x120xbf16>
    %259 = vector.shape_cast %258 : vector<1x80x120xbf16> to vector<80x120xbf16>
    %cst_186 = arith.constant dense<0.000000e+00> : vector<1x120xf32>
    %260 = tpu.matmul %257, %259, %cst_186 {dimension_numbers = #tpu.dot_dimension_numbers<[1], [0], [0], [1], [0, 0, 1, 1], [], []>} : vector<1x80xbf16>, vector<80x120xbf16>, vector<1x120xf32> -> vector<1x120xf32>
    %261 = arith.addf %250, %260 : vector<1x120xf32>
    %cst_187 = arith.constant 0.000000e+00 : f32
    %262 = vector.broadcast %cst_187 : f32 to vector<1x120xf32>
    %263 = arith.maximumf %261, %262 : vector<1x120xf32>
    %264 = arith.truncf %263 : vector<1x120xf32> to vector<1x120xbf16>
    %c0_188 = arith.constant 0 : index
    %c0_189 = arith.constant 0 : index
    %265 = vector.load %arg8[%c0_188, %c0_189] : memref<120x84xbf16, #tpu.memory_space<vmem>>, vector<120x84xbf16>
    %cst_190 = arith.constant dense<0.000000e+00> : vector<1x84xf32>
    %266 = tpu.matmul %264, %265, %cst_190 {dimension_numbers = #tpu.dot_dimension_numbers<[1], [0], [0], [1], [0, 0, 1, 1], [], []>} : vector<1x120xbf16>, vector<120x84xbf16>, vector<1x84xf32> -> vector<1x84xf32>
    %c0_191 = arith.constant 0 : index
    %c0_192 = arith.constant 0 : index
    %267 = vector.load %arg9[%c0_191, %c0_192] : memref<1x84xf32, #tpu.memory_space<vmem>>, vector<1x84xf32>
    %268 = arith.addf %266, %267 : vector<1x84xf32>
    %cst_193 = arith.constant 0.000000e+00 : f32
    %269 = vector.broadcast %cst_193 : f32 to vector<1x84xf32>
    %270 = arith.maximumf %268, %269 : vector<1x84xf32>
    %271 = arith.truncf %270 : vector<1x84xf32> to vector<1x84xbf16>
    %c0_194 = arith.constant 0 : index
    %c0_195 = arith.constant 0 : index
    %272 = vector.load %arg10[%c0_194, %c0_195] : memref<84x10xbf16, #tpu.memory_space<vmem>>, vector<84x10xbf16>
    %cst_196 = arith.constant dense<0.000000e+00> : vector<1x10xf32>
    %273 = tpu.matmul %271, %272, %cst_196 {dimension_numbers = #tpu.dot_dimension_numbers<[1], [0], [0], [1], [0, 0, 1, 1], [], []>} : vector<1x84xbf16>, vector<84x10xbf16>, vector<1x10xf32> -> vector<1x10xf32>
    %c0_197 = arith.constant 0 : index
    %c0_198 = arith.constant 0 : index
    %274 = vector.load %arg11[%c0_197, %c0_198] : memref<1x10xf32, #tpu.memory_space<vmem>>, vector<1x10xf32>
    %275 = arith.addf %273, %274 : vector<1x10xf32>
    %c0_199 = arith.constant 0 : index
    %c0_200 = arith.constant 0 : index
    %c0_201 = arith.constant 0 : index
    %276 = vector.load %arg12[%c0_199, %c0_200, %c0_201] : memref<1x1x10xf32, #tpu.memory_space<vmem>>, vector<1x1x10xf32>
    %277 = vector.shape_cast %276 : vector<1x1x10xf32> to vector<1x10xf32>
    %278 = vector.shape_cast %275 : vector<1x10xf32> to vector<1x1x10xf32>
    tpu.vector_store %arg12[%c0_199, %c0_200, %c0_201], %278 {strides = array<i32>} : memref<1x1x10xf32, #tpu.memory_space<vmem>>, vector<1x1x10xf32>,
    return
  }
  func.func @transform_0(%arg0: i32) -> (i32, i32, i32) {
    %c0_i32 = arith.constant 0 : i32
    %c0_i32_0 = arith.constant 0 : i32
    %c0_i32_1 = arith.constant 0 : i32
    return %arg0, %c0_i32, %c0_i32_0 : i32, i32, i32
  }
  func.func @transform_1(%arg0: i32) -> (i32, i32, i32, i32) {
    %c0_i32 = arith.constant 0 : i32
    %c0_i32_0 = arith.constant 0 : i32
    %c0_i32_1 = arith.constant 0 : i32
    %c0_i32_2 = arith.constant 0 : i32
    %c0_i32_3 = arith.constant 0 : i32
    return %c0_i32, %c0_i32_0, %c0_i32_1, %c0_i32_2 : i32, i32, i32, i32
  }
  func.func @transform_2(%arg0: i32) -> (i32, i32) {
    %c0_i32 = arith.constant 0 : i32
    %c0_i32_0 = arith.constant 0 : i32
    %c0_i32_1 = arith.constant 0 : i32
    return %c0_i32, %c0_i32_0 : i32, i32
  }
  func.func @transform_3(%arg0: i32) -> (i32, i32, i32, i32) {
    %c0_i32 = arith.constant 0 : i32
    %c0_i32_0 = arith.constant 0 : i32
    %c0_i32_1 = arith.constant 0 : i32
    %c0_i32_2 = arith.constant 0 : i32
    %c0_i32_3 = arith.constant 0 : i32
    return %c0_i32, %c0_i32_0, %c0_i32_1, %c0_i32_2 : i32, i32, i32, i32
  }
  func.func @transform_4(%arg0: i32) -> (i32, i32) {
    %c0_i32 = arith.constant 0 : i32
    %c0_i32_0 = arith.constant 0 : i32
    %c0_i32_1 = arith.constant 0 : i32
    return %c0_i32, %c0_i32_0 : i32, i32
  }
  func.func @transform_5(%arg0: i32) -> (i32, i32, i32) {
    %c0_i32 = arith.constant 0 : i32
    %c0_i32_0 = arith.constant 0 : i32
    %c0_i32_1 = arith.constant 0 : i32
    %c0_i32_2 = arith.constant 0 : i32
    return %c0_i32, %c0_i32_0, %c0_i32_1 : i32, i32, i32
  }
  func.func @transform_6(%arg0: i32) -> (i32, i32) {
    %c0_i32 = arith.constant 0 : i32
    %c0_i32_0 = arith.constant 0 : i32
    %c0_i32_1 = arith.constant 0 : i32
    return %c0_i32, %c0_i32_0 : i32, i32
  }
  func.func @transform_7(%arg0: i32) -> (i32, i32) {
    %c0_i32 = arith.constant 0 : i32
    %c0_i32_0 = arith.constant 0 : i32
    %c0_i32_1 = arith.constant 0 : i32
    return %c0_i32, %c0_i32_0 : i32, i32
  }
  func.func @transform_8(%arg0: i32) -> (i32, i32) {
    %c0_i32 = arith.constant 0 : i32
    %c0_i32_0 = arith.constant 0 : i32
    %c0_i32_1 = arith.constant 0 : i32
    return %c0_i32, %c0_i32_0 : i32, i32
  }
  func.func @transform_9(%arg0: i32) -> (i32, i32) {
    %c0_i32 = arith.constant 0 : i32
    %c0_i32_0 = arith.constant 0 : i32
    %c0_i32_1 = arith.constant 0 : i32
    return %c0_i32, %c0_i32_0 : i32, i32
  }
  func.func @transform_10(%arg0: i32) -> (i32, i32) {
    %c0_i32 = arith.constant 0 : i32
    %c0_i32_0 = arith.constant 0 : i32
    %c0_i32_1 = arith.constant 0 : i32
    return %c0_i32, %c0_i32_0 : i32, i32
  }
  func.func @transform_11(%arg0: i32) -> (i32, i32, i32) {
    %c0_i32 = arith.constant 0 : i32
    %c0_i32_0 = arith.constant 0 : i32
    %c0_i32_1 = arith.constant 0 : i32
    return %arg0, %c0_i32, %c0_i32_0 : i32, i32, i32
  }
}

</mosaic_0001>

<llo_original>
// kernel: net_forward.1
$region0: #{net_forward.1}
  #allocation0 [shape = 'u32[]', space=smem, size = 0x4, offset = 0x4, fixed_abs, tag = 'smem constant byte address 0x4 - core index']
  #allocation1 [shape = 'u32[144,128]{1,0:T(1,128)}', space=vmem, size = 0x12000, scoped, tag = 'internal scratch']
  #allocation2 [shape = 'f32[14,84]{1,0:T(8,128)}', space=vmem, size = 0x2000, scoped, tag = 'scratch operand']
  %s0 = inlined_call_operand.vmem [shape: bf16[2,32,96], index: 0, kind: input, shape index: {}]
  %s1 = inlined_call_operand.vmem [shape: bf16[5,2,96,84], index: 1, kind: input, shape index: {}]
  %s2 = inlined_call_operand.vmem [shape: f32[1,84], index: 2, kind: input, shape index: {}]
  %s3 = inlined_call_operand.vmem [shape: bf16[5,2,84,80], index: 3, kind: input, shape index: {}]
  %s4 = inlined_call_operand.vmem [shape: f32[1,80], index: 4, kind: input, shape index: {}]
  %s5 = inlined_call_operand.vmem [shape: bf16[5,80,120], index: 5, kind: input, shape index: {}]
  %s6 = inlined_call_operand.vmem [shape: f32[1,120], index: 6, kind: input, shape index: {}]
  %s7 = inlined_call_operand.vmem [shape: bf16[120,84], index: 7, kind: input, shape index: {}]
  %s8 = inlined_call_operand.vmem [shape: f32[1,84], index: 8, kind: input, shape index: {}]
  %s9 = inlined_call_operand.vmem [shape: bf16[84,10], index: 9, kind: input, shape index: {}]
  %s10 = inlined_call_operand.vmem [shape: f32[1,10], index: 10, kind: input, shape index: {}]
  %s11 = inlined_call_operand.hbm [shape: f32[2,1,10], index: 11, kind: output, shape index: {}]
  %s12 = sld [smem:[#allocation0]]
  $region77: #{net_forward.1} parent=0
    _
  %s14 = ssub.s32 1, %s12
  %s15 = scalar_select 0, %s14, %s12
  $region1: #{net_forward.1} parent=0
    #allocation3 [shape = 'u8[1024]{0}', space=vmem, size = 0x400, scoped, tag = 'output window, operand 0']
    #allocation4 [shape = 's32[2]{0}', space=sflag, size = 0x8, scoped, tag = 'scoped memory for net_forward.1']
    %16 = vsyncpa [#allocation4], 0
    %s17 = scalar_lea.sflag [#allocation4], 1
    %18 = vsyncpa %s17, 0
    loop: start=0, step=1, limit=4
    $region2: #{net_forward.1} parent=1 // loop_pre_header
      _
    $region3: #{net_forward.1} parent=1 // loop_header
      %s20 = sphi 0, %s24
      %p21 = scmp.ge.s32.totalorder %s20, 4
      %s30 = sphi 0, %s32
      %s33 = sphi 0, %s30
      %s34 = sphi 0, %s33
      %s50 = sphi 0, %s34
      %s54 = sphi 0, %s54
      %s56 = sphi 0, %s54
      %s57 = sphi 0, %s56
      %s71 = sphi 0, %s57
      %s75 = sphi 0, %s75
      %s77 = sphi 0, %s75
      %s78 = sphi 0, %s77
      %s92 = sphi 0, %s78
      %s96 = sphi 0, %s96
      %s98 = sphi 0, %s96
      %s99 = sphi 0, %s98
      %s113 = sphi 0, %s99
      %s117 = sphi 0, %s117
      %s119 = sphi 0, %s117
      %s120 = sphi 0, %s119
      %s134 = sphi 0, %s120
      %s138 = sphi 0, %s138
      %s140 = sphi 0, %s138
      %s141 = sphi 0, %s140
      %s155 = sphi 0, %s141
      %s159 = sphi 0, %s159
      %s161 = sphi 0, %s159
      %s162 = sphi 0, %s161
      %s176 = sphi 0, %s162
      %s180 = sphi 0, %s180
      %s182 = sphi 0, %s180
      %s183 = sphi 0, %s182
      %s197 = sphi 0, %s183
      %s201 = sphi 0, %s201
      %s203 = sphi 0, %s201
      %s204 = sphi 0, %s203
      %s218 = sphi 0, %s204
      %s222 = sphi 0, %s222
      %s224 = sphi 0, %s222
      %s225 = sphi 0, %s224
      %s239 = sphi 0, %s225
      %s243 = sphi 0, %s243
      %s245 = sphi 0, %s243
      %s246 = sphi 0, %s245
      %s260 = sphi 0, %s246
      %s266 = sphi 0, %s268
      %s269 = sphi 0, %s266
      %s270 = sphi 0, %s269
      %s286 = sphi 0, %s270
    $region4: #{net_forward.1} parent=1 // loop_header_branch
      %23 = sbr.rel (%p21) target = $region8
    $region5: #{net_forward.1} parent=1 // loop_body
      %s25 = ssub.s32 %s20, 1
      %s26 = ssub.s32 %s20, 2
      %s27 = sadd.s32 %s20, 1
      %s28 = ssub.s32 %s20, %s27
      %p29 = scmp.eq.s32.totalorder %s28, 0
      %s31 = sadd.s32 %s30, 1
      %s32 = scalar_select %p29, %s30, %s31
      %p35 = pneg %p29
      %p36 = scmp.eq.s32.totalorder %s20, 1
      %p37 = por %p35, %p36
      %p38 = scmp.ne.s32.totalorder %s30, %s33
      %p39 = scmp.eq.s32.totalorder %s20, 0
      %p40 = por %p38, %p39
      %p41 = scmp.ne.s32.totalorder %s30, %s33
      %p42 = scmp.eq.s32.totalorder %s25, 1
      %p43 = por %p41, %p42
      %p44 = scmp.ne.s32.totalorder %s33, %s34
      %p45 = scmp.eq.s32.totalorder %s25, 0
      %p46 = por %p44, %p45
      %p47 = scmp.ne.s32.totalorder %s33, %s34
      %p48 = scmp.eq.s32.totalorder %s26, 1
      %p49 = por %p47, %p48
      %p51 = scmp.ne.s32.totalorder %s34, %s50
      %p52 = scmp.eq.s32.totalorder %s26, 0
      %p53 = por %p51, %p52
      %s55 = sadd.s32 %s54, 1
      %p58 = scmp.eq.s32.totalorder %s20, 1
      %p59 = scmp.ne.s32.totalorder %s54, %s56
      %p60 = scmp.eq.s32.totalorder %s20, 0
      %p61 = por %p59, %p60
      %p62 = scmp.ne.s32.totalorder %s54, %s56
      %p63 = scmp.eq.s32.totalorder %s25, 1
      %p64 = por %p62, %p63
      %p65 = scmp.ne.s32.totalorder %s56, %s57
      %p66 = scmp.eq.s32.totalorder %s25, 0
      %p67 = por %p65, %p66
      %p68 = scmp.ne.s32.totalorder %s56, %s57
      %p69 = scmp.eq.s32.totalorder %s26, 1
      %p70 = por %p68, %p69
      %p72 = scmp.ne.s32.totalorder %s57, %s71
      %p73 = scmp.eq.s32.totalorder %s26, 0
      %p74 = por %p72, %p73
      %s76 = sadd.s32 %s75, 1
      %p79 = scmp.eq.s32.totalorder %s20, 1
      %p80 = scmp.ne.s32.totalorder %s75, %s77
      %p81 = scmp.eq.s32.totalorder %s20, 0
      %p82 = por %p80, %p81
      %p83 = scmp.ne.s32.totalorder %s75, %s77
      %p84 = scmp.eq.s32.totalorder %s25, 1
      %p85 = por %p83, %p84
      %p86 = scmp.ne.s32.totalorder %s77, %s78
      %p87 = scmp.eq.s32.totalorder %s25, 0
      %p88 = por %p86, %p87
      %p89 = scmp.ne.s32.totalorder %s77, %s78
      %p90 = scmp.eq.s32.totalorder %s26, 1
      %p91 = por %p89, %p90
      %p93 = scmp.ne.s32.totalorder %s78, %s92
      %p94 = scmp.eq.s32.totalorder %s26, 0
      %p95 = por %p93, %p94
      %s97 = sadd.s32 %s96, 1
      %p100 = scmp.eq.s32.totalorder %s20, 1
      %p101 = scmp.ne.s32.totalorder %s96, %s98
      %p102 = scmp.eq.s32.totalorder %s20, 0
      %p103 = por %p101, %p102
      %p104 = scmp.ne.s32.totalorder %s96, %s98
      %p105 = scmp.eq.s32.totalorder %s25, 1
      %p106 = por %p104, %p105
      %p107 = scmp.ne.s32.totalorder %s98, %s99
      %p108 = scmp.eq.s32.totalorder %s25, 0
      %p109 = por %p107, %p108
      %p110 = scmp.ne.s32.totalorder %s98, %s99
      %p111 = scmp.eq.s32.totalorder %s26, 1
      %p112 = por %p110, %p111
      %p114 = scmp.ne.s32.totalorder %s99, %s113
      %p115 = scmp.eq.s32.totalorder %s26, 0
      %p116 = por %p114, %p115
      %s118 = sadd.s32 %s117, 1
      %p121 = scmp.eq.s32.totalorder %s20, 1
      %p122 = scmp.ne.s32.totalorder %s117, %s119
      %p123 = scmp.eq.s32.totalorder %s20, 0
      %p124 = por %p122, %p123
      %p125 = scmp.ne.s32.totalorder %s117, %s119
      %p126 = scmp.eq.s32.totalorder %s25, 1
      %p127 = por %p125, %p126
      %p128 = scmp.ne.s32.totalorder %s119, %s120
      %p129 = scmp.eq.s32.totalorder %s25, 0
      %p130 = por %p128, %p129
      %p131 = scmp.ne.s32.totalorder %s119, %s120
      %p132 = scmp.eq.s32.totalorder %s26, 1
      %p133 = por %p131, %p132
      %p135 = scmp.ne.s32.totalorder %s120, %s134
      %p136 = scmp.eq.s32.totalorder %s26, 0
      %p137 = por %p135, %p136
      %s139 = sadd.s32 %s138, 1
      %p142 = scmp.eq.s32.totalorder %s20, 1
      %p143 = scmp.ne.s32.totalorder %s138, %s140
      %p144 = scmp.eq.s32.totalorder %s20, 0
      %p145 = por %p143, %p144
      %p146 = scmp.ne.s32.totalorder %s138, %s140
      %p147 = scmp.eq.s32.totalorder %s25, 1
      %p148 = por %p146, %p147
      %p149 = scmp.ne.s32.totalorder %s140, %s141
      %p150 = scmp.eq.s32.totalorder %s25, 0
      %p151 = por %p149, %p150
      %p152 = scmp.ne.s32.totalorder %s140, %s141
      %p153 = scmp.eq.s32.totalorder %s26, 1
      %p154 = por %p152, %p153
      %p156 = scmp.ne.s32.totalorder %s141, %s155
      %p157 = scmp.eq.s32.totalorder %s26, 0
      %p158 = por %p156, %p157
      %s160 = sadd.s32 %s159, 1
      %p163 = scmp.eq.s32.totalorder %s20, 1
      %p164 = scmp.ne.s32.totalorder %s159, %s161
      %p165 = scmp.eq.s32.totalorder %s20, 0
      %p166 = por %p164, %p165
      %p167 = scmp.ne.s32.totalorder %s159, %s161
      %p168 = scmp.eq.s32.totalorder %s25, 1
      %p169 = por %p167, %p168
      %p170 = scmp.ne.s32.totalorder %s161, %s162
      %p171 = scmp.eq.s32.totalorder %s25, 0
      %p172 = por %p170, %p171
      %p173 = scmp.ne.s32.totalorder %s161, %s162
      %p174 = scmp.eq.s32.totalorder %s26, 1
      %p175 = por %p173, %p174
      %p177 = scmp.ne.s32.totalorder %s162, %s176
      %p178 = scmp.eq.s32.totalorder %s26, 0
      %p179 = por %p177, %p178
      %s181 = sadd.s32 %s180, 1
      %p184 = scmp.eq.s32.totalorder %s20, 1
      %p185 = scmp.ne.s32.totalorder %s180, %s182
      %p186 = scmp.eq.s32.totalorder %s20, 0
      %p187 = por %p185, %p186
      %p188 = scmp.ne.s32.totalorder %s180, %s182
      %p189 = scmp.eq.s32.totalorder %s25, 1
      %p190 = por %p188, %p189
      %p191 = scmp.ne.s32.totalorder %s182, %s183
      %p192 = scmp.eq.s32.totalorder %s25, 0
      %p193 = por %p191, %p192
      %p194 = scmp.ne.s32.totalorder %s182, %s183
      %p195 = scmp.eq.s32.totalorder %s26, 1
      %p196 = por %p194, %p195
      %p198 = scmp.ne.s32.totalorder %s183, %s197
      %p199 = scmp.eq.s32.totalorder %s26, 0
      %p200 = por %p198, %p199
      %s202 = sadd.s32 %s201, 1
      %p205 = scmp.eq.s32.totalorder %s20, 1
      %p206 = scmp.ne.s32.totalorder %s201, %s203
      %p207 = scmp.eq.s32.totalorder %s20, 0
      %p208 = por %p206, %p207
      %p209 = scmp.ne.s32.totalorder %s201, %s203
      %p210 = scmp.eq.s32.totalorder %s25, 1
      %p211 = por %p209, %p210
      %p212 = scmp.ne.s32.totalorder %s203, %s204
      %p213 = scmp.eq.s32.totalorder %s25, 0
      %p214 = por %p212, %p213
      %p215 = scmp.ne.s32.totalorder %s203, %s204
      %p216 = scmp.eq.s32.totalorder %s26, 1
      %p217 = por %p215, %p216
      %p219 = scmp.ne.s32.totalorder %s204, %s218
      %p220 = scmp.eq.s32.totalorder %s26, 0
      %p221 = por %p219, %p220
      %s223 = sadd.s32 %s222, 1
      %p226 = scmp.eq.s32.totalorder %s20, 1
      %p227 = scmp.ne.s32.totalorder %s222, %s224
      %p228 = scmp.eq.s32.totalorder %s20, 0
      %p229 = por %p227, %p228
      %p230 = scmp.ne.s32.totalorder %s222, %s224
      %p231 = scmp.eq.s32.totalorder %s25, 1
      %p232 = por %p230, %p231
      %p233 = scmp.ne.s32.totalorder %s224, %s225
      %p234 = scmp.eq.s32.totalorder %s25, 0
      %p235 = por %p233, %p234
      %p236 = scmp.ne.s32.totalorder %s224, %s225
      %p237 = scmp.eq.s32.totalorder %s26, 1
      %p238 = por %p236, %p237
      %p240 = scmp.ne.s32.totalorder %s225, %s239
      %p241 = scmp.eq.s32.totalorder %s26, 0
      %p242 = por %p240, %p241
      %s244 = sadd.s32 %s243, 1
      %p247 = scmp.eq.s32.totalorder %s20, 1
      %p248 = scmp.ne.s32.totalorder %s243, %s245
      %p249 = scmp.eq.s32.totalorder %s20, 0
      %p250 = por %p248, %p249
      %p251 = scmp.ne.s32.totalorder %s243, %s245
      %p252 = scmp.eq.s32.totalorder %s25, 1
      %p253 = por %p251, %p252
      %p254 = scmp.ne.s32.totalorder %s245, %s246
      %p255 = scmp.eq.s32.totalorder %s25, 0
      %p256 = por %p254, %p255
      %p257 = scmp.ne.s32.totalorder %s245, %s246
      %p258 = scmp.eq.s32.totalorder %s26, 1
      %p259 = por %p257, %p258
      %p261 = scmp.ne.s32.totalorder %s246, %s260
      %p262 = scmp.eq.s32.totalorder %s26, 0
      %p263 = por %p261, %p262
      %s264 = ssub.s32 %s20, %s27
      %p265 = scmp.eq.s32.totalorder %s264, 0
      %s267 = sadd.s32 %s266, 1
      %s268 = scalar_select %p265, %s266, %s267
      %p271 = pneg %p265
      %p272 = scmp.eq.s32.totalorder %s20, 1
      %p273 = por %p271, %p272
      %p274 = scmp.ne.s32.totalorder %s266, %s269
      %p275 = scmp.eq.s32.totalorder %s20, 0
      %p276 = por %p274, %p275
      %p277 = scmp.ne.s32.totalorder %s266, %s269
      %p278 = scmp.eq.s32.totalorder %s25, 1
      %p279 = por %p277, %p278
      %p280 = scmp.ne.s32.totalorder %s269, %s270
      %p281 = scmp.eq.s32.totalorder %s25, 0
      %p282 = por %p280, %p281
      %p283 = scmp.ne.s32.totalorder %s269, %s270
      %p284 = scmp.eq.s32.totalorder %s26, 1
      %p285 = por %p283, %p284
      %p287 = scmp.ne.s32.totalorder %s270, %s286
      %p288 = scmp.eq.s32.totalorder %s26, 0
      %p289 = por %p287, %p288
      %p290 = scmp.le.s32.totalorder 1, %s20
      %p291 = scmp.lt.s32.totalorder %s20, 3
      %p292 = pnand %p290, %p291
      %p293 = pneg %p292
      // Predicated region
      $region9: #{net_forward.1} parent=5 // pred_check
        _
      $region10: #{net_forward.1} parent=5 // pred_check_branch
        %295 = sbr.rel (%p292) target = $region12
      $region11: #{net_forward.1} parent=5 // pred_region
        %s296 = ssub.s32 %s20, 1
        // Predicated region
        $region13: #{net_forward.1} parent=11 // pred_check
          %p297 = pneg %p67
        $region14: #{net_forward.1} parent=11 // pred_check_branch
          %299 = sbr.rel (%p297) target = $region16
        $region15: #{net_forward.1} parent=11 // pred_region
          _
        $region16: #{net_forward.1} parent=11 // pred_fallthru
          _
        // Predicated region
        $region17: #{net_forward.1} parent=11 // pred_check
          %p300 = pneg %p88
        $region18: #{net_forward.1} parent=11 // pred_check_branch
          %302 = sbr.rel (%p300) target = $region20
        $region19: #{net_forward.1} parent=11 // pred_region
          _
        $region20: #{net_forward.1} parent=11 // pred_fallthru
          _
        // Predicated region
        $region21: #{net_forward.1} parent=11 // pred_check
          %p303 = pneg %p109
        $region22: #{net_forward.1} parent=11 // pred_check_branch
          %305 = sbr.rel (%p303) target = $region24
        $region23: #{net_forward.1} parent=11 // pred_region
          _
        $region24: #{net_forward.1} parent=11 // pred_fallthru
          _
        // Predicated region
        $region25: #{net_forward.1} parent=11 // pred_check
          %p306 = pneg %p130
        $region26: #{net_forward.1} parent=11 // pred_check_branch
          %308 = sbr.rel (%p306) target = $region28
        $region27: #{net_forward.1} parent=11 // pred_region
          _
        $region28: #{net_forward.1} parent=11 // pred_fallthru
          _
        // Predicated region
        $region29: #{net_forward.1} parent=11 // pred_check
          %p309 = pneg %p151
        $region30: #{net_forward.1} parent=11 // pred_check_branch
          %311 = sbr.rel (%p309) target = $region32
        $region31: #{net_forward.1} parent=11 // pred_region
          _
        $region32: #{net_forward.1} parent=11 // pred_fallthru
          _
        // Predicated region
        $region33: #{net_forward.1} parent=11 // pred_check
          %p312 = pneg %p172
        $region34: #{net_forward.1} parent=11 // pred_check_branch
          %314 = sbr.rel (%p312) target = $region36
        $region35: #{net_forward.1} parent=11 // pred_region
          _
        $region36: #{net_forward.1} parent=11 // pred_fallthru
          _
        // Predicated region
        $region37: #{net_forward.1} parent=11 // pred_check
          %p315 = pneg %p193
        $region38: #{net_forward.1} parent=11 // pred_check_branch
          %317 = sbr.rel (%p315) target = $region40
        $region39: #{net_forward.1} parent=11 // pred_region
          _
        $region40: #{net_forward.1} parent=11 // pred_fallthru
          _
        // Predicated region
        $region41: #{net_forward.1} parent=11 // pred_check
          %p318 = pneg %p214
        $region42: #{net_forward.1} parent=11 // pred_check_branch
          %320 = sbr.rel (%p318) target = $region44
        $region43: #{net_forward.1} parent=11 // pred_region
          _
        $region44: #{net_forward.1} parent=11 // pred_fallthru
          _
        // Predicated region
        $region45: #{net_forward.1} parent=11 // pred_check
          %p321 = pneg %p235
        $region46: #{net_forward.1} parent=11 // pred_check_branch
          %323 = sbr.rel (%p321) target = $region48
        $region47: #{net_forward.1} parent=11 // pred_region
          _
        $region48: #{net_forward.1} parent=11 // pred_fallthru
          _
        // Predicated region
        $region49: #{net_forward.1} parent=11 // pred_check
          %p324 = pneg %p256
        $region50: #{net_forward.1} parent=11 // pred_check_branch
          %326 = sbr.rel (%p324) target = $region52
        $region51: #{net_forward.1} parent=11 // pred_region
          _
        $region52: #{net_forward.1} parent=11 // pred_fallthru
          _
      $region12: #{net_forward.1} parent=5 // pred_fallthru
        _
      %p327 = scmp.lt.s32.totalorder %s20, 2
      // Predicated region
      $region53: #{net_forward.1} parent=5 // pred_check
        %p328 = pneg %p327
      $region54: #{net_forward.1} parent=5 // pred_check_branch
        %330 = sbr.rel (%p328) target = $region56
      $region55: #{net_forward.1} parent=5 // pred_region
        // Predicated region
        $region57: #{net_forward.1} parent=55 // pred_check
          %p331 = pneg %p40
        $region58: #{net_forward.1} parent=55 // pred_check_branch
          %333 = sbr.rel (%p331) target = $region60
        $region59: #{net_forward.1} parent=55 // pred_region
          %p334 = scmp.lt.s32.totalorder %s20, 1
          %s335 = scalar_select %p334, %s20, 1
          %s336 = smul.addr %s335, 4
          %s337 = smul.addr %s336, 4
          %s338 = scalar_lea.vmem %s0, %s337
        $region60: #{net_forward.1} parent=55 // pred_fallthru
          _
      $region56: #{net_forward.1} parent=5 // pred_fallthru
        _
      %p339 = scmp.le.s32.totalorder 1, %s20
      %p340 = scmp.lt.s32.totalorder %s20, 3
      %p341 = pnand %p339, %p340
      %p342 = pneg %p341
      // Predicated region
      $region61: #{net_forward.1} parent=5 // pred_check
        _
      $region62: #{net_forward.1} parent=5 // pred_check_branch
        %344 = sbr.rel (%p341) target = $region64
      $region63: #{net_forward.1} parent=5 // pred_region
        %s345 = ssub.s32 %s20, 1
        %p346 = scmp.lt.s32.totalorder %s25, 1
        %s347 = scalar_select %p346, %s25, 1
        %s348 = smul.addr %s347, 4
        %s349 = smul.addr %s348, 4
        %s350 = scalar_lea.vmem %s0, %s349
        %p351 = pneg %p46
        %p352 = pneg %p43
        %p353 = pneg %p67
        %p354 = pneg %p64
        %p355 = pneg %p88
        %p356 = pneg %p85
        %p357 = pneg %p109
        %p358 = pneg %p106
        %p359 = pneg %p130
        %p360 = pneg %p127
        %p361 = pneg %p151
        %p362 = pneg %p148
        %p363 = pneg %p172
        %p364 = pneg %p169
        %p365 = pneg %p193
        %p366 = pneg %p190
        %p367 = pneg %p214
        %p368 = pneg %p211
        %p369 = pneg %p235
        %p370 = pneg %p232
        %p371 = pneg %p256
        %p372 = pneg %p253
        %p373 = pneg %p282
        %p374 = pneg %p279
        %s375 = sand.u32 %s269, 1
        %s376 = scalar_lea.sflag [#allocation4], %s375
        %s377 = sand.u32 %s269, 1
        %s378 = scalar_lea.vmem [#allocation3], %s377
        %p379 = scmp.lt.s32.totalorder %s25, 1
        %s380 = scalar_select %p379, %s25, 1
        %s381 = smul.addr %s380, 4
        %s382 = smul.addr %s381, 4
        %s383 = scalar_lea.vmem %s0, %s382
        %v385 = vld [vmem:[%s383] sm:$0xf]
        %v386 = vld [vmem:[%s383 + $0x4] sm:$0xf]
        %v387 = vld [vmem:[%s383 + $0x8] sm:$0xf]
        %v388 = vld [vmem:[%s383 + $0xc] sm:$0x3]
        %v389 = vld [vmem:[%s1] sm:$0xf]
        %v390 = vld [vmem:[%s1 + $0x4] sm:$0xf]
        %v391 = vld [vmem:[%s1 + $0x8] sm:$0xf]
        %v392 = vld [vmem:[%s1 + $0xc] sm:$0xf]
        %v393 = vld [vmem:[%s1 + $0x10] sm:$0xf]
        %v394 = vld [vmem:[%s1 + $0x14] sm:$0xf]
        %v395 = vld [vmem:[%s1 + $0x18] sm:$0xf]
        %v396 = vld [vmem:[%s1 + $0x1c] sm:$0xf]
        %v397 = vld [vmem:[%s1 + $0x20] sm:$0xf]
        %v398 = vld [vmem:[%s1 + $0x24] sm:$0xf]
        %v399 = vld [vmem:[%s1 + $0x28] sm:$0xf]
        %v400 = vld [vmem:[%s1 + $0x2c] sm:$0xf]
        %s401 = scalar_lea.vmem %s1, 48
        %v402 = vld [vmem:[%s401] sm:$0xf]
        %v403 = vld [vmem:[%s401 + $0x4] sm:$0xf]
        %v404 = vld [vmem:[%s401 + $0x8] sm:$0xf]
        %v405 = vld [vmem:[%s401 + $0xc] sm:$0xf]
        %v406 = vld [vmem:[%s401 + $0x10] sm:$0xf]
        %v407 = vld [vmem:[%s401 + $0x14] sm:$0xf]
        %v408 = vld [vmem:[%s401 + $0x18] sm:$0xf]
        %v409 = vld [vmem:[%s401 + $0x1c] sm:$0xf]
        %v410 = vld [vmem:[%s401 + $0x20] sm:$0xf]
        %v411 = vld [vmem:[%s401 + $0x24] sm:$0xf]
        %v412 = vld [vmem:[%s401 + $0x28] sm:$0xf]
        %v413 = vld [vmem:[%s401 + $0x2c] sm:$0xf]
        %v414 = vld [vmem:[%s383 + $0xc] sm:$0x7]
        %s415 = scalar_lea.vmem %s1, 96
        %v416 = vld [vmem:[%s415] sm:$0xf]
        %v417 = vld [vmem:[%s415 + $0x4] sm:$0xf]
        %v418 = vld [vmem:[%s415 + $0x8] sm:$0xf]
        %v419 = vld [vmem:[%s415 + $0xc] sm:$0xf]
        %v420 = vld [vmem:[%s415 + $0x10] sm:$0xf]
        %v421 = vld [vmem:[%s415 + $0x14] sm:$0xf]
        %v422 = vld [vmem:[%s415 + $0x18] sm:$0xf]
        %v423 = vld [vmem:[%s415 + $0x1c] sm:$0xf]
        %v424 = vld [vmem:[%s415 + $0x20] sm:$0xf]
        %v425 = vld [vmem:[%s415 + $0x24] sm:$0xf]
        %v426 = vld [vmem:[%s415 + $0x28] sm:$0xf]
        %v427 = vld [vmem:[%s415 + $0x2c] sm:$0xf]
        %v432 = vunpack.c.l.b16 %v385
        %v433 = vunpack.c.l.b16 %v386
        %v434 = vunpack.c.l.b16 %v387
        %v435 = vunpack.c.l.b16 %v414
        %v436 = vpack.c.b16 %v433, %v432
        %v437 = vpack.c.b16 %v435, %v434
        %vm438 = vsmask.f32 7424
        %v440 = vshrl.u32 %v436, 16
        %v442 = vshll.u32 %v436, 16
        %v444 = vrot.slane %v442, 1
        %v445 = vor.u32 %v440, %v444
        %v447 = vshll.u32 %v437, 16
        %v449 = vrot.slane %v447, 1
        %v450 = vsel %vm438, %v445, %v449
        %v451 = vshrl.u32 %v437, 16
        %v453 = vor.u32 %v451, %v449
        %v466 = vunpack.c.l.b16 %v416
        %v467 = vunpack.c.l.b16 %v417
        %v468 = vunpack.c.l.b16 %v418
        %v469 = vunpack.c.l.b16 %v419
        %v470 = vunpack.c.l.b16 %v420
        %v471 = vunpack.c.l.b16 %v421
        %v472 = vunpack.c.l.b16 %v422
        %v473 = vunpack.c.l.b16 %v423
        %v474 = vunpack.c.l.b16 %v424
        %v475 = vunpack.c.l.b16 %v425
        %v476 = vunpack.c.l.b16 %v426
        %v477 = vunpack.c.l.b16 %v427
        %v478 = vpack.c.b16 %v467, %v466
        %v479 = vpack.c.b16 %v469, %v468
        %v480 = vpack.c.b16 %v471, %v470
        %v481 = vpack.c.b16 %v473, %v472
        %v482 = vpack.c.b16 %v475, %v474
        %v483 = vpack.c.b16 %v477, %v476
        %vm490 = vcmask 785408
        %v492 = vsel %vm490, %v450, 0
        %v495 = vsel %vm490, %v453, 0
        %497 = vmatprep.subr.bf16.mxu0 0
        %498 = vmatpush1.bf16.msra.mxu0 %v478
        %499 = vmatprep.subr.bf16.mxu0 0
        %500 = vmatpush1.bf16.msra.mxu0 %v479
        %501 = vmatprep.subr.bf16.mxu0 0
        %502 = vmatpush1.bf16.msra.mxu0 %v480
        %503 = vmatprep.subr.bf16.mxu0 0
        %504 = vmatpush1.bf16.msra.mxu0 %v481
        %505 = vmatprep.subr.bf16.mxu0 0
        %506 = vmatpush1.bf16.msra.mxu0 %v482
        %507 = vmatprep.subr.bf16.mxu0 0
        %508 = vmatpush1.bf16.msra.mxu0 %v483
        %509 = vmatprep.subr.bf16.mxu0 0
        %510 = vmatpush1.bf16.msra.mxu0 0
        %511 = vmatprep.subr.bf16.mxu0 0
        %512 = vmatpush1.bf16.msra.mxu0 0
        %513 = vmatprep.subr.bf16.mxu0 0
        %514 = vmatpush1.bf16.msra.mxu0 0
        %515 = vmatprep.subr.bf16.mxu0 0
        %516 = vmatpush1.bf16.msra.mxu0 0
        %517 = vmatprep.subr.bf16.mxu0 0
        %518 = vmatpush1.bf16.msra.mxu0 0
        %519 = vmatprep.subr.bf16.mxu0 0
        %520 = vmatpush1.bf16.msra.mxu0 0
        %521 = vmatprep.subr.bf16.mxu0 0
        %522 = vmatpush1.bf16.msra.mxu0 0
        %523 = vmatprep.subr.bf16.mxu0 0
        %524 = vmatpush1.bf16.msra.mxu0 0
        %525 = vmatprep.subr.bf16.mxu0 0
        %526 = vmatpush1.bf16.msra.mxu0 0
        %527 = vmatprep.subr.bf16.mxu0 0
        %528 = vmatpush1.bf16.msra.mxu0 0
        %529 = vmatprep.mubr.bf16.mxu0 0
        %530 = vmatmul.mubr.bf16.gmra.mrb[0].mxu0 %v492
        %v531 = vpop.f32.mrb[0].mxu0
        %v532 = vadd.f32 0.0, %v531
        %v533 = vpop.f32.mrb[0].mxu0
        %v534 = vpop.f32.mrb[0].mxu0
        %v535 = vadd.f32 0.0, %v534
        %v536 = vpop.f32.mrb[0].mxu0
        %537 = vmatprep.mubr.bf16.mxu0 0
        %538 = vmatmul.mubr.bf16.gmra.mrb[0].mxu0 %v495
        %v539 = vpop.f32.mrb[0].mxu0
        %v540 = vadd.f32 0.0, %v539
        %v541 = vpop.f32.mrb[0].mxu0
        %v542 = vpop.f32.mrb[0].mxu0
        %v543 = vadd.f32 0.0, %v542
        %v544 = vpop.f32.mrb[0].mxu0
        %545 = vdwg.mxu0
        %v547 = vunpack.c.l.b16 %v388
        %v548 = vpack.c.b16 %v547, %v434
        %v561 = vunpack.c.l.b16 %v389
        %v562 = vunpack.c.l.b16 %v390
        %v563 = vunpack.c.l.b16 %v391
        %v564 = vunpack.c.l.b16 %v392
        %v565 = vunpack.c.l.b16 %v393
        %v566 = vunpack.c.l.b16 %v394
        %v567 = vunpack.c.l.b16 %v395
        %v568 = vunpack.c.l.b16 %v396
        %v569 = vunpack.c.l.b16 %v397
        %v570 = vunpack.c.l.b16 %v398
        %v571 = vunpack.c.l.b16 %v399
        %v572 = vunpack.c.l.b16 %v400
        %v573 = vpack.c.b16 %v562, %v561
        %v574 = vpack.c.b16 %v564, %v563
        %v575 = vpack.c.b16 %v566, %v565
        %v576 = vpack.c.b16 %v568, %v567
        %v577 = vpack.c.b16 %v570, %v569
        %v578 = vpack.c.b16 %v572, %v571
        %v585 = vsel %vm490, %v436, 0
        %v588 = vsel %vm490, %v548, 0
        %590 = vmatprep.subr.bf16.mxu0 0
        %591 = vmatpush1.bf16.msra.mxu0 %v573
        %592 = vmatprep.subr.bf16.mxu0 0
        %593 = vmatpush1.bf16.msra.mxu0 %v574
        %594 = vmatprep.subr.bf16.mxu0 0
        %595 = vmatpush1.bf16.msra.mxu0 %v575
        %596 = vmatprep.subr.bf16.mxu0 0
        %597 = vmatpush1.bf16.msra.mxu0 %v576
        %598 = vmatprep.subr.bf16.mxu0 0
        %599 = vmatpush1.bf16.msra.mxu0 %v577
        %600 = vmatprep.subr.bf16.mxu0 0
        %601 = vmatpush1.bf16.msra.mxu0 %v578
        %602 = vmatprep.subr.bf16.mxu0 0
        %603 = vmatpush1.bf16.msra.mxu0 0
        %604 = vmatprep.subr.bf16.mxu0 0
        %605 = vmatpush1.bf16.msra.mxu0 0
        %606 = vmatprep.subr.bf16.mxu0 0
        %607 = vmatpush1.bf16.msra.mxu0 0
        %608 = vmatprep.subr.bf16.mxu0 0
        %609 = vmatpush1.bf16.msra.mxu0 0
        %610 = vmatprep.subr.bf16.mxu0 0
        %611 = vmatpush1.bf16.msra.mxu0 0
        %612 = vmatprep.subr.bf16.mxu0 0
        %613 = vmatpush1.bf16.msra.mxu0 0
        %614 = vmatprep.subr.bf16.mxu0 0
        %615 = vmatpush1.bf16.msra.mxu0 0
        %616 = vmatprep.subr.bf16.mxu0 0
        %617 = vmatpush1.bf16.msra.mxu0 0
        %618 = vmatprep.subr.bf16.mxu0 0
        %619 = vmatpush1.bf16.msra.mxu0 0
        %620 = vmatprep.subr.bf16.mxu0 0
        %621 = vmatpush1.bf16.msra.mxu0 0
        %622 = vmatprep.mubr.bf16.mxu0 0
        %623 = vmatmul.mubr.bf16.gmra.mrb[0].mxu0 %v585
        %v624 = vpop.f32.mrb[0].mxu0
        %v625 = vadd.f32 %v532, %v624
        %v626 = vpop.f32.mrb[0].mxu0
        %v627 = vpop.f32.mrb[0].mxu0
        %v628 = vadd.f32 %v535, %v627
        %v629 = vpop.f32.mrb[0].mxu0
        %630 = vmatprep.mubr.bf16.mxu0 0
        %631 = vmatmul.mubr.bf16.gmra.mrb[0].mxu0 %v588
        %v632 = vpop.f32.mrb[0].mxu0
        %v633 = vadd.f32 %v540, %v632
        %v634 = vpop.f32.mrb[0].mxu0
        %v635 = vpop.f32.mrb[0].mxu0
        %v636 = vadd.f32 %v543, %v635
        %v637 = vpop.f32.mrb[0].mxu0
        %638 = vdwg.mxu0
        %s639 = scalar_lea.vmem %s1, 144
        %v640 = vld [vmem:[%s639] sm:$0xf]
        %v641 = vld [vmem:[%s639 + $0x4] sm:$0xf]
        %v642 = vld [vmem:[%s639 + $0x8] sm:$0xf]
        %v643 = vld [vmem:[%s639 + $0xc] sm:$0xf]
        %v644 = vld [vmem:[%s639 + $0x10] sm:$0xf]
        %v645 = vld [vmem:[%s639 + $0x14] sm:$0xf]
        %v646 = vld [vmem:[%s639 + $0x18] sm:$0xf]
        %v647 = vld [vmem:[%s639 + $0x1c] sm:$0xf]
        %v648 = vld [vmem:[%s639 + $0x20] sm:$0xf]
        %v649 = vld [vmem:[%s639 + $0x24] sm:$0xf]
        %v650 = vld [vmem:[%s639 + $0x28] sm:$0xf]
        %v651 = vld [vmem:[%s639 + $0x2c] sm:$0xf]
        %v664 = vunpack.c.l.b16 %v640
        %v665 = vunpack.c.l.b16 %v641
        %v666 = vunpack.c.l.b16 %v642
        %v667 = vunpack.c.l.b16 %v643
        %v668 = vunpack.c.l.b16 %v644
        %v669 = vunpack.c.l.b16 %v645
        %v670 = vunpack.c.l.b16 %v646
        %v671 = vunpack.c.l.b16 %v647
        %v672 = vunpack.c.l.b16 %v648
        %v673 = vunpack.c.l.b16 %v649
        %v674 = vunpack.c.l.b16 %v650
        %v675 = vunpack.c.l.b16 %v651
        %v676 = vpack.c.b16 %v665, %v664
        %v677 = vpack.c.b16 %v667, %v666
        %v678 = vpack.c.b16 %v669, %v668
        %v679 = vpack.c.b16 %v671, %v670
        %v680 = vpack.c.b16 %v673, %v672
        %v681 = vpack.c.b16 %v675, %v674
        %688 = vmatprep.subr.bf16.mxu0 0
        %689 = vmatpush1.bf16.msra.mxu0 %v676
        %690 = vmatprep.subr.bf16.mxu0 0
        %691 = vmatpush1.bf16.msra.mxu0 %v677
        %692 = vmatprep.subr.bf16.mxu0 0
        %693 = vmatpush1.bf16.msra.mxu0 %v678
        %694 = vmatprep.subr.bf16.mxu0 0
        %695 = vmatpush1.bf16.msra.mxu0 %v679
        %696 = vmatprep.subr.bf16.mxu0 0
        %697 = vmatpush1.bf16.msra.mxu0 %v680
        %698 = vmatprep.subr.bf16.mxu0 0
        %699 = vmatpush1.bf16.msra.mxu0 %v681
        %700 = vmatprep.subr.bf16.mxu0 0
        %701 = vmatpush1.bf16.msra.mxu0 0
        %702 = vmatprep.subr.bf16.mxu0 0
        %703 = vmatpush1.bf16.msra.mxu0 0
        %704 = vmatprep.subr.bf16.mxu0 0
        %705 = vmatpush1.bf16.msra.mxu0 0
        %706 = vmatprep.subr.bf16.mxu0 0
        %707 = vmatpush1.bf16.msra.mxu0 0
        %708 = vmatprep.subr.bf16.mxu0 0
        %709 = vmatpush1.bf16.msra.mxu0 0
        %710 = vmatprep.subr.bf16.mxu0 0
        %711 = vmatpush1.bf16.msra.mxu0 0
        %712 = vmatprep.subr.bf16.mxu0 0
        %713 = vmatpush1.bf16.msra.mxu0 0
        %714 = vmatprep.subr.bf16.mxu0 0
        %715 = vmatpush1.bf16.msra.mxu0 0
        %716 = vmatprep.subr.bf16.mxu0 0
        %717 = vmatpush1.bf16.msra.mxu0 0
        %718 = vmatprep.subr.bf16.mxu0 0
        %719 = vmatpush1.bf16.msra.mxu0 0
        %720 = vmatprep.mubr.bf16.mxu0 0
        %721 = vmatmul.mubr.bf16.gmra.mrb[0].mxu0 %v492
        %v722 = vpop.f32.mrb[0].mxu0
        %v723 = vadd.f32 0.0, %v722
        %v724 = vpop.f32.mrb[0].mxu0
        %v725 = vpop.f32.mrb[0].mxu0
        %v726 = vadd.f32 0.0, %v725
        %v727 = vpop.f32.mrb[0].mxu0
        %728 = vmatprep.mubr.bf16.mxu0 0
        %729 = vmatmul.mubr.bf16.gmra.mrb[0].mxu0 %v495
        %v730 = vpop.f32.mrb[0].mxu0
        %v731 = vadd.f32 0.0, %v730
        %v732 = vpop.f32.mrb[0].mxu0
        %v733 = vpop.f32.mrb[0].mxu0
        %v734 = vadd.f32 0.0, %v733
        %v735 = vpop.f32.mrb[0].mxu0
        %736 = vdwg.mxu0
        %v749 = vunpack.c.l.b16 %v402
        %v750 = vunpack.c.l.b16 %v403
        %v751 = vunpack.c.l.b16 %v404
        %v752 = vunpack.c.l.b16 %v405
        %v753 = vunpack.c.l.b16 %v406
        %v754 = vunpack.c.l.b16 %v407
        %v755 = vunpack.c.l.b16 %v408
        %v756 = vunpack.c.l.b16 %v409
        %v757 = vunpack.c.l.b16 %v410
        %v758 = vunpack.c.l.b16 %v411
        %v759 = vunpack.c.l.b16 %v412
        %v760 = vunpack.c.l.b16 %v413
        %v761 = vpack.c.b16 %v750, %v749
        %v762 = vpack.c.b16 %v752, %v751
        %v763 = vpack.c.b16 %v754, %v753
        %v764 = vpack.c.b16 %v756, %v755
        %v765 = vpack.c.b16 %v758, %v757
        %v766 = vpack.c.b16 %v760, %v759
        %773 = vmatprep.subr.bf16.mxu0 0
        %774 = vmatpush1.bf16.msra.mxu0 %v761
        %775 = vmatprep.subr.bf16.mxu0 0
        %776 = vmatpush1.bf16.msra.mxu0 %v762
        %777 = vmatprep.subr.bf16.mxu0 0
        %778 = vmatpush1.bf16.msra.mxu0 %v763
        %779 = vmatprep.subr.bf16.mxu0 0
        %780 = vmatpush1.bf16.msra.mxu0 %v764
        %781 = vmatprep.subr.bf16.mxu0 0
        %782 = vmatpush1.bf16.msra.mxu0 %v765
        %783 = vmatprep.subr.bf16.mxu0 0
        %784 = vmatpush1.bf16.msra.mxu0 %v766
        %785 = vmatprep.subr.bf16.mxu0 0
        %786 = vmatpush1.bf16.msra.mxu0 0
        %787 = vmatprep.subr.bf16.mxu0 0
        %788 = vmatpush1.bf16.msra.mxu0 0
        %789 = vmatprep.subr.bf16.mxu0 0
        %790 = vmatpush1.bf16.msra.mxu0 0
        %791 = vmatprep.subr.bf16.mxu0 0
        %792 = vmatpush1.bf16.msra.mxu0 0
        %793 = vmatprep.subr.bf16.mxu0 0
        %794 = vmatpush1.bf16.msra.mxu0 0
        %795 = vmatprep.subr.bf16.mxu0 0
        %796 = vmatpush1.bf16.msra.mxu0 0
        %797 = vmatprep.subr.bf16.mxu0 0
        %798 = vmatpush1.bf16.msra.mxu0 0
        %799 = vmatprep.subr.bf16.mxu0 0
        %800 = vmatpush1.bf16.msra.mxu0 0
        %801 = vmatprep.subr.bf16.mxu0 0
        %802 = vmatpush1.bf16.msra.mxu0 0
        %803 = vmatprep.subr.bf16.mxu0 0
        %804 = vmatpush1.bf16.msra.mxu0 0
        %805 = vmatprep.mubr.bf16.mxu0 0
        %806 = vmatmul.mubr.bf16.gmra.mrb[0].mxu0 %v585
        %v807 = vpop.f32.mrb[0].mxu0
        %v808 = vadd.f32 %v723, %v807
        %v809 = vpop.f32.mrb[0].mxu0
        %v810 = vpop.f32.mrb[0].mxu0
        %v811 = vadd.f32 %v726, %v810
        %v812 = vpop.f32.mrb[0].mxu0
        %813 = vmatprep.mubr.bf16.mxu0 0
        %814 = vmatmul.mubr.bf16.gmra.mrb[0].mxu0 %v588
        %v815 = vpop.f32.mrb[0].mxu0
        %v816 = vadd.f32 %v731, %v815
        %v817 = vpop.f32.mrb[0].mxu0
        %v818 = vpop.f32.mrb[0].mxu0
        %v819 = vadd.f32 %v734, %v818
        %v820 = vpop.f32.mrb[0].mxu0
        %821 = vdwg.mxu0
        %v822 = vld [vmem:[%s383] sm:$0xe]
        %s823 = scalar_lea.vmem %s1, 192
        %v824 = vld [vmem:[%s823] sm:$0xf]
        %v825 = vld [vmem:[%s823 + $0x4] sm:$0xf]
        %v826 = vld [vmem:[%s823 + $0x8] sm:$0xf]
        %v827 = vld [vmem:[%s823 + $0xc] sm:$0xf]
        %v828 = vld [vmem:[%s823 + $0x10] sm:$0xf]
        %v829 = vld [vmem:[%s823 + $0x14] sm:$0xf]
        %v830 = vld [vmem:[%s823 + $0x18] sm:$0xf]
        %v831 = vld [vmem:[%s823 + $0x1c] sm:$0xf]
        %v832 = vld [vmem:[%s823 + $0x20] sm:$0xf]
        %v833 = vld [vmem:[%s823 + $0x24] sm:$0xf]
        %v834 = vld [vmem:[%s823 + $0x28] sm:$0xf]
        %v835 = vld [vmem:[%s823 + $0x2c] sm:$0xf]
        %v837 = vunpack.c.l.b16 %v822
        %v838 = vpack.c.b16 %v433, %v837
        %vm839 = vcmask 1046528
        %v840 = vrot.slane %v838, 1
        %v841 = vrot.slane %v437, 1
        %v842 = vsel %vm839, %v840, %v841
        %v855 = vunpack.c.l.b16 %v824
        %v856 = vunpack.c.l.b16 %v825
        %v857 = vunpack.c.l.b16 %v826
        %v858 = vunpack.c.l.b16 %v827
        %v859 = vunpack.c.l.b16 %v828
        %v860 = vunpack.c.l.b16 %v829
        %v861 = vunpack.c.l.b16 %v830
        %v862 = vunpack.c.l.b16 %v831
        %v863 = vunpack.c.l.b16 %v832
        %v864 = vunpack.c.l.b16 %v833
        %v865 = vunpack.c.l.b16 %v834
        %v866 = vunpack.c.l.b16 %v835
        %v867 = vpack.c.b16 %v856, %v855
        %v868 = vpack.c.b16 %v858, %v857
        %v869 = vpack.c.b16 %v860, %v859
        %v870 = vpack.c.b16 %v862, %v861
        %v871 = vpack.c.b16 %v864, %v863
        %v872 = vpack.c.b16 %v866, %v865
        %v880 = vsel %vm490, %v842, 0
        %v883 = vsel %vm490, %v841, 0
        %885 = vmatprep.subr.bf16.mxu0 0
        %886 = vmatpush1.bf16.msra.mxu0 %v867
        %887 = vmatprep.subr.bf16.mxu0 0
        %888 = vmatpush1.bf16.msra.mxu0 %v868
        %889 = vmatprep.subr.bf16.mxu0 0
        %890 = vmatpush1.bf16.msra.mxu0 %v869
        %891 = vmatprep.subr.bf16.mxu0 0
        %892 = vmatpush1.bf16.msra.mxu0 %v870
        %893 = vmatprep.subr.bf16.mxu0 0
        %894 = vmatpush1.bf16.msra.mxu0 %v871
        %895 = vmatprep.subr.bf16.mxu0 0
        %896 = vmatpush1.bf16.msra.mxu0 %v872
        %897 = vmatprep.subr.bf16.mxu0 0
        %898 = vmatpush1.bf16.msra.mxu0 0
        %899 = vmatprep.subr.bf16.mxu0 0
        %900 = vmatpush1.bf16.msra.mxu0 0
        %901 = vmatprep.subr.bf16.mxu0 0
        %902 = vmatpush1.bf16.msra.mxu0 0
        %903 = vmatprep.subr.bf16.mxu0 0
        %904 = vmatpush1.bf16.msra.mxu0 0
        %905 = vmatprep.subr.bf16.mxu0 0
        %906 = vmatpush1.bf16.msra.mxu0 0
        %907 = vmatprep.subr.bf16.mxu0 0
        %908 = vmatpush1.bf16.msra.mxu0 0
        %909 = vmatprep.subr.bf16.mxu0 0
        %910 = vmatpush1.bf16.msra.mxu0 0
        %911 = vmatprep.subr.bf16.mxu0 0
        %912 = vmatpush1.bf16.msra.mxu0 0
        %913 = vmatprep.subr.bf16.mxu0 0
        %914 = vmatpush1.bf16.msra.mxu0 0
        %915 = vmatprep.subr.bf16.mxu0 0
        %916 = vmatpush1.bf16.msra.mxu0 0
        %917 = vmatprep.mubr.bf16.mxu0 0
        %918 = vmatmul.mubr.bf16.gmra.mrb[0].mxu0 %v880
        %v919 = vpop.f32.mrb[0].mxu0
        %v920 = vadd.f32 0.0, %v919
        %v921 = vpop.f32.mrb[0].mxu0
        %v922 = vpop.f32.mrb[0].mxu0
        %v923 = vadd.f32 0.0, %v922
        %v924 = vpop.f32.mrb[0].mxu0
        %925 = vmatprep.mubr.bf16.mxu0 0
        %926 = vmatmul.mubr.bf16.gmra.mrb[0].mxu0 %v883
        %v927 = vpop.f32.mrb[0].mxu0
        %v928 = vadd.f32 0.0, %v927
        %v929 = vpop.f32.mrb[0].mxu0
        %v930 = vpop.f32.mrb[0].mxu0
        %v931 = vadd.f32 0.0, %v930
        %v932 = vpop.f32.mrb[0].mxu0
        %933 = vdwg.mxu0
        %v934 = vadd.f32 %v625, %v920
        %v935 = vadd.f32 %v628, %v923
        %v936 = vadd.f32 %v633, %v928
        %v937 = vadd.f32 %v636, %v931
        %s938 = scalar_lea.vmem %s1, 240
        %v939 = vld [vmem:[%s938] sm:$0xf]
        %v940 = vld [vmem:[%s938 + $0x4] sm:$0xf]
        %v941 = vld [vmem:[%s938 + $0x8] sm:$0xf]
        %v942 = vld [vmem:[%s938 + $0xc] sm:$0xf]
        %v943 = vld [vmem:[%s938 + $0x10] sm:$0xf]
        %v944 = vld [vmem:[%s938 + $0x14] sm:$0xf]
        %v945 = vld [vmem:[%s938 + $0x18] sm:$0xf]
        %v946 = vld [vmem:[%s938 + $0x1c] sm:$0xf]
        %v947 = vld [vmem:[%s938 + $0x20] sm:$0xf]
        %v948 = vld [vmem:[%s938 + $0x24] sm:$0xf]
        %v949 = vld [vmem:[%s938 + $0x28] sm:$0xf]
        %v950 = vld [vmem:[%s938 + $0x2c] sm:$0xf]
        %v963 = vunpack.c.l.b16 %v939
        %v964 = vunpack.c.l.b16 %v940
        %v965 = vunpack.c.l.b16 %v941
        %v966 = vunpack.c.l.b16 %v942
        %v967 = vunpack.c.l.b16 %v943
        %v968 = vunpack.c.l.b16 %v944
        %v969 = vunpack.c.l.b16 %v945
        %v970 = vunpack.c.l.b16 %v946
        %v971 = vunpack.c.l.b16 %v947
        %v972 = vunpack.c.l.b16 %v948
        %v973 = vunpack.c.l.b16 %v949
        %v974 = vunpack.c.l.b16 %v950
        %v975 = vpack.c.b16 %v964, %v963
        %v976 = vpack.c.b16 %v966, %v965
        %v977 = vpack.c.b16 %v968, %v967
        %v978 = vpack.c.b16 %v970, %v969
        %v979 = vpack.c.b16 %v972, %v971
        %v980 = vpack.c.b16 %v974, %v973
        %987 = vmatprep.subr.bf16.mxu0 0
        %988 = vmatpush1.bf16.msra.mxu0 %v975
        %989 = vmatprep.subr.bf16.mxu0 0
        %990 = vmatpush1.bf16.msra.mxu0 %v976
        %991 = vmatprep.subr.bf16.mxu0 0
        %992 = vmatpush1.bf16.msra.mxu0 %v977
        %993 = vmatprep.subr.bf16.mxu0 0
        %994 = vmatpush1.bf16.msra.mxu0 %v978
        %995 = vmatprep.subr.bf16.mxu0 0
        %996 = vmatpush1.bf16.msra.mxu0 %v979
        %997 = vmatprep.subr.bf16.mxu0 0
        %998 = vmatpush1.bf16.msra.mxu0 %v980
        %999 = vmatprep.subr.bf16.mxu0 0
        %1000 = vmatpush1.bf16.msra.mxu0 0
        %1001 = vmatprep.subr.bf16.mxu0 0
        %1002 = vmatpush1.bf16.msra.mxu0 0
        %1003 = vmatprep.subr.bf16.mxu0 0
        %1004 = vmatpush1.bf16.msra.mxu0 0
        %1005 = vmatprep.subr.bf16.mxu0 0
        %1006 = vmatpush1.bf16.msra.mxu0 0
        %1007 = vmatprep.subr.bf16.mxu0 0
        %1008 = vmatpush1.bf16.msra.mxu0 0
        %1009 = vmatprep.subr.bf16.mxu0 0
        %1010 = vmatpush1.bf16.msra.mxu0 0
        %1011 = vmatprep.subr.bf16.mxu0 0
        %1012 = vmatpush1.bf16.msra.mxu0 0
        %1013 = vmatprep.subr.bf16.mxu0 0
        %1014 = vmatpush1.bf16.msra.mxu0 0
        %1015 = vmatprep.subr.bf16.mxu0 0
        %1016 = vmatpush1.bf16.msra.mxu0 0
        %1017 = vmatprep.subr.bf16.mxu0 0
        %1018 = vmatpush1.bf16.msra.mxu0 0
        %1019 = vmatprep.mubr.bf16.mxu0 0
        %1020 = vmatmul.mubr.bf16.gmra.mrb[0].mxu0 %v880
        %v1021 = vpop.f32.mrb[0].mxu0
        %v1022 = vadd.f32 0.0, %v1021
        %v1023 = vpop.f32.mrb[0].mxu0
        %v1024 = vpop.f32.mrb[0].mxu0
        %v1025 = vadd.f32 0.0, %v1024
        %v1026 = vpop.f32.mrb[0].mxu0
        %1027 = vmatprep.mubr.bf16.mxu0 0
        %1028 = vmatmul.mubr.bf16.gmra.mrb[0].mxu0 %v883
        %v1029 = vpop.f32.mrb[0].mxu0
        %v1030 = vadd.f32 0.0, %v1029
        %v1031 = vpop.f32.mrb[0].mxu0
        %v1032 = vpop.f32.mrb[0].mxu0
        %v1033 = vadd.f32 0.0, %v1032
        %v1034 = vpop.f32.mrb[0].mxu0
        %1035 = vdwg.mxu0
        %v1036 = vadd.f32 %v808, %v1022
        %v1037 = vadd.f32 %v811, %v1025
        %v1038 = vadd.f32 %v816, %v1030
        %v1039 = vadd.f32 %v819, %v1033
        %v1040 = vld [vmem:[%s383 + $0xc] sm:$0xf]
        %s1041 = scalar_lea.vmem %s1, 288
        %v1042 = vld [vmem:[%s1041] sm:$0xf]
        %v1043 = vld [vmem:[%s1041 + $0x4] sm:$0xf]
        %v1044 = vld [vmem:[%s1041 + $0x8] sm:$0xf]
        %v1045 = vld [vmem:[%s1041 + $0xc] sm:$0xf]
        %v1046 = vld [vmem:[%s1041 + $0x10] sm:$0xf]
        %v1047 = vld [vmem:[%s1041 + $0x14] sm:$0xf]
        %v1048 = vld [vmem:[%s1041 + $0x18] sm:$0xf]
        %v1049 = vld [vmem:[%s1041 + $0x1c] sm:$0xf]
        %v1050 = vld [vmem:[%s1041 + $0x20] sm:$0xf]
        %v1051 = vld [vmem:[%s1041 + $0x24] sm:$0xf]
        %v1052 = vld [vmem:[%s1041 + $0x28] sm:$0xf]
        %v1053 = vld [vmem:[%s1041 + $0x2c] sm:$0xf]
        %v1055 = vunpack.c.l.b16 %v1040
        %v1056 = vpack.c.b16 %v1055, %v434
        %vm1057 = vsmask.f32 6400
        %v1059 = vshrl.u32 %v838, 16
        %v1061 = vrot.slane %v1059, 1
        %v1062 = vshll.u32 %v838, 16
        %v1064 = vrot.slane %v1062, 2
        %v1065 = vor.u32 %v1061, %v1064
        %v1067 = vshrl.u32 %v1056, 16
        %v1069 = vrot.slane %v1067, 1
        %v1070 = vshll.u32 %v1056, 16
        %v1072 = vrot.slane %v1070, 2
        %v1073 = vor.u32 %v1069, %v1072
        %v1074 = vsel %vm1057, %v1065, %v1073
        %v1087 = vunpack.c.l.b16 %v1042
        %v1088 = vunpack.c.l.b16 %v1043
        %v1089 = vunpack.c.l.b16 %v1044
        %v1090 = vunpack.c.l.b16 %v1045
        %v1091 = vunpack.c.l.b16 %v1046
        %v1092 = vunpack.c.l.b16 %v1047
        %v1093 = vunpack.c.l.b16 %v1048
        %v1094 = vunpack.c.l.b16 %v1049
        %v1095 = vunpack.c.l.b16 %v1050
        %v1096 = vunpack.c.l.b16 %v1051
        %v1097 = vunpack.c.l.b16 %v1052
        %v1098 = vunpack.c.l.b16 %v1053
        %v1099 = vpack.c.b16 %v1088, %v1087
        %v1100 = vpack.c.b16 %v1090, %v1089
        %v1101 = vpack.c.b16 %v1092, %v1091
        %v1102 = vpack.c.b16 %v1094, %v1093
        %v1103 = vpack.c.b16 %v1096, %v1095
        %v1104 = vpack.c.b16 %v1098, %v1097
        %v1112 = vsel %vm490, %v1074, 0
        %v1115 = vsel %vm490, %v1073, 0
        %1117 = vmatprep.subr.bf16.mxu0 0
        %1118 = vmatpush1.bf16.msra.mxu0 %v1099
        %1119 = vmatprep.subr.bf16.mxu0 0
        %1120 = vmatpush1.bf16.msra.mxu0 %v1100
        %1121 = vmatprep.subr.bf16.mxu0 0
        %1122 = vmatpush1.bf16.msra.mxu0 %v1101
        %1123 = vmatprep.subr.bf16.mxu0 0
        %1124 = vmatpush1.bf16.msra.mxu0 %v1102
        %1125 = vmatprep.subr.bf16.mxu0 0
        %1126 = vmatpush1.bf16.msra.mxu0 %v1103
        %1127 = vmatprep.subr.bf16.mxu0 0
        %1128 = vmatpush1.bf16.msra.mxu0 %v1104
        %1129 = vmatprep.subr.bf16.mxu0 0
        %1130 = vmatpush1.bf16.msra.mxu0 0
        %1131 = vmatprep.subr.bf16.mxu0 0
        %1132 = vmatpush1.bf16.msra.mxu0 0
        %1133 = vmatprep.subr.bf16.mxu0 0
        %1134 = vmatpush1.bf16.msra.mxu0 0
        %1135 = vmatprep.subr.bf16.mxu0 0
        %1136 = vmatpush1.bf16.msra.mxu0 0
        %1137 = vmatprep.subr.bf16.mxu0 0
        %1138 = vmatpush1.bf16.msra.mxu0 0
        %1139 = vmatprep.subr.bf16.mxu0 0
        %1140 = vmatpush1.bf16.msra.mxu0 0
        %1141 = vmatprep.subr.bf16.mxu0 0
        %1142 = vmatpush1.bf16.msra.mxu0 0
        %1143 = vmatprep.subr.bf16.mxu0 0
        %1144 = vmatpush1.bf16.msra.mxu0 0
        %1145 = vmatprep.subr.bf16.mxu0 0
        %1146 = vmatpush1.bf16.msra.mxu0 0
        %1147 = vmatprep.subr.bf16.mxu0 0
        %1148 = vmatpush1.bf16.msra.mxu0 0
        %1149 = vmatprep.mubr.bf16.mxu0 0
        %1150 = vmatmul.mubr.bf16.gmra.mrb[0].mxu0 %v1112
        %v1151 = vpop.f32.mrb[0].mxu0
        %v1152 = vadd.f32 0.0, %v1151
        %v1153 = vpop.f32.mrb[0].mxu0
        %v1154 = vpop.f32.mrb[0].mxu0
        %v1155 = vadd.f32 0.0, %v1154
        %v1156 = vpop.f32.mrb[0].mxu0
        %1157 = vmatprep.mubr.bf16.mxu0 0
        %1158 = vmatmul.mubr.bf16.gmra.mrb[0].mxu0 %v1115
        %v1159 = vpop.f32.mrb[0].mxu0
        %v1160 = vadd.f32 0.0, %v1159
        %v1161 = vpop.f32.mrb[0].mxu0
        %v1162 = vpop.f32.mrb[0].mxu0
        %v1163 = vadd.f32 0.0, %v1162
        %v1164 = vpop.f32.mrb[0].mxu0
        %1165 = vdwg.mxu0
        %v1166 = vadd.f32 %v934, %v1152
        %v1167 = vadd.f32 %v935, %v1155
        %v1168 = vadd.f32 %v936, %v1160
        %v1169 = vadd.f32 %v937, %v1163
        %s1170 = scalar_lea.vmem %s1, 336
        %v1171 = vld [vmem:[%s1170] sm:$0xf]
        %v1172 = vld [vmem:[%s1170 + $0x4] sm:$0xf]
        %v1173 = vld [vmem:[%s1170 + $0x8] sm:$0xf]
        %v1174 = vld [vmem:[%s1170 + $0xc] sm:$0xf]
        %v1175 = vld [vmem:[%s1170 + $0x10] sm:$0xf]
        %v1176 = vld [vmem:[%s1170 + $0x14] sm:$0xf]
        %v1177 = vld [vmem:[%s1170 + $0x18] sm:$0xf]
        %v1178 = vld [vmem:[%s1170 + $0x1c] sm:$0xf]
        %v1179 = vld [vmem:[%s1170 + $0x20] sm:$0xf]
        %v1180 = vld [vmem:[%s1170 + $0x24] sm:$0xf]
        %v1181 = vld [vmem:[%s1170 + $0x28] sm:$0xf]
        %v1182 = vld [vmem:[%s1170 + $0x2c] sm:$0xf]
        %v1195 = vunpack.c.l.b16 %v1171
        %v1196 = vunpack.c.l.b16 %v1172
        %v1197 = vunpack.c.l.b16 %v1173
        %v1198 = vunpack.c.l.b16 %v1174
        %v1199 = vunpack.c.l.b16 %v1175
        %v1200 = vunpack.c.l.b16 %v1176
        %v1201 = vunpack.c.l.b16 %v1177
        %v1202 = vunpack.c.l.b16 %v1178
        %v1203 = vunpack.c.l.b16 %v1179
        %v1204 = vunpack.c.l.b16 %v1180
        %v1205 = vunpack.c.l.b16 %v1181
        %v1206 = vunpack.c.l.b16 %v1182
        %v1207 = vpack.c.b16 %v1196, %v1195
        %v1208 = vpack.c.b16 %v1198, %v1197
        %v1209 = vpack.c.b16 %v1200, %v1199
        %v1210 = vpack.c.b16 %v1202, %v1201
        %v1211 = vpack.c.b16 %v1204, %v1203
        %v1212 = vpack.c.b16 %v1206, %v1205
        %1219 = vmatprep.subr.bf16.mxu0 0
        %1220 = vmatpush1.bf16.msra.mxu0 %v1207
        %1221 = vmatprep.subr.bf16.mxu0 0
        %1222 = vmatpush1.bf16.msra.mxu0 %v1208
        %1223 = vmatprep.subr.bf16.mxu0 0
        %1224 = vmatpush1.bf16.msra.mxu0 %v1209
        %1225 = vmatprep.subr.bf16.mxu0 0
        %1226 = vmatpush1.bf16.msra.mxu0 %v1210
        %1227 = vmatprep.subr.bf16.mxu0 0
        %1228 = vmatpush1.bf16.msra.mxu0 %v1211
        %1229 = vmatprep.subr.bf16.mxu0 0
        %1230 = vmatpush1.bf16.msra.mxu0 %v1212
        %1231 = vmatprep.subr.bf16.mxu0 0
        %1232 = vmatpush1.bf16.msra.mxu0 0
        %1233 = vmatprep.subr.bf16.mxu0 0
        %1234 = vmatpush1.bf16.msra.mxu0 0
        %1235 = vmatprep.subr.bf16.mxu0 0
        %1236 = vmatpush1.bf16.msra.mxu0 0
        %1237 = vmatprep.subr.bf16.mxu0 0
        %1238 = vmatpush1.bf16.msra.mxu0 0
        %1239 = vmatprep.subr.bf16.mxu0 0
        %1240 = vmatpush1.bf16.msra.mxu0 0
        %1241 = vmatprep.subr.bf16.mxu0 0
        %1242 = vmatpush1.bf16.msra.mxu0 0
        %1243 = vmatprep.subr.bf16.mxu0 0
        %1244 = vmatpush1.bf16.msra.mxu0 0
        %1245 = vmatprep.subr.bf16.mxu0 0
        %1246 = vmatpush1.bf16.msra.mxu0 0
        %1247 = vmatprep.subr.bf16.mxu0 0
        %1248 = vmatpush1.bf16.msra.mxu0 0
        %1249 = vmatprep.subr.bf16.mxu0 0
        %1250 = vmatpush1.bf16.msra.mxu0 0
        %1251 = vmatprep.mubr.bf16.mxu0 0
        %1252 = vmatmul.mubr.bf16.gmra.mrb[0].mxu0 %v1112
        %v1253 = vpop.f32.mrb[0].mxu0
        %v1254 = vadd.f32 0.0, %v1253
        %v1255 = vpop.f32.mrb[0].mxu0
        %v1256 = vpop.f32.mrb[0].mxu0
        %v1257 = vadd.f32 0.0, %v1256
        %v1258 = vpop.f32.mrb[0].mxu0
        %1259 = vmatprep.mubr.bf16.mxu0 0
        %1260 = vmatmul.mubr.bf16.gmra.mrb[0].mxu0 %v1115
        %v1261 = vpop.f32.mrb[0].mxu0
        %v1262 = vadd.f32 0.0, %v1261
        %v1263 = vpop.f32.mrb[0].mxu0
        %v1264 = vpop.f32.mrb[0].mxu0
        %v1265 = vadd.f32 0.0, %v1264
        %v1266 = vpop.f32.mrb[0].mxu0
        %1267 = vdwg.mxu0
        %v1268 = vadd.f32 %v1036, %v1254
        %v1269 = vadd.f32 %v1037, %v1257
        %v1270 = vadd.f32 %v1038, %v1262
        %v1271 = vadd.f32 %v1039, %v1265
        %v1272 = vld [vmem:[%s383] sm:$0xc]
        %s1273 = scalar_lea.vmem %s1, 384
        %v1274 = vld [vmem:[%s1273] sm:$0xf]
        %v1275 = vld [vmem:[%s1273 + $0x4] sm:$0xf]
        %v1276 = vld [vmem:[%s1273 + $0x8] sm:$0xf]
        %v1277 = vld [vmem:[%s1273 + $0xc] sm:$0xf]
        %v1278 = vld [vmem:[%s1273 + $0x10] sm:$0xf]
        %v1279 = vld [vmem:[%s1273 + $0x14] sm:$0xf]
        %v1280 = vld [vmem:[%s1273 + $0x18] sm:$0xf]
        %v1281 = vld [vmem:[%s1273 + $0x1c] sm:$0xf]
        %v1282 = vld [vmem:[%s1273 + $0x20] sm:$0xf]
        %v1283 = vld [vmem:[%s1273 + $0x24] sm:$0xf]
        %v1284 = vld [vmem:[%s1273 + $0x28] sm:$0xf]
        %v1285 = vld [vmem:[%s1273 + $0x2c] sm:$0xf]
        %v1287 = vunpack.c.l.b16 %v1272
        %v1288 = vpack.c.b16 %v433, %v1287
        %vm1289 = vcmask 1045504
        %v1290 = vrot.slane %v1288, 2
        %v1291 = vrot.slane %v1056, 2
        %v1292 = vsel %vm1289, %v1290, %v1291
        %v1305 = vunpack.c.l.b16 %v1274
        %v1306 = vunpack.c.l.b16 %v1275
        %v1307 = vunpack.c.l.b16 %v1276
        %v1308 = vunpack.c.l.b16 %v1277
        %v1309 = vunpack.c.l.b16 %v1278
        %v1310 = vunpack.c.l.b16 %v1279
        %v1311 = vunpack.c.l.b16 %v1280
        %v1312 = vunpack.c.l.b16 %v1281
        %v1313 = vunpack.c.l.b16 %v1282
        %v1314 = vunpack.c.l.b16 %v1283
        %v1315 = vunpack.c.l.b16 %v1284
        %v1316 = vunpack.c.l.b16 %v1285
        %v1317 = vpack.c.b16 %v1306, %v1305
        %v1318 = vpack.c.b16 %v1308, %v1307
        %v1319 = vpack.c.b16 %v1310, %v1309
        %v1320 = vpack.c.b16 %v1312, %v1311
        %v1321 = vpack.c.b16 %v1314, %v1313
        %v1322 = vpack.c.b16 %v1316, %v1315
        %v1330 = vsel %vm490, %v1292, 0
        %v1333 = vsel %vm490, %v1291, 0
        %1335 = vmatprep.subr.bf16.mxu0 0
        %1336 = vmatpush1.bf16.msra.mxu0 %v1317
        %1337 = vmatprep.subr.bf16.mxu0 0
        %1338 = vmatpush1.bf16.msra.mxu0 %v1318
        %1339 = vmatprep.subr.bf16.mxu0 0
        %1340 = vmatpush1.bf16.msra.mxu0 %v1319
        %1341 = vmatprep.subr.bf16.mxu0 0
        %1342 = vmatpush1.bf16.msra.mxu0 %v1320
        %1343 = vmatprep.subr.bf16.mxu0 0
        %1344 = vmatpush1.bf16.msra.mxu0 %v1321
        %1345 = vmatprep.subr.bf16.mxu0 0
        %1346 = vmatpush1.bf16.msra.mxu0 %v1322
        %1347 = vmatprep.subr.bf16.mxu0 0
        %1348 = vmatpush1.bf16.msra.mxu0 0
        %1349 = vmatprep.subr.bf16.mxu0 0
        %1350 = vmatpush1.bf16.msra.mxu0 0
        %1351 = vmatprep.subr.bf16.mxu0 0
        %1352 = vmatpush1.bf16.msra.mxu0 0
        %1353 = vmatprep.subr.bf16.mxu0 0
        %1354 = vmatpush1.bf16.msra.mxu0 0
        %1355 = vmatprep.subr.bf16.mxu0 0
        %1356 = vmatpush1.bf16.msra.mxu0 0
        %1357 = vmatprep.subr.bf16.mxu0 0
        %1358 = vmatpush1.bf16.msra.mxu0 0
        %1359 = vmatprep.subr.bf16.mxu0 0
        %1360 = vmatpush1.bf16.msra.mxu0 0
        %1361 = vmatprep.subr.bf16.mxu0 0
        %1362 = vmatpush1.bf16.msra.mxu0 0
        %1363 = vmatprep.subr.bf16.mxu0 0
        %1364 = vmatpush1.bf16.msra.mxu0 0
        %1365 = vmatprep.subr.bf16.mxu0 0
        %1366 = vmatpush1.bf16.msra.mxu0 0
        %1367 = vmatprep.mubr.bf16.mxu0 0
        %1368 = vmatmul.mubr.bf16.gmra.mrb[0].mxu0 %v1330
        %v1369 = vpop.f32.mrb[0].mxu0
        %v1370 = vadd.f32 0.0, %v1369
        %v1371 = vpop.f32.mrb[0].mxu0
        %v1372 = vpop.f32.mrb[0].mxu0
        %v1373 = vadd.f32 0.0, %v1372
        %v1374 = vpop.f32.mrb[0].mxu0
        %1375 = vmatprep.mubr.bf16.mxu0 0
        %1376 = vmatmul.mubr.bf16.gmra.mrb[0].mxu0 %v1333
        %v1377 = vpop.f32.mrb[0].mxu0
        %v1378 = vadd.f32 0.0, %v1377
        %v1379 = vpop.f32.mrb[0].mxu0
        %v1380 = vpop.f32.mrb[0].mxu0
        %v1381 = vadd.f32 0.0, %v1380
        %v1382 = vpop.f32.mrb[0].mxu0
        %1383 = vdwg.mxu0
        %v1384 = vadd.f32 %v1166, %v1370
        %v1385 = vadd.f32 %v1167, %v1373
        %v1386 = vadd.f32 %v1168, %v1378
        %v1387 = vadd.f32 %v1169, %v1381
        %s1388 = scalar_lea.vmem %s1, 432
        %v1389 = vld [vmem:[%s1388] sm:$0xf]
        %v1390 = vld [vmem:[%s1388 + $0x4] sm:$0xf]
        %v1391 = vld [vmem:[%s1388 + $0x8] sm:$0xf]
        %v1392 = vld [vmem:[%s1388 + $0xc] sm:$0xf]
        %v1393 = vld [vmem:[%s1388 + $0x10] sm:$0xf]
        %v1394 = vld [vmem:[%s1388 + $0x14] sm:$0xf]
        %v1395 = vld [vmem:[%s1388 + $0x18] sm:$0xf]
        %v1396 = vld [vmem:[%s1388 + $0x1c] sm:$0xf]
        %v1397 = vld [vmem:[%s1388 + $0x20] sm:$0xf]
        %v1398 = vld [vmem:[%s1388 + $0x24] sm:$0xf]
        %v1399 = vld [vmem:[%s1388 + $0x28] sm:$0xf]
        %v1400 = vld [vmem:[%s1388 + $0x2c] sm:$0xf]
        %v1413 = vunpack.c.l.b16 %v1389
        %v1414 = vunpack.c.l.b16 %v1390
        %v1415 = vunpack.c.l.b16 %v1391
        %v1416 = vunpack.c.l.b16 %v1392
        %v1417 = vunpack.c.l.b16 %v1393
        %v1418 = vunpack.c.l.b16 %v1394
        %v1419 = vunpack.c.l.b16 %v1395
        %v1420 = vunpack.c.l.b16 %v1396
        %v1421 = vunpack.c.l.b16 %v1397
        %v1422 = vunpack.c.l.b16 %v1398
        %v1423 = vunpack.c.l.b16 %v1399
        %v1424 = vunpack.c.l.b16 %v1400
        %v1425 = vpack.c.b16 %v1414, %v1413
        %v1426 = vpack.c.b16 %v1416, %v1415
        %v1427 = vpack.c.b16 %v1418, %v1417
        %v1428 = vpack.c.b16 %v1420, %v1419
        %v1429 = vpack.c.b16 %v1422, %v1421
        %v1430 = vpack.c.b16 %v1424, %v1423
        %1437 = vmatprep.subr.bf16.mxu0 0
        %1438 = vmatpush1.bf16.msra.mxu0 %v1425
        %1439 = vmatprep.subr.bf16.mxu0 0
        %1440 = vmatpush1.bf16.msra.mxu0 %v1426
        %1441 = vmatprep.subr.bf16.mxu0 0
        %1442 = vmatpush1.bf16.msra.mxu0 %v1427
        %1443 = vmatprep.subr.bf16.mxu0 0
        %1444 = vmatpush1.bf16.msra.mxu0 %v1428
        %1445 = vmatprep.subr.bf16.mxu0 0
        %1446 = vmatpush1.bf16.msra.mxu0 %v1429
        %1447 = vmatprep.subr.bf16.mxu0 0
        %1448 = vmatpush1.bf16.msra.mxu0 %v1430
        %1449 = vmatprep.subr.bf16.mxu0 0
        %1450 = vmatpush1.bf16.msra.mxu0 0
        %1451 = vmatprep.subr.bf16.mxu0 0
        %1452 = vmatpush1.bf16.msra.mxu0 0
        %1453 = vmatprep.subr.bf16.mxu0 0
        %1454 = vmatpush1.bf16.msra.mxu0 0
        %1455 = vmatprep.subr.bf16.mxu0 0
        %1456 = vmatpush1.bf16.msra.mxu0 0
        %1457 = vmatprep.subr.bf16.mxu0 0
        %1458 = vmatpush1.bf16.msra.mxu0 0
        %1459 = vmatprep.subr.bf16.mxu0 0
        %1460 = vmatpush1.bf16.msra.mxu0 0
        %1461 = vmatprep.subr.bf16.mxu0 0
        %1462 = vmatpush1.bf16.msra.mxu0 0
        %1463 = vmatprep.subr.bf16.mxu0 0
        %1464 = vmatpush1.bf16.msra.mxu0 0
        %1465 = vmatprep.subr.bf16.mxu0 0
        %1466 = vmatpush1.bf16.msra.mxu0 0
        %1467 = vmatprep.subr.bf16.mxu0 0
        %1468 = vmatpush1.bf16.msra.mxu0 0
        %1469 = vmatprep.mubr.bf16.mxu0 0
        %1470 = vmatmul.mubr.bf16.gmra.mrb[0].mxu0 %v1330
        %v1471 = vpop.f32.mrb[0].mxu0
        %v1472 = vadd.f32 0.0, %v1471
        %v1473 = vpop.f32.mrb[0].mxu0
        %v1474 = vpop.f32.mrb[0].mxu0
        %v1475 = vadd.f32 0.0, %v1474
        %v1476 = vpop.f32.mrb[0].mxu0
        %1477 = vmatprep.mubr.bf16.mxu0 0
        %1478 = vmatmul.mubr.bf16.gmra.mrb[0].mxu0 %v1333
        %v1479 = vpop.f32.mrb[0].mxu0
        %v1480 = vadd.f32 0.0, %v1479
        %v1481 = vpop.f32.mrb[0].mxu0
        %v1482 = vpop.f32.mrb[0].mxu0
        %v1483 = vadd.f32 0.0, %v1482
        %v1484 = vpop.f32.mrb[0].mxu0
        %1485 = vdwg.mxu0
        %v1486 = vadd.f32 %v1268, %v1472
        %v1487 = vadd.f32 %v1269, %v1475
        %v1488 = vadd.f32 %v1270, %v1480
        %v1489 = vadd.f32 %v1271, %v1483
        %v1490 = vmax.f32 %v1384, %v1486
        %v1491 = vmax.f32 %v1385, %v1487
        %v1492 = vmax.f32 %v1386, %v1488
        %v1493 = vmax.f32 %v1387, %v1489
        %v1494 = vld [vmem:[%s2] sm:$0x1]
        %v1496 = vrot.slane %v1490, 1
        %v1498 = vmax.f32 %v1490, %v1496
        %v1499 = vadd.f32 %v1498, %v1494
        %v1500 = vmax.f32 %v1499, 0.0
        %vm1501 = vcmask 679936
        %1502 = vst.msk [vmem:[#allocation2] sm:$0x1] %vm1501, %v1500
        %v1504 = vlaneseq
        %v1505 = vshrl.u32 %v1504, 7
        %v1506 = vsub.s32 0, %v1505
        %v1507 = vrot.slane %v1494, %v1506
        %v1509 = vadd.f32 %v1498, %v1507
        %v1510 = vmax.f32 %v1509, 0.0
        %vm1511 = vcmask 681986
        %1512 = vst.msk [vmem:[#allocation2 - $0x1] sm:$0x4] %vm1511, %v1510
        %vm1513 = vcmask 684036
        %1514 = vst.msk [vmem:[#allocation2 - $0x2] sm:$0x10] %vm1513, %v1510
        %vm1515 = vcmask 686086
        %1516 = vst.msk [vmem:[#allocation2 - $0x3] sm:$0x40] %vm1515, %v1510
        %v1518 = vrot.slane %v1491, 1
        %v1520 = vmax.f32 %v1491, %v1518
        %v1521 = vadd.f32 %v1520, %v1494
        %v1522 = vmax.f32 %v1521, 0.0
        %1523 = vst.msk [vmem:[#allocation2 + $0x4] sm:$0x1] %vm1501, %v1522
        %v1524 = vadd.f32 %v1520, %v1507
        %v1525 = vmax.f32 %v1524, 0.0
        %1526 = vst.msk [vmem:[#allocation2 + $0x3] sm:$0x4] %vm1511, %v1525
        %1527 = vst.msk [vmem:[#allocation2 + $0x2] sm:$0x10] %vm1513, %v1525
        %1528 = vst.msk [vmem:[#allocation2 + $0x1] sm:$0x40] %vm1515, %v1525
        %v1530 = vrot.slane %v1492, 1
        %v1532 = vmax.f32 %v1492, %v1530
        %v1533 = vadd.f32 %v1532, %v1494
        %v1534 = vmax.f32 %v1533, 0.0
        %1535 = vst.msk [vmem:[#allocation2 + $0x8] sm:$0x1] %vm1501, %v1534
        %v1536 = vadd.f32 %v1532, %v1507
        %v1537 = vmax.f32 %v1536, 0.0
        %1538 = vst.msk [vmem:[#allocation2 + $0x7] sm:$0x4] %vm1511, %v1537
        %1539 = vst.msk [vmem:[#allocation2 + $0x6] sm:$0x10] %vm1513, %v1537
        %1540 = vst.msk [vmem:[#allocation2 + $0x5] sm:$0x40] %vm1515, %v1537
        %v1542 = vrot.slane %v1493, 1
        %v1544 = vmax.f32 %v1493, %v1542
        %v1545 = vadd.f32 %v1544, %v1494
        %v1546 = vmax.f32 %v1545, 0.0
        %1547 = vst.msk [vmem:[#allocation2 + $0xc] sm:$0x1] %vm1501, %v1546
        %v1548 = vadd.f32 %v1544, %v1507
        %v1549 = vmax.f32 %v1548, 0.0
        %1550 = vst.msk [vmem:[#allocation2 + $0xb] sm:$0x4] %vm1511, %v1549
        %v1551 = vld [vmem:[#allocation2] sm:$0xff]
        %v1552 = vld [vmem:[#allocation2 + $0x8] sm:$0x3]
        %v1553 = vpack.c.bf16 %v1552, %v1551
        %v1554 = vld [vmem:[%s3] sm:$0xf]
        %v1555 = vld [vmem:[%s3 + $0x4] sm:$0xf]
        %v1556 = vld [vmem:[%s3 + $0x8] sm:$0xf]
        %v1557 = vld [vmem:[%s3 + $0xc] sm:$0xf]
        %v1558 = vld [vmem:[%s3 + $0x10] sm:$0xf]
        %v1559 = vld [vmem:[%s3 + $0x14] sm:$0xf]
        %v1560 = vld [vmem:[%s3 + $0x18] sm:$0xf]
        %v1561 = vld [vmem:[%s3 + $0x1c] sm:$0xf]
        %v1562 = vld [vmem:[%s3 + $0x20] sm:$0xf]
        %v1563 = vld [vmem:[%s3 + $0x24] sm:$0xf]
        %v1564 = vld [vmem:[%s3 + $0x28] sm:$0x3]
        %s1565 = scalar_lea.vmem %s3, 44
        %v1566 = vld [vmem:[%s1565] sm:$0xf]
        %v1567 = vld [vmem:[%s1565 + $0x4] sm:$0xf]
        %v1568 = vld [vmem:[%s1565 + $0x8] sm:$0xf]
        %v1569 = vld [vmem:[%s1565 + $0xc] sm:$0xf]
        %v1570 = vld [vmem:[%s1565 + $0x10] sm:$0xf]
        %v1571 = vld [vmem:[%s1565 + $0x14] sm:$0xf]
        %v1572 = vld [vmem:[%s1565 + $0x18] sm:$0xf]
        %v1573 = vld [vmem:[%s1565 + $0x1c] sm:$0xf]
        %v1574 = vld [vmem:[%s1565 + $0x20] sm:$0xf]
        %v1575 = vld [vmem:[%s1565 + $0x24] sm:$0xf]
        %v1576 = vld [vmem:[%s1565 + $0x28] sm:$0x3]
        %v1577 = vld [vmem:[#allocation2 + $0x1] sm:$0xff]
        %v1578 = vld [vmem:[#allocation2 + $0x9] sm:$0x3]
        %v1579 = vpack.c.bf16 %v1578, %v1577
        %s1580 = scalar_lea.vmem %s3, 88
        %v1581 = vld [vmem:[%s1580] sm:$0xf]
        %v1582 = vld [vmem:[%s1580 + $0x4] sm:$0xf]
        %v1583 = vld [vmem:[%s1580 + $0x8] sm:$0xf]
        %v1584 = vld [vmem:[%s1580 + $0xc] sm:$0xf]
        %v1585 = vld [vmem:[%s1580 + $0x10] sm:$0xf]
        %v1586 = vld [vmem:[%s1580 + $0x14] sm:$0xf]
        %v1587 = vld [vmem:[%s1580 + $0x18] sm:$0xf]
        %v1588 = vld [vmem:[%s1580 + $0x1c] sm:$0xf]
        %v1589 = vld [vmem:[%s1580 + $0x20] sm:$0xf]
        %v1590 = vld [vmem:[%s1580 + $0x24] sm:$0xf]
        %v1591 = vld [vmem:[%s1580 + $0x28] sm:$0x3]
        %v1603 = vunpack.c.l.b16 %v1581
        %v1604 = vunpack.c.l.b16 %v1582
        %v1605 = vunpack.c.l.b16 %v1583
        %v1606 = vunpack.c.l.b16 %v1584
        %v1607 = vunpack.c.l.b16 %v1585
        %v1608 = vunpack.c.l.b16 %v1586
        %v1609 = vunpack.c.l.b16 %v1587
        %v1610 = vunpack.c.l.b16 %v1588
        %v1611 = vunpack.c.l.b16 %v1589
        %v1612 = vunpack.c.l.b16 %v1590
        %v1613 = vunpack.c.l.b16 %v1591
        %v1614 = vpack.c.b16 %v1604, %v1603
        %v1615 = vpack.c.b16 %v1606, %v1605
        %v1616 = vpack.c.b16 %v1608, %v1607
        %v1617 = vpack.c.b16 %v1610, %v1609
        %v1618 = vpack.c.b16 %v1612, %v1611
        %v1619 = vpack.c.b16 %v1613, %v1613
        %vm1625 = vcmask 687104
        %v1627 = vsel %vm1625, %v1579, 0
        %vm1629 = vcmask 1041408
        %v1631 = vsel %vm1629, %v1619, 0
        %1633 = vmatprep.subr.bf16.mxu0 0
        %1634 = vmatpush1.bf16.msra.mxu0 %v1614
        %1635 = vmatprep.subr.bf16.mxu0 0
        %1636 = vmatpush1.bf16.msra.mxu0 %v1615
        %1637 = vmatprep.subr.bf16.mxu0 0
        %1638 = vmatpush1.bf16.msra.mxu0 %v1616
        %1639 = vmatprep.subr.bf16.mxu0 0
        %1640 = vmatpush1.bf16.msra.mxu0 %v1617
        %1641 = vmatprep.subr.bf16.mxu0 0
        %1642 = vmatpush1.bf16.msra.mxu0 %v1618
        %1643 = vmatprep.subr.bf16.mxu0 0
        %1644 = vmatpush1.bf16.msra.mxu0 %v1631
        %1645 = vmatprep.subr.bf16.mxu0 0
        %1646 = vmatpush1.bf16.msra.mxu0 0
        %1647 = vmatprep.subr.bf16.mxu0 0
        %1648 = vmatpush1.bf16.msra.mxu0 0
        %1649 = vmatprep.subr.bf16.mxu0 0
        %1650 = vmatpush1.bf16.msra.mxu0 0
        %1651 = vmatprep.subr.bf16.mxu0 0
        %1652 = vmatpush1.bf16.msra.mxu0 0
        %1653 = vmatprep.subr.bf16.mxu0 0
        %1654 = vmatpush1.bf16.msra.mxu0 0
        %1655 = vmatprep.subr.bf16.mxu0 0
        %1656 = vmatpush1.bf16.msra.mxu0 0
        %1657 = vmatprep.subr.bf16.mxu0 0
        %1658 = vmatpush1.bf16.msra.mxu0 0
        %1659 = vmatprep.subr.bf16.mxu0 0
        %1660 = vmatpush1.bf16.msra.mxu0 0
        %1661 = vmatprep.subr.bf16.mxu0 0
        %1662 = vmatpush1.bf16.msra.mxu0 0
        %1663 = vmatprep.subr.bf16.mxu0 0
        %1664 = vmatpush1.bf16.msra.mxu0 0
        %1665 = vmatprep.mubr.bf16.mxu0 0
        %1666 = vmatmul.mubr.bf16.gmra.mrb[0].mxu0 %v1627
        %v1667 = vpop.f32.mrb[0].mxu0
        %v1668 = vadd.f32 0.0, %v1667
        %v1669 = vpop.f32.mrb[0].mxu0
        %v1670 = vpop.f32.mrb[0].mxu0
        %v1671 = vadd.f32 0.0, %v1670
        %v1672 = vpop.f32.mrb[0].mxu0
        %1673 = vdwg.mxu0
        %v1685 = vunpack.c.l.b16 %v1554
        %v1686 = vunpack.c.l.b16 %v1555
        %v1687 = vunpack.c.l.b16 %v1556
        %v1688 = vunpack.c.l.b16 %v1557
        %v1689 = vunpack.c.l.b16 %v1558
        %v1690 = vunpack.c.l.b16 %v1559
        %v1691 = vunpack.c.l.b16 %v1560
        %v1692 = vunpack.c.l.b16 %v1561
        %v1693 = vunpack.c.l.b16 %v1562
        %v1694 = vunpack.c.l.b16 %v1563
        %v1695 = vunpack.c.l.b16 %v1564
        %v1696 = vpack.c.b16 %v1686, %v1685
        %v1697 = vpack.c.b16 %v1688, %v1687
        %v1698 = vpack.c.b16 %v1690, %v1689
        %v1699 = vpack.c.b16 %v1692, %v1691
        %v1700 = vpack.c.b16 %v1694, %v1693
        %v1701 = vpack.c.b16 %v1695, %v1695
        %v1708 = vsel %vm1625, %v1553, 0
        %v1711 = vsel %vm1629, %v1701, 0
        %1713 = vmatprep.subr.bf16.mxu0 0
        %1714 = vmatpush1.bf16.msra.mxu0 %v1696
        %1715 = vmatprep.subr.bf16.mxu0 0
        %1716 = vmatpush1.bf16.msra.mxu0 %v1697
        %1717 = vmatprep.subr.bf16.mxu0 0
        %1718 = vmatpush1.bf16.msra.mxu0 %v1698
        %1719 = vmatprep.subr.bf16.mxu0 0
        %1720 = vmatpush1.bf16.msra.mxu0 %v1699
        %1721 = vmatprep.subr.bf16.mxu0 0
        %1722 = vmatpush1.bf16.msra.mxu0 %v1700
        %1723 = vmatprep.subr.bf16.mxu0 0
        %1724 = vmatpush1.bf16.msra.mxu0 %v1711
        %1725 = vmatprep.subr.bf16.mxu0 0
        %1726 = vmatpush1.bf16.msra.mxu0 0
        %1727 = vmatprep.subr.bf16.mxu0 0
        %1728 = vmatpush1.bf16.msra.mxu0 0
        %1729 = vmatprep.subr.bf16.mxu0 0
        %1730 = vmatpush1.bf16.msra.mxu0 0
        %1731 = vmatprep.subr.bf16.mxu0 0
        %1732 = vmatpush1.bf16.msra.mxu0 0
        %1733 = vmatprep.subr.bf16.mxu0 0
        %1734 = vmatpush1.bf16.msra.mxu0 0
        %1735 = vmatprep.subr.bf16.mxu0 0
        %1736 = vmatpush1.bf16.msra.mxu0 0
        %1737 = vmatprep.subr.bf16.mxu0 0
        %1738 = vmatpush1.bf16.msra.mxu0 0
        %1739 = vmatprep.subr.bf16.mxu0 0
        %1740 = vmatpush1.bf16.msra.mxu0 0
        %1741 = vmatprep.subr.bf16.mxu0 0
        %1742 = vmatpush1.bf16.msra.mxu0 0
        %1743 = vmatprep.subr.bf16.mxu0 0
        %1744 = vmatpush1.bf16.msra.mxu0 0
        %1745 = vmatprep.mubr.bf16.mxu0 0
        %1746 = vmatmul.mubr.bf16.gmra.mrb[0].mxu0 %v1708
        %v1747 = vpop.f32.mrb[0].mxu0
        %v1748 = vadd.f32 %v1668, %v1747
        %v1749 = vpop.f32.mrb[0].mxu0
        %v1750 = vpop.f32.mrb[0].mxu0
        %v1751 = vadd.f32 %v1671, %v1750
        %v1752 = vpop.f32.mrb[0].mxu0
        %1753 = vdwg.mxu0
        %s1754 = scalar_lea.vmem %s3, 132
        %v1755 = vld [vmem:[%s1754] sm:$0xf]
        %v1756 = vld [vmem:[%s1754 + $0x4] sm:$0xf]
        %v1757 = vld [vmem:[%s1754 + $0x8] sm:$0xf]
        %v1758 = vld [vmem:[%s1754 + $0xc] sm:$0xf]
        %v1759 = vld [vmem:[%s1754 + $0x10] sm:$0xf]
        %v1760 = vld [vmem:[%s1754 + $0x14] sm:$0xf]
        %v1761 = vld [vmem:[%s1754 + $0x18] sm:$0xf]
        %v1762 = vld [vmem:[%s1754 + $0x1c] sm:$0xf]
        %v1763 = vld [vmem:[%s1754 + $0x20] sm:$0xf]
        %v1764 = vld [vmem:[%s1754 + $0x24] sm:$0xf]
        %v1765 = vld [vmem:[%s1754 + $0x28] sm:$0x3]
        %v1777 = vunpack.c.l.b16 %v1755
        %v1778 = vunpack.c.l.b16 %v1756
        %v1779 = vunpack.c.l.b16 %v1757
        %v1780 = vunpack.c.l.b16 %v1758
        %v1781 = vunpack.c.l.b16 %v1759
        %v1782 = vunpack.c.l.b16 %v1760
        %v1783 = vunpack.c.l.b16 %v1761
        %v1784 = vunpack.c.l.b16 %v1762
        %v1785 = vunpack.c.l.b16 %v1763
        %v1786 = vunpack.c.l.b16 %v1764
        %v1787 = vunpack.c.l.b16 %v1765
        %v1788 = vpack.c.b16 %v1778, %v1777
        %v1789 = vpack.c.b16 %v1780, %v1779
        %v1790 = vpack.c.b16 %v1782, %v1781
        %v1791 = vpack.c.b16 %v1784, %v1783
        %v1792 = vpack.c.b16 %v1786, %v1785
        %v1793 = vpack.c.b16 %v1787, %v1787
        %v1800 = vsel %vm1629, %v1793, 0
        %1802 = vmatprep.subr.bf16.mxu0 0
        %1803 = vmatpush1.bf16.msra.mxu0 %v1788
        %1804 = vmatprep.subr.bf16.mxu0 0
        %1805 = vmatpush1.bf16.msra.mxu0 %v1789
        %1806 = vmatprep.subr.bf16.mxu0 0
        %1807 = vmatpush1.bf16.msra.mxu0 %v1790
        %1808 = vmatprep.subr.bf16.mxu0 0
        %1809 = vmatpush1.bf16.msra.mxu0 %v1791
        %1810 = vmatprep.subr.bf16.mxu0 0
        %1811 = vmatpush1.bf16.msra.mxu0 %v1792
        %1812 = vmatprep.subr.bf16.mxu0 0
        %1813 = vmatpush1.bf16.msra.mxu0 %v1800
        %1814 = vmatprep.subr.bf16.mxu0 0
        %1815 = vmatpush1.bf16.msra.mxu0 0
        %1816 = vmatprep.subr.bf16.mxu0 0
        %1817 = vmatpush1.bf16.msra.mxu0 0
        %1818 = vmatprep.subr.bf16.mxu0 0
        %1819 = vmatpush1.bf16.msra.mxu0 0
        %1820 = vmatprep.subr.bf16.mxu0 0
        %1821 = vmatpush1.bf16.msra.mxu0 0
        %1822 = vmatprep.subr.bf16.mxu0 0
        %1823 = vmatpush1.bf16.msra.mxu0 0
        %1824 = vmatprep.subr.bf16.mxu0 0
        %1825 = vmatpush1.bf16.msra.mxu0 0
        %1826 = vmatprep.subr.bf16.mxu0 0
        %1827 = vmatpush1.bf16.msra.mxu0 0
        %1828 = vmatprep.subr.bf16.mxu0 0
        %1829 = vmatpush1.bf16.msra.mxu0 0
        %1830 = vmatprep.subr.bf16.mxu0 0
        %1831 = vmatpush1.bf16.msra.mxu0 0
        %1832 = vmatprep.subr.bf16.mxu0 0
        %1833 = vmatpush1.bf16.msra.mxu0 0
        %1834 = vmatprep.mubr.bf16.mxu0 0
        %1835 = vmatmul.mubr.bf16.gmra.mrb[0].mxu0 %v1627
        %v1836 = vpop.f32.mrb[0].mxu0
        %v1837 = vadd.f32 0.0, %v1836
        %v1838 = vpop.f32.mrb[0].mxu0
        %v1839 = vpop.f32.mrb[0].mxu0
        %v1840 = vadd.f32 0.0, %v1839
        %v1841 = vpop.f32.mrb[0].mxu0
        %1842 = vdwg.mxu0
        %v1854 = vunpack.c.l.b16 %v1566
        %v1855 = vunpack.c.l.b16 %v1567
        %v1856 = vunpack.c.l.b16 %v1568
        %v1857 = vunpack.c.l.b16 %v1569
        %v1858 = vunpack.c.l.b16 %v1570
        %v1859 = vunpack.c.l.b16 %v1571
        %v1860 = vunpack.c.l.b16 %v1572
        %v1861 = vunpack.c.l.b16 %v1573
        %v1862 = vunpack.c.l.b16 %v1574
        %v1863 = vunpack.c.l.b16 %v1575
        %v1864 = vunpack.c.l.b16 %v1576
        %v1865 = vpack.c.b16 %v1855, %v1854
        %v1866 = vpack.c.b16 %v1857, %v1856
        %v1867 = vpack.c.b16 %v1859, %v1858
        %v1868 = vpack.c.b16 %v1861, %v1860
        %v1869 = vpack.c.b16 %v1863, %v1862
        %v1870 = vpack.c.b16 %v1864, %v1864
        %v1877 = vsel %vm1629, %v1870, 0
        %1879 = vmatprep.subr.bf16.mxu0 0
        %1880 = vmatpush1.bf16.msra.mxu0 %v1865
        %1881 = vmatprep.subr.bf16.mxu0 0
        %1882 = vmatpush1.bf16.msra.mxu0 %v1866
        %1883 = vmatprep.subr.bf16.mxu0 0
        %1884 = vmatpush1.bf16.msra.mxu0 %v1867
        %1885 = vmatprep.subr.bf16.mxu0 0
        %1886 = vmatpush1.bf16.msra.mxu0 %v1868
        %1887 = vmatprep.subr.bf16.mxu0 0
        %1888 = vmatpush1.bf16.msra.mxu0 %v1869
        %1889 = vmatprep.subr.bf16.mxu0 0
        %1890 = vmatpush1.bf16.msra.mxu0 %v1877
        %1891 = vmatprep.subr.bf16.mxu0 0
        %1892 = vmatpush1.bf16.msra.mxu0 0
        %1893 = vmatprep.subr.bf16.mxu0 0
        %1894 = vmatpush1.bf16.msra.mxu0 0
        %1895 = vmatprep.subr.bf16.mxu0 0
        %1896 = vmatpush1.bf16.msra.mxu0 0
        %1897 = vmatprep.subr.bf16.mxu0 0
        %1898 = vmatpush1.bf16.msra.mxu0 0
        %1899 = vmatprep.subr.bf16.mxu0 0
        %1900 = vmatpush1.bf16.msra.mxu0 0
        %1901 = vmatprep.subr.bf16.mxu0 0
        %1902 = vmatpush1.bf16.msra.mxu0 0
        %1903 = vmatprep.subr.bf16.mxu0 0
        %1904 = vmatpush1.bf16.msra.mxu0 0
        %1905 = vmatprep.subr.bf16.mxu0 0
        %1906 = vmatpush1.bf16.msra.mxu0 0
        %1907 = vmatprep.subr.bf16.mxu0 0
        %1908 = vmatpush1.bf16.msra.mxu0 0
        %1909 = vmatprep.subr.bf16.mxu0 0
        %1910 = vmatpush1.bf16.msra.mxu0 0
        %1911 = vmatprep.mubr.bf16.mxu0 0
        %1912 = vmatmul.mubr.bf16.gmra.mrb[0].mxu0 %v1708
        %v1913 = vpop.f32.mrb[0].mxu0
        %v1914 = vadd.f32 %v1837, %v1913
        %v1915 = vpop.f32.mrb[0].mxu0
        %v1916 = vpop.f32.mrb[0].mxu0
        %v1917 = vadd.f32 %v1840, %v1916
        %v1918 = vpop.f32.mrb[0].mxu0
        %1919 = vdwg.mxu0
        %v1920 = vld [vmem:[#allocation2 + $0x2] sm:$0xff]
        %v1921 = vld [vmem:[#allocation2 + $0xa] sm:$0x3]
        %v1922 = vpack.c.bf16 %v1921, %v1920
        %s1923 = scalar_lea.vmem %s3, 176
        %v1924 = vld [vmem:[%s1923] sm:$0xf]
        %v1925 = vld [vmem:[%s1923 + $0x4] sm:$0xf]
        %v1926 = vld [vmem:[%s1923 + $0x8] sm:$0xf]
        %v1927 = vld [vmem:[%s1923 + $0xc] sm:$0xf]
        %v1928 = vld [vmem:[%s1923 + $0x10] sm:$0xf]
        %v1929 = vld [vmem:[%s1923 + $0x14] sm:$0xf]
        %v1930 = vld [vmem:[%s1923 + $0x18] sm:$0xf]
        %v1931 = vld [vmem:[%s1923 + $0x1c] sm:$0xf]
        %v1932 = vld [vmem:[%s1923 + $0x20] sm:$0xf]
        %v1933 = vld [vmem:[%s1923 + $0x24] sm:$0xf]
        %v1934 = vld [vmem:[%s1923 + $0x28] sm:$0x3]
        %v1946 = vunpack.c.l.b16 %v1924
        %v1947 = vunpack.c.l.b16 %v1925
        %v1948 = vunpack.c.l.b16 %v1926
        %v1949 = vunpack.c.l.b16 %v1927
        %v1950 = vunpack.c.l.b16 %v1928
        %v1951 = vunpack.c.l.b16 %v1929
        %v1952 = vunpack.c.l.b16 %v1930
        %v1953 = vunpack.c.l.b16 %v1931
        %v1954 = vunpack.c.l.b16 %v1932
        %v1955 = vunpack.c.l.b16 %v1933
        %v1956 = vunpack.c.l.b16 %v1934
        %v1957 = vpack.c.b16 %v1947, %v1946
        %v1958 = vpack.c.b16 %v1949, %v1948
        %v1959 = vpack.c.b16 %v1951, %v1950
        %v1960 = vpack.c.b16 %v1953, %v1952
        %v1961 = vpack.c.b16 %v1955, %v1954
        %v1962 = vpack.c.b16 %v1956, %v1956
        %v1969 = vsel %vm1625, %v1922, 0
        %v1972 = vsel %vm1629, %v1962, 0
        %1974 = vmatprep.subr.bf16.mxu0 0
        %1975 = vmatpush1.bf16.msra.mxu0 %v1957
        %1976 = vmatprep.subr.bf16.mxu0 0
        %1977 = vmatpush1.bf16.msra.mxu0 %v1958
        %1978 = vmatprep.subr.bf16.mxu0 0
        %1979 = vmatpush1.bf16.msra.mxu0 %v1959
        %1980 = vmatprep.subr.bf16.mxu0 0
        %1981 = vmatpush1.bf16.msra.mxu0 %v1960
        %1982 = vmatprep.subr.bf16.mxu0 0
        %1983 = vmatpush1.bf16.msra.mxu0 %v1961
        %1984 = vmatprep.subr.bf16.mxu0 0
        %1985 = vmatpush1.bf16.msra.mxu0 %v1972
        %1986 = vmatprep.subr.bf16.mxu0 0
        %1987 = vmatpush1.bf16.msra.mxu0 0
        %1988 = vmatprep.subr.bf16.mxu0 0
        %1989 = vmatpush1.bf16.msra.mxu0 0
        %1990 = vmatprep.subr.bf16.mxu0 0
        %1991 = vmatpush1.bf16.msra.mxu0 0
        %1992 = vmatprep.subr.bf16.mxu0 0
        %1993 = vmatpush1.bf16.msra.mxu0 0
        %1994 = vmatprep.subr.bf16.mxu0 0
        %1995 = vmatpush1.bf16.msra.mxu0 0
        %1996 = vmatprep.subr.bf16.mxu0 0
        %1997 = vmatpush1.bf16.msra.mxu0 0
        %1998 = vmatprep.subr.bf16.mxu0 0
        %1999 = vmatpush1.bf16.msra.mxu0 0
        %2000 = vmatprep.subr.bf16.mxu0 0
        %2001 = vmatpush1.bf16.msra.mxu0 0
        %2002 = vmatprep.subr.bf16.mxu0 0
        %2003 = vmatpush1.bf16.msra.mxu0 0
        %2004 = vmatprep.subr.bf16.mxu0 0
        %2005 = vmatpush1.bf16.msra.mxu0 0
        %2006 = vmatprep.mubr.bf16.mxu0 0
        %2007 = vmatmul.mubr.bf16.gmra.mrb[0].mxu0 %v1969
        %v2008 = vpop.f32.mrb[0].mxu0
        %v2009 = vadd.f32 0.0, %v2008
        %v2010 = vpop.f32.mrb[0].mxu0
        %v2011 = vpop.f32.mrb[0].mxu0
        %v2012 = vadd.f32 0.0, %v2011
        %v2013 = vpop.f32.mrb[0].mxu0
        %2014 = vdwg.mxu0
        %v2015 = vadd.f32 %v1748, %v2009
        %v2016 = vadd.f32 %v1751, %v2012
        %s2017 = scalar_lea.vmem %s3, 220
        %v2018 = vld [vmem:[%s2017] sm:$0xf]
        %v2019 = vld [vmem:[%s2017 + $0x4] sm:$0xf]
        %v2020 = vld [vmem:[%s2017 + $0x8] sm:$0xf]
        %v2021 = vld [vmem:[%s2017 + $0xc] sm:$0xf]
        %v2022 = vld [vmem:[%s2017 + $0x10] sm:$0xf]
        %v2023 = vld [vmem:[%s2017 + $0x14] sm:$0xf]
        %v2024 = vld [vmem:[%s2017 + $0x18] sm:$0xf]
        %v2025 = vld [vmem:[%s2017 + $0x1c] sm:$0xf]
        %v2026 = vld [vmem:[%s2017 + $0x20] sm:$0xf]
        %v2027 = vld [vmem:[%s2017 + $0x24] sm:$0xf]
        %v2028 = vld [vmem:[%s2017 + $0x28] sm:$0x3]
        %v2040 = vunpack.c.l.b16 %v2018
        %v2041 = vunpack.c.l.b16 %v2019
        %v2042 = vunpack.c.l.b16 %v2020
        %v2043 = vunpack.c.l.b16 %v2021
        %v2044 = vunpack.c.l.b16 %v2022
        %v2045 = vunpack.c.l.b16 %v2023
        %v2046 = vunpack.c.l.b16 %v2024
        %v2047 = vunpack.c.l.b16 %v2025
        %v2048 = vunpack.c.l.b16 %v2026
        %v2049 = vunpack.c.l.b16 %v2027
        %v2050 = vunpack.c.l.b16 %v2028
        %v2051 = vpack.c.b16 %v2041, %v2040
        %v2052 = vpack.c.b16 %v2043, %v2042
        %v2053 = vpack.c.b16 %v2045, %v2044
        %v2054 = vpack.c.b16 %v2047, %v2046
        %v2055 = vpack.c.b16 %v2049, %v2048
        %v2056 = vpack.c.b16 %v2050, %v2050
        %v2063 = vsel %vm1629, %v2056, 0
        %2065 = vmatprep.subr.bf16.mxu0 0
        %2066 = vmatpush1.bf16.msra.mxu0 %v2051
        %2067 = vmatprep.subr.bf16.mxu0 0
        %2068 = vmatpush1.bf16.msra.mxu0 %v2052
        %2069 = vmatprep.subr.bf16.mxu0 0
        %2070 = vmatpush1.bf16.msra.mxu0 %v2053
        %2071 = vmatprep.subr.bf16.mxu0 0
        %2072 = vmatpush1.bf16.msra.mxu0 %v2054
        %2073 = vmatprep.subr.bf16.mxu0 0
        %2074 = vmatpush1.bf16.msra.mxu0 %v2055
        %2075 = vmatprep.subr.bf16.mxu0 0
        %2076 = vmatpush1.bf16.msra.mxu0 %v2063
        %2077 = vmatprep.subr.bf16.mxu0 0
        %2078 = vmatpush1.bf16.msra.mxu0 0
        %2079 = vmatprep.subr.bf16.mxu0 0
        %2080 = vmatpush1.bf16.msra.mxu0 0
        %2081 = vmatprep.subr.bf16.mxu0 0
        %2082 = vmatpush1.bf16.msra.mxu0 0
        %2083 = vmatprep.subr.bf16.mxu0 0
        %2084 = vmatpush1.bf16.msra.mxu0 0
        %2085 = vmatprep.subr.bf16.mxu0 0
        %2086 = vmatpush1.bf16.msra.mxu0 0
        %2087 = vmatprep.subr.bf16.mxu0 0
        %2088 = vmatpush1.bf16.msra.mxu0 0
        %2089 = vmatprep.subr.bf16.mxu0 0
        %2090 = vmatpush1.bf16.msra.mxu0 0
        %2091 = vmatprep.subr.bf16.mxu0 0
        %2092 = vmatpush1.bf16.msra.mxu0 0
        %2093 = vmatprep.subr.bf16.mxu0 0
        %2094 = vmatpush1.bf16.msra.mxu0 0
        %2095 = vmatprep.subr.bf16.mxu0 0
        %2096 = vmatpush1.bf16.msra.mxu0 0
        %2097 = vmatprep.mubr.bf16.mxu0 0
        %2098 = vmatmul.mubr.bf16.gmra.mrb[0].mxu0 %v1969
        %v2099 = vpop.f32.mrb[0].mxu0
        %v2100 = vadd.f32 0.0, %v2099
        %v2101 = vpop.f32.mrb[0].mxu0
        %v2102 = vpop.f32.mrb[0].mxu0
        %v2103 = vadd.f32 0.0, %v2102
        %v2104 = vpop.f32.mrb[0].mxu0
        %2105 = vdwg.mxu0
        %v2106 = vadd.f32 %v1914, %v2100
        %v2107 = vadd.f32 %v1917, %v2103
        %v2108 = vld [vmem:[#allocation2 + $0x3] sm:$0xff]
        %v2109 = vld [vmem:[#allocation2 + $0xb] sm:$0x3]
        %v2110 = vpack.c.bf16 %v2109, %v2108
        %s2111 = scalar_lea.vmem %s3, 264
        %v2112 = vld [vmem:[%s2111] sm:$0xf]
        %v2113 = vld [vmem:[%s2111 + $0x4] sm:$0xf]
        %v2114 = vld [vmem:[%s2111 + $0x8] sm:$0xf]
        %v2115 = vld [vmem:[%s2111 + $0xc] sm:$0xf]
        %v2116 = vld [vmem:[%s2111 + $0x10] sm:$0xf]
        %v2117 = vld [vmem:[%s2111 + $0x14] sm:$0xf]
        %v2118 = vld [vmem:[%s2111 + $0x18] sm:$0xf]
        %v2119 = vld [vmem:[%s2111 + $0x1c] sm:$0xf]
        %v2120 = vld [vmem:[%s2111 + $0x20] sm:$0xf]
        %v2121 = vld [vmem:[%s2111 + $0x24] sm:$0xf]
        %v2122 = vld [vmem:[%s2111 + $0x28] sm:$0x3]
        %v2134 = vunpack.c.l.b16 %v2112
        %v2135 = vunpack.c.l.b16 %v2113
        %v2136 = vunpack.c.l.b16 %v2114
        %v2137 = vunpack.c.l.b16 %v2115
        %v2138 = vunpack.c.l.b16 %v2116
        %v2139 = vunpack.c.l.b16 %v2117
        %v2140 = vunpack.c.l.b16 %v2118
        %v2141 = vunpack.c.l.b16 %v2119
        %v2142 = vunpack.c.l.b16 %v2120
        %v2143 = vunpack.c.l.b16 %v2121
        %v2144 = vunpack.c.l.b16 %v2122
        %v2145 = vpack.c.b16 %v2135, %v2134
        %v2146 = vpack.c.b16 %v2137, %v2136
        %v2147 = vpack.c.b16 %v2139, %v2138
        %v2148 = vpack.c.b16 %v2141, %v2140
        %v2149 = vpack.c.b16 %v2143, %v2142
        %v2150 = vpack.c.b16 %v2144, %v2144
        %v2157 = vsel %vm1625, %v2110, 0
        %v2160 = vsel %vm1629, %v2150, 0
        %2162 = vmatprep.subr.bf16.mxu0 0
        %2163 = vmatpush1.bf16.msra.mxu0 %v2145
        %2164 = vmatprep.subr.bf16.mxu0 0
        %2165 = vmatpush1.bf16.msra.mxu0 %v2146
        %2166 = vmatprep.subr.bf16.mxu0 0
        %2167 = vmatpush1.bf16.msra.mxu0 %v2147
        %2168 = vmatprep.subr.bf16.mxu0 0
        %2169 = vmatpush1.bf16.msra.mxu0 %v2148
        %2170 = vmatprep.subr.bf16.mxu0 0
        %2171 = vmatpush1.bf16.msra.mxu0 %v2149
        %2172 = vmatprep.subr.bf16.mxu0 0
        %2173 = vmatpush1.bf16.msra.mxu0 %v2160
        %2174 = vmatprep.subr.bf16.mxu0 0
        %2175 = vmatpush1.bf16.msra.mxu0 0
        %2176 = vmatprep.subr.bf16.mxu0 0
        %2177 = vmatpush1.bf16.msra.mxu0 0
        %2178 = vmatprep.subr.bf16.mxu0 0
        %2179 = vmatpush1.bf16.msra.mxu0 0
        %2180 = vmatprep.subr.bf16.mxu0 0
        %2181 = vmatpush1.bf16.msra.mxu0 0
        %2182 = vmatprep.subr.bf16.mxu0 0
        %2183 = vmatpush1.bf16.msra.mxu0 0
        %2184 = vmatprep.subr.bf16.mxu0 0
        %2185 = vmatpush1.bf16.msra.mxu0 0
        %2186 = vmatprep.subr.bf16.mxu0 0
        %2187 = vmatpush1.bf16.msra.mxu0 0
        %2188 = vmatprep.subr.bf16.mxu0 0
        %2189 = vmatpush1.bf16.msra.mxu0 0
        %2190 = vmatprep.subr.bf16.mxu0 0
        %2191 = vmatpush1.bf16.msra.mxu0 0
        %2192 = vmatprep.subr.bf16.mxu0 0
        %2193 = vmatpush1.bf16.msra.mxu0 0
        %2194 = vmatprep.mubr.bf16.mxu0 0
        %2195 = vmatmul.mubr.bf16.gmra.mrb[0].mxu0 %v2157
        %v2196 = vpop.f32.mrb[0].mxu0
        %v2197 = vadd.f32 0.0, %v2196
        %v2198 = vpop.f32.mrb[0].mxu0
        %v2199 = vpop.f32.mrb[0].mxu0
        %v2200 = vadd.f32 0.0, %v2199
        %v2201 = vpop.f32.mrb[0].mxu0
        %2202 = vdwg.mxu0
        %v2203 = vadd.f32 %v2015, %v2197
        %v2204 = vadd.f32 %v2016, %v2200
        %s2205 = scalar_lea.vmem %s3, 308
        %v2206 = vld [vmem:[%s2205] sm:$0xf]
        %v2207 = vld [vmem:[%s2205 + $0x4] sm:$0xf]
        %v2208 = vld [vmem:[%s2205 + $0x8] sm:$0xf]
        %v2209 = vld [vmem:[%s2205 + $0xc] sm:$0xf]
        %v2210 = vld [vmem:[%s2205 + $0x10] sm:$0xf]
        %v2211 = vld [vmem:[%s2205 + $0x14] sm:$0xf]
        %v2212 = vld [vmem:[%s2205 + $0x18] sm:$0xf]
        %v2213 = vld [vmem:[%s2205 + $0x1c] sm:$0xf]
        %v2214 = vld [vmem:[%s2205 + $0x20] sm:$0xf]
        %v2215 = vld [vmem:[%s2205 + $0x24] sm:$0xf]
        %v2216 = vld [vmem:[%s2205 + $0x28] sm:$0x3]
        %v2228 = vunpack.c.l.b16 %v2206
        %v2229 = vunpack.c.l.b16 %v2207
        %v2230 = vunpack.c.l.b16 %v2208
        %v2231 = vunpack.c.l.b16 %v2209
        %v2232 = vunpack.c.l.b16 %v2210
        %v2233 = vunpack.c.l.b16 %v2211
        %v2234 = vunpack.c.l.b16 %v2212
        %v2235 = vunpack.c.l.b16 %v2213
        %v2236 = vunpack.c.l.b16 %v2214
        %v2237 = vunpack.c.l.b16 %v2215
        %v2238 = vunpack.c.l.b16 %v2216
        %v2239 = vpack.c.b16 %v2229, %v2228
        %v2240 = vpack.c.b16 %v2231, %v2230
        %v2241 = vpack.c.b16 %v2233, %v2232
        %v2242 = vpack.c.b16 %v2235, %v2234
        %v2243 = vpack.c.b16 %v2237, %v2236
        %v2244 = vpack.c.b16 %v2238, %v2238
        %v2251 = vsel %vm1629, %v2244, 0
        %2253 = vmatprep.subr.bf16.mxu0 0
        %2254 = vmatpush1.bf16.msra.mxu0 %v2239
        %2255 = vmatprep.subr.bf16.mxu0 0
        %2256 = vmatpush1.bf16.msra.mxu0 %v2240
        %2257 = vmatprep.subr.bf16.mxu0 0
        %2258 = vmatpush1.bf16.msra.mxu0 %v2241
        %2259 = vmatprep.subr.bf16.mxu0 0
        %2260 = vmatpush1.bf16.msra.mxu0 %v2242
        %2261 = vmatprep.subr.bf16.mxu0 0
        %2262 = vmatpush1.bf16.msra.mxu0 %v2243
        %2263 = vmatprep.subr.bf16.mxu0 0
        %2264 = vmatpush1.bf16.msra.mxu0 %v2251
        %2265 = vmatprep.subr.bf16.mxu0 0
        %2266 = vmatpush1.bf16.msra.mxu0 0
        %2267 = vmatprep.subr.bf16.mxu0 0
        %2268 = vmatpush1.bf16.msra.mxu0 0
        %2269 = vmatprep.subr.bf16.mxu0 0
        %2270 = vmatpush1.bf16.msra.mxu0 0
        %2271 = vmatprep.subr.bf16.mxu0 0
        %2272 = vmatpush1.bf16.msra.mxu0 0
        %2273 = vmatprep.subr.bf16.mxu0 0
        %2274 = vmatpush1.bf16.msra.mxu0 0
        %2275 = vmatprep.subr.bf16.mxu0 0
        %2276 = vmatpush1.bf16.msra.mxu0 0
        %2277 = vmatprep.subr.bf16.mxu0 0
        %2278 = vmatpush1.bf16.msra.mxu0 0
        %2279 = vmatprep.subr.bf16.mxu0 0
        %2280 = vmatpush1.bf16.msra.mxu0 0
        %2281 = vmatprep.subr.bf16.mxu0 0
        %2282 = vmatpush1.bf16.msra.mxu0 0
        %2283 = vmatprep.subr.bf16.mxu0 0
        %2284 = vmatpush1.bf16.msra.mxu0 0
        %2285 = vmatprep.mubr.bf16.mxu0 0
        %2286 = vmatmul.mubr.bf16.gmra.mrb[0].mxu0 %v2157
        %v2287 = vpop.f32.mrb[0].mxu0
        %v2288 = vadd.f32 0.0, %v2287
        %v2289 = vpop.f32.mrb[0].mxu0
        %v2290 = vpop.f32.mrb[0].mxu0
        %v2291 = vadd.f32 0.0, %v2290
        %v2292 = vpop.f32.mrb[0].mxu0
        %2293 = vdwg.mxu0
        %v2294 = vadd.f32 %v2106, %v2288
        %v2295 = vadd.f32 %v2107, %v2291
        %v2296 = vld [vmem:[#allocation2 + $0x4] sm:$0xff]
        %v2297 = vld [vmem:[#allocation2 + $0xc] sm:$0x3]
        %v2298 = vpack.c.bf16 %v2297, %v2296
        %s2299 = scalar_lea.vmem %s3, 352
        %v2300 = vld [vmem:[%s2299] sm:$0xf]
        %v2301 = vld [vmem:[%s2299 + $0x4] sm:$0xf]
        %v2302 = vld [vmem:[%s2299 + $0x8] sm:$0xf]
        %v2303 = vld [vmem:[%s2299 + $0xc] sm:$0xf]
        %v2304 = vld [vmem:[%s2299 + $0x10] sm:$0xf]
        %v2305 = vld [vmem:[%s2299 + $0x14] sm:$0xf]
        %v2306 = vld [vmem:[%s2299 + $0x18] sm:$0xf]
        %v2307 = vld [vmem:[%s2299 + $0x1c] sm:$0xf]
        %v2308 = vld [vmem:[%s2299 + $0x20] sm:$0xf]
        %v2309 = vld [vmem:[%s2299 + $0x24] sm:$0xf]
        %v2310 = vld [vmem:[%s2299 + $0x28] sm:$0x3]
        %v2322 = vunpack.c.l.b16 %v2300
        %v2323 = vunpack.c.l.b16 %v2301
        %v2324 = vunpack.c.l.b16 %v2302
        %v2325 = vunpack.c.l.b16 %v2303
        %v2326 = vunpack.c.l.b16 %v2304
        %v2327 = vunpack.c.l.b16 %v2305
        %v2328 = vunpack.c.l.b16 %v2306
        %v2329 = vunpack.c.l.b16 %v2307
        %v2330 = vunpack.c.l.b16 %v2308
        %v2331 = vunpack.c.l.b16 %v2309
        %v2332 = vunpack.c.l.b16 %v2310
        %v2333 = vpack.c.b16 %v2323, %v2322
        %v2334 = vpack.c.b16 %v2325, %v2324
        %v2335 = vpack.c.b16 %v2327, %v2326
        %v2336 = vpack.c.b16 %v2329, %v2328
        %v2337 = vpack.c.b16 %v2331, %v2330
        %v2338 = vpack.c.b16 %v2332, %v2332
        %v2345 = vsel %vm1625, %v2298, 0
        %v2348 = vsel %vm1629, %v2338, 0
        %2350 = vmatprep.subr.bf16.mxu0 0
        %2351 = vmatpush1.bf16.msra.mxu0 %v2333
        %2352 = vmatprep.subr.bf16.mxu0 0
        %2353 = vmatpush1.bf16.msra.mxu0 %v2334
        %2354 = vmatprep.subr.bf16.mxu0 0
        %2355 = vmatpush1.bf16.msra.mxu0 %v2335
        %2356 = vmatprep.subr.bf16.mxu0 0
        %2357 = vmatpush1.bf16.msra.mxu0 %v2336
        %2358 = vmatprep.subr.bf16.mxu0 0
        %2359 = vmatpush1.bf16.msra.mxu0 %v2337
        %2360 = vmatprep.subr.bf16.mxu0 0
        %2361 = vmatpush1.bf16.msra.mxu0 %v2348
        %2362 = vmatprep.subr.bf16.mxu0 0
        %2363 = vmatpush1.bf16.msra.mxu0 0
        %2364 = vmatprep.subr.bf16.mxu0 0
        %2365 = vmatpush1.bf16.msra.mxu0 0
        %2366 = vmatprep.subr.bf16.mxu0 0
        %2367 = vmatpush1.bf16.msra.mxu0 0
        %2368 = vmatprep.subr.bf16.mxu0 0
        %2369 = vmatpush1.bf16.msra.mxu0 0
        %2370 = vmatprep.subr.bf16.mxu0 0
        %2371 = vmatpush1.bf16.msra.mxu0 0
        %2372 = vmatprep.subr.bf16.mxu0 0
        %2373 = vmatpush1.bf16.msra.mxu0 0
        %2374 = vmatprep.subr.bf16.mxu0 0
        %2375 = vmatpush1.bf16.msra.mxu0 0
        %2376 = vmatprep.subr.bf16.mxu0 0
        %2377 = vmatpush1.bf16.msra.mxu0 0
        %2378 = vmatprep.subr.bf16.mxu0 0
        %2379 = vmatpush1.bf16.msra.mxu0 0
        %2380 = vmatprep.subr.bf16.mxu0 0
        %2381 = vmatpush1.bf16.msra.mxu0 0
        %2382 = vmatprep.mubr.bf16.mxu0 0
        %2383 = vmatmul.mubr.bf16.gmra.mrb[0].mxu0 %v2345
        %v2384 = vpop.f32.mrb[0].mxu0
        %v2385 = vadd.f32 0.0, %v2384
        %v2386 = vpop.f32.mrb[0].mxu0
        %v2387 = vpop.f32.mrb[0].mxu0
        %v2388 = vadd.f32 0.0, %v2387
        %v2389 = vpop.f32.mrb[0].mxu0
        %2390 = vdwg.mxu0
        %v2391 = vadd.f32 %v2203, %v2385
        %v2392 = vadd.f32 %v2204, %v2388
        %s2393 = scalar_lea.vmem %s3, 396
        %v2394 = vld [vmem:[%s2393] sm:$0xf]
        %v2395 = vld [vmem:[%s2393 + $0x4] sm:$0xf]
        %v2396 = vld [vmem:[%s2393 + $0x8] sm:$0xf]
        %v2397 = vld [vmem:[%s2393 + $0xc] sm:$0xf]
        %v2398 = vld [vmem:[%s2393 + $0x10] sm:$0xf]
        %v2399 = vld [vmem:[%s2393 + $0x14] sm:$0xf]
        %v2400 = vld [vmem:[%s2393 + $0x18] sm:$0xf]
        %v2401 = vld [vmem:[%s2393 + $0x1c] sm:$0xf]
        %v2402 = vld [vmem:[%s2393 + $0x20] sm:$0xf]
        %v2403 = vld [vmem:[%s2393 + $0x24] sm:$0xf]
        %v2404 = vld [vmem:[%s2393 + $0x28] sm:$0x3]
        %v2416 = vunpack.c.l.b16 %v2394
        %v2417 = vunpack.c.l.b16 %v2395
        %v2418 = vunpack.c.l.b16 %v2396
        %v2419 = vunpack.c.l.b16 %v2397
        %v2420 = vunpack.c.l.b16 %v2398
        %v2421 = vunpack.c.l.b16 %v2399
        %v2422 = vunpack.c.l.b16 %v2400
        %v2423 = vunpack.c.l.b16 %v2401
        %v2424 = vunpack.c.l.b16 %v2402
        %v2425 = vunpack.c.l.b16 %v2403
        %v2426 = vunpack.c.l.b16 %v2404
        %v2427 = vpack.c.b16 %v2417, %v2416
        %v2428 = vpack.c.b16 %v2419, %v2418
        %v2429 = vpack.c.b16 %v2421, %v2420
        %v2430 = vpack.c.b16 %v2423, %v2422
        %v2431 = vpack.c.b16 %v2425, %v2424
        %v2432 = vpack.c.b16 %v2426, %v2426
        %v2439 = vsel %vm1629, %v2432, 0
        %2441 = vmatprep.subr.bf16.mxu0 0
        %2442 = vmatpush1.bf16.msra.mxu0 %v2427
        %2443 = vmatprep.subr.bf16.mxu0 0
        %2444 = vmatpush1.bf16.msra.mxu0 %v2428
        %2445 = vmatprep.subr.bf16.mxu0 0
        %2446 = vmatpush1.bf16.msra.mxu0 %v2429
        %2447 = vmatprep.subr.bf16.mxu0 0
        %2448 = vmatpush1.bf16.msra.mxu0 %v2430
        %2449 = vmatprep.subr.bf16.mxu0 0
        %2450 = vmatpush1.bf16.msra.mxu0 %v2431
        %2451 = vmatprep.subr.bf16.mxu0 0
        %2452 = vmatpush1.bf16.msra.mxu0 %v2439
        %2453 = vmatprep.subr.bf16.mxu0 0
        %2454 = vmatpush1.bf16.msra.mxu0 0
        %2455 = vmatprep.subr.bf16.mxu0 0
        %2456 = vmatpush1.bf16.msra.mxu0 0
        %2457 = vmatprep.subr.bf16.mxu0 0
        %2458 = vmatpush1.bf16.msra.mxu0 0
        %2459 = vmatprep.subr.bf16.mxu0 0
        %2460 = vmatpush1.bf16.msra.mxu0 0
        %2461 = vmatprep.subr.bf16.mxu0 0
        %2462 = vmatpush1.bf16.msra.mxu0 0
        %2463 = vmatprep.subr.bf16.mxu0 0
        %2464 = vmatpush1.bf16.msra.mxu0 0
        %2465 = vmatprep.subr.bf16.mxu0 0
        %2466 = vmatpush1.bf16.msra.mxu0 0
        %2467 = vmatprep.subr.bf16.mxu0 0
        %2468 = vmatpush1.bf16.msra.mxu0 0
        %2469 = vmatprep.subr.bf16.mxu0 0
        %2470 = vmatpush1.bf16.msra.mxu0 0
        %2471 = vmatprep.subr.bf16.mxu0 0
        %2472 = vmatpush1.bf16.msra.mxu0 0
        %2473 = vmatprep.mubr.bf16.mxu0 0
        %2474 = vmatmul.mubr.bf16.gmra.mrb[0].mxu0 %v2345
        %v2475 = vpop.f32.mrb[0].mxu0
        %v2476 = vadd.f32 0.0, %v2475
        %v2477 = vpop.f32.mrb[0].mxu0
        %v2478 = vpop.f32.mrb[0].mxu0
        %v2479 = vadd.f32 0.0, %v2478
        %v2480 = vpop.f32.mrb[0].mxu0
        %2481 = vdwg.mxu0
        %v2482 = vadd.f32 %v2294, %v2476
        %v2483 = vadd.f32 %v2295, %v2479
        %v2484 = vmax.f32 %v2391, %v2482
        %v2485 = vmax.f32 %v2392, %v2483
        %v2486 = vld [vmem:[%s4] sm:$0x1]
        %v2487 = vld [vmem:[%s6] sm:$0x1]
        %v2489 = vrot.slane %v2484, 1
        %v2491 = vmax.f32 %v2484, %v2489
        %v2492 = vadd.f32 %v2491, %v2486
        %v2493 = vmax.f32 %v2492, 0.0
        %v2494 = vpack.c.bf16 %v2493, %v2493
        %v2495 = vld [vmem:[%s5] sm:$0xf]
        %v2496 = vld [vmem:[%s5 + $0x4] sm:$0xf]
        %v2497 = vld [vmem:[%s5 + $0x8] sm:$0xf]
        %v2498 = vld [vmem:[%s5 + $0xc] sm:$0xf]
        %v2499 = vld [vmem:[%s5 + $0x10] sm:$0xf]
        %v2500 = vld [vmem:[%s5 + $0x14] sm:$0xf]
        %v2501 = vld [vmem:[%s5 + $0x18] sm:$0xf]
        %v2502 = vld [vmem:[%s5 + $0x1c] sm:$0xf]
        %v2503 = vld [vmem:[%s5 + $0x20] sm:$0xf]
        %v2504 = vld [vmem:[%s5 + $0x24] sm:$0xf]
        %v2515 = vunpack.c.l.b16 %v2495
        %v2516 = vunpack.c.l.b16 %v2496
        %v2517 = vunpack.c.l.b16 %v2497
        %v2518 = vunpack.c.l.b16 %v2498
        %v2519 = vunpack.c.l.b16 %v2499
        %v2520 = vunpack.c.l.b16 %v2500
        %v2521 = vunpack.c.l.b16 %v2501
        %v2522 = vunpack.c.l.b16 %v2502
        %v2523 = vunpack.c.l.b16 %v2503
        %v2524 = vunpack.c.l.b16 %v2504
        %v2525 = vpack.c.b16 %v2516, %v2515
        %v2526 = vpack.c.b16 %v2518, %v2517
        %v2527 = vpack.c.b16 %v2520, %v2519
        %v2528 = vpack.c.b16 %v2522, %v2521
        %v2529 = vpack.c.b16 %v2524, %v2523
        %vm2535 = vcmask 654336
        %v2537 = vsel %vm2535, %v2494, 0
        %2539 = vmatprep.subr.bf16.mxu0 0
        %2540 = vmatpush1.bf16.msra.mxu0 %v2525
        %2541 = vmatprep.subr.bf16.mxu0 0
        %2542 = vmatpush1.bf16.msra.mxu0 %v2526
        %2543 = vmatprep.subr.bf16.mxu0 0
        %2544 = vmatpush1.bf16.msra.mxu0 %v2527
        %2545 = vmatprep.subr.bf16.mxu0 0
        %2546 = vmatpush1.bf16.msra.mxu0 %v2528
        %2547 = vmatprep.subr.bf16.mxu0 0
        %2548 = vmatpush1.bf16.msra.mxu0 %v2529
        %2549 = vmatprep.subr.bf16.mxu0 0
        %2550 = vmatpush1.bf16.msra.mxu0 0
        %2551 = vmatprep.subr.bf16.mxu0 0
        %2552 = vmatpush1.bf16.msra.mxu0 0
        %2553 = vmatprep.subr.bf16.mxu0 0
        %2554 = vmatpush1.bf16.msra.mxu0 0
        %2555 = vmatprep.subr.bf16.mxu0 0
        %2556 = vmatpush1.bf16.msra.mxu0 0
        %2557 = vmatprep.subr.bf16.mxu0 0
        %2558 = vmatpush1.bf16.msra.mxu0 0
        %2559 = vmatprep.subr.bf16.mxu0 0
        %2560 = vmatpush1.bf16.msra.mxu0 0
        %2561 = vmatprep.subr.bf16.mxu0 0
        %2562 = vmatpush1.bf16.msra.mxu0 0
        %2563 = vmatprep.subr.bf16.mxu0 0
        %2564 = vmatpush1.bf16.msra.mxu0 0
        %2565 = vmatprep.subr.bf16.mxu0 0
        %2566 = vmatpush1.bf16.msra.mxu0 0
        %2567 = vmatprep.subr.bf16.mxu0 0
        %2568 = vmatpush1.bf16.msra.mxu0 0
        %2569 = vmatprep.subr.bf16.mxu0 0
        %2570 = vmatpush1.bf16.msra.mxu0 0
        %2571 = vmatprep.mubr.bf16.mxu0 0
        %2572 = vmatmul.mubr.bf16.gmra.mrb[0].mxu0 %v2537
        %v2573 = vpop.f32.mrb[0].mxu0
        %v2574 = vadd.f32 0.0, %v2573
        %v2575 = vpop.f32.mrb[0].mxu0
        %v2576 = vpop.f32.mrb[0].mxu0
        %v2577 = vpop.f32.mrb[0].mxu0
        %2578 = vdwg.mxu0
        %v2579 = vadd.f32 %v2487, %v2574
        %v2581 = vlaneseq
        %v2582 = vshrl.u32 %v2581, 7
        %v2583 = vsub.s32 0, %v2582
        %v2584 = vrot.slane %v2486, %v2583
        %v2586 = vadd.f32 %v2491, %v2584
        %v2587 = vmax.f32 %v2586, 0.0
        %v2588 = vpack.c.bf16 %v2587, %v2587
        %s2589 = scalar_lea.vmem %s5, 40
        %v2590 = vld [vmem:[%s2589] sm:$0xf]
        %v2591 = vld [vmem:[%s2589 + $0x4] sm:$0xf]
        %v2592 = vld [vmem:[%s2589 + $0x8] sm:$0xf]
        %v2593 = vld [vmem:[%s2589 + $0xc] sm:$0xf]
        %v2594 = vld [vmem:[%s2589 + $0x10] sm:$0xf]
        %v2595 = vld [vmem:[%s2589 + $0x14] sm:$0xf]
        %v2596 = vld [vmem:[%s2589 + $0x18] sm:$0xf]
        %v2597 = vld [vmem:[%s2589 + $0x1c] sm:$0xf]
        %v2598 = vld [vmem:[%s2589 + $0x20] sm:$0xf]
        %v2599 = vld [vmem:[%s2589 + $0x24] sm:$0xf]
        %v2601 = vrot.slane %v2588, 1
        %v2612 = vunpack.c.l.b16 %v2590
        %v2613 = vunpack.c.l.b16 %v2591
        %v2614 = vunpack.c.l.b16 %v2592
        %v2615 = vunpack.c.l.b16 %v2593
        %v2616 = vunpack.c.l.b16 %v2594
        %v2617 = vunpack.c.l.b16 %v2595
        %v2618 = vunpack.c.l.b16 %v2596
        %v2619 = vunpack.c.l.b16 %v2597
        %v2620 = vunpack.c.l.b16 %v2598
        %v2621 = vunpack.c.l.b16 %v2599
        %v2622 = vpack.c.b16 %v2613, %v2612
        %v2623 = vpack.c.b16 %v2615, %v2614
        %v2624 = vpack.c.b16 %v2617, %v2616
        %v2625 = vpack.c.b16 %v2619, %v2618
        %v2626 = vpack.c.b16 %v2621, %v2620
        %v2633 = vsel %vm2535, %v2601, 0
        %2635 = vmatprep.subr.bf16.mxu0 0
        %2636 = vmatpush1.bf16.msra.mxu0 %v2622
        %2637 = vmatprep.subr.bf16.mxu0 0
        %2638 = vmatpush1.bf16.msra.mxu0 %v2623
        %2639 = vmatprep.subr.bf16.mxu0 0
        %2640 = vmatpush1.bf16.msra.mxu0 %v2624
        %2641 = vmatprep.subr.bf16.mxu0 0
        %2642 = vmatpush1.bf16.msra.mxu0 %v2625
        %2643 = vmatprep.subr.bf16.mxu0 0
        %2644 = vmatpush1.bf16.msra.mxu0 %v2626
        %2645 = vmatprep.subr.bf16.mxu0 0
        %2646 = vmatpush1.bf16.msra.mxu0 0
        %2647 = vmatprep.subr.bf16.mxu0 0
        %2648 = vmatpush1.bf16.msra.mxu0 0
        %2649 = vmatprep.subr.bf16.mxu0 0
        %2650 = vmatpush1.bf16.msra.mxu0 0
        %2651 = vmatprep.subr.bf16.mxu0 0
        %2652 = vmatpush1.bf16.msra.mxu0 0
        %2653 = vmatprep.subr.bf16.mxu0 0
        %2654 = vmatpush1.bf16.msra.mxu0 0
        %2655 = vmatprep.subr.bf16.mxu0 0
        %2656 = vmatpush1.bf16.msra.mxu0 0
        %2657 = vmatprep.subr.bf16.mxu0 0
        %2658 = vmatpush1.bf16.msra.mxu0 0
        %2659 = vmatprep.subr.bf16.mxu0 0
        %2660 = vmatpush1.bf16.msra.mxu0 0
        %2661 = vmatprep.subr.bf16.mxu0 0
        %2662 = vmatpush1.bf16.msra.mxu0 0
        %2663 = vmatprep.subr.bf16.mxu0 0
        %2664 = vmatpush1.bf16.msra.mxu0 0
        %2665 = vmatprep.subr.bf16.mxu0 0
        %2666 = vmatpush1.bf16.msra.mxu0 0
        %2667 = vmatprep.mubr.bf16.mxu0 0
        %2668 = vmatmul.mubr.bf16.gmra.mrb[0].mxu0 %v2633
        %v2669 = vpop.f32.mrb[0].mxu0
        %v2670 = vadd.f32 0.0, %v2669
        %v2671 = vpop.f32.mrb[0].mxu0
        %v2672 = vpop.f32.mrb[0].mxu0
        %v2673 = vpop.f32.mrb[0].mxu0
        %2674 = vdwg.mxu0
        %v2675 = vadd.f32 %v2579, %v2670
        %s2676 = scalar_lea.vmem %s5, 80
        %v2677 = vld [vmem:[%s2676] sm:$0xf]
        %v2678 = vld [vmem:[%s2676 + $0x4] sm:$0xf]
        %v2679 = vld [vmem:[%s2676 + $0x8] sm:$0xf]
        %v2680 = vld [vmem:[%s2676 + $0xc] sm:$0xf]
        %v2681 = vld [vmem:[%s2676 + $0x10] sm:$0xf]
        %v2682 = vld [vmem:[%s2676 + $0x14] sm:$0xf]
        %v2683 = vld [vmem:[%s2676 + $0x18] sm:$0xf]
        %v2684 = vld [vmem:[%s2676 + $0x1c] sm:$0xf]
        %v2685 = vld [vmem:[%s2676 + $0x20] sm:$0xf]
        %v2686 = vld [vmem:[%s2676 + $0x24] sm:$0xf]
        %v2687 = vrot.slane %v2588, 2
        %v2698 = vunpack.c.l.b16 %v2677
        %v2699 = vunpack.c.l.b16 %v2678
        %v2700 = vunpack.c.l.b16 %v2679
        %v2701 = vunpack.c.l.b16 %v2680
        %v2702 = vunpack.c.l.b16 %v2681
        %v2703 = vunpack.c.l.b16 %v2682
        %v2704 = vunpack.c.l.b16 %v2683
        %v2705 = vunpack.c.l.b16 %v2684
        %v2706 = vunpack.c.l.b16 %v2685
        %v2707 = vunpack.c.l.b16 %v2686
        %v2708 = vpack.c.b16 %v2699, %v2698
        %v2709 = vpack.c.b16 %v2701, %v2700
        %v2710 = vpack.c.b16 %v2703, %v2702
        %v2711 = vpack.c.b16 %v2705, %v2704
        %v2712 = vpack.c.b16 %v2707, %v2706
        %v2719 = vsel %vm2535, %v2687, 0
        %2721 = vmatprep.subr.bf16.mxu0 0
        %2722 = vmatpush1.bf16.msra.mxu0 %v2708
        %2723 = vmatprep.subr.bf16.mxu0 0
        %2724 = vmatpush1.bf16.msra.mxu0 %v2709
        %2725 = vmatprep.subr.bf16.mxu0 0
        %2726 = vmatpush1.bf16.msra.mxu0 %v2710
        %2727 = vmatprep.subr.bf16.mxu0 0
        %2728 = vmatpush1.bf16.msra.mxu0 %v2711
        %2729 = vmatprep.subr.bf16.mxu0 0
        %2730 = vmatpush1.bf16.msra.mxu0 %v2712
        %2731 = vmatprep.subr.bf16.mxu0 0
        %2732 = vmatpush1.bf16.msra.mxu0 0
        %2733 = vmatprep.subr.bf16.mxu0 0
        %2734 = vmatpush1.bf16.msra.mxu0 0
        %2735 = vmatprep.subr.bf16.mxu0 0
        %2736 = vmatpush1.bf16.msra.mxu0 0
        %2737 = vmatprep.subr.bf16.mxu0 0
        %2738 = vmatpush1.bf16.msra.mxu0 0
        %2739 = vmatprep.subr.bf16.mxu0 0
        %2740 = vmatpush1.bf16.msra.mxu0 0
        %2741 = vmatprep.subr.bf16.mxu0 0
        %2742 = vmatpush1.bf16.msra.mxu0 0
        %2743 = vmatprep.subr.bf16.mxu0 0
        %2744 = vmatpush1.bf16.msra.mxu0 0
        %2745 = vmatprep.subr.bf16.mxu0 0
        %2746 = vmatpush1.bf16.msra.mxu0 0
        %2747 = vmatprep.subr.bf16.mxu0 0
        %2748 = vmatpush1.bf16.msra.mxu0 0
        %2749 = vmatprep.subr.bf16.mxu0 0
        %2750 = vmatpush1.bf16.msra.mxu0 0
        %2751 = vmatprep.subr.bf16.mxu0 0
        %2752 = vmatpush1.bf16.msra.mxu0 0
        %2753 = vmatprep.mubr.bf16.mxu0 0
        %2754 = vmatmul.mubr.bf16.gmra.mrb[0].mxu0 %v2719
        %v2755 = vpop.f32.mrb[0].mxu0
        %v2756 = vadd.f32 0.0, %v2755
        %v2757 = vpop.f32.mrb[0].mxu0
        %v2758 = vpop.f32.mrb[0].mxu0
        %v2759 = vpop.f32.mrb[0].mxu0
        %2760 = vdwg.mxu0
        %v2761 = vadd.f32 %v2675, %v2756
        %s2762 = scalar_lea.vmem %s5, 120
        %v2763 = vld [vmem:[%s2762] sm:$0xf]
        %v2764 = vld [vmem:[%s2762 + $0x4] sm:$0xf]
        %v2765 = vld [vmem:[%s2762 + $0x8] sm:$0xf]
        %v2766 = vld [vmem:[%s2762 + $0xc] sm:$0xf]
        %v2767 = vld [vmem:[%s2762 + $0x10] sm:$0xf]
        %v2768 = vld [vmem:[%s2762 + $0x14] sm:$0xf]
        %v2769 = vld [vmem:[%s2762 + $0x18] sm:$0xf]
        %v2770 = vld [vmem:[%s2762 + $0x1c] sm:$0xf]
        %v2771 = vld [vmem:[%s2762 + $0x20] sm:$0xf]
        %v2772 = vld [vmem:[%s2762 + $0x24] sm:$0xf]
        %v2773 = vrot.slane %v2588, 3
        %v2784 = vunpack.c.l.b16 %v2763
        %v2785 = vunpack.c.l.b16 %v2764
        %v2786 = vunpack.c.l.b16 %v2765
        %v2787 = vunpack.c.l.b16 %v2766
        %v2788 = vunpack.c.l.b16 %v2767
        %v2789 = vunpack.c.l.b16 %v2768
        %v2790 = vunpack.c.l.b16 %v2769
        %v2791 = vunpack.c.l.b16 %v2770
        %v2792 = vunpack.c.l.b16 %v2771
        %v2793 = vunpack.c.l.b16 %v2772
        %v2794 = vpack.c.b16 %v2785, %v2784
        %v2795 = vpack.c.b16 %v2787, %v2786
        %v2796 = vpack.c.b16 %v2789, %v2788
        %v2797 = vpack.c.b16 %v2791, %v2790
        %v2798 = vpack.c.b16 %v2793, %v2792
        %v2805 = vsel %vm2535, %v2773, 0
        %2807 = vmatprep.subr.bf16.mxu0 0
        %2808 = vmatpush1.bf16.msra.mxu0 %v2794
        %2809 = vmatprep.subr.bf16.mxu0 0
        %2810 = vmatpush1.bf16.msra.mxu0 %v2795
        %2811 = vmatprep.subr.bf16.mxu0 0
        %2812 = vmatpush1.bf16.msra.mxu0 %v2796
        %2813 = vmatprep.subr.bf16.mxu0 0
        %2814 = vmatpush1.bf16.msra.mxu0 %v2797
        %2815 = vmatprep.subr.bf16.mxu0 0
        %2816 = vmatpush1.bf16.msra.mxu0 %v2798
        %2817 = vmatprep.subr.bf16.mxu0 0
        %2818 = vmatpush1.bf16.msra.mxu0 0
        %2819 = vmatprep.subr.bf16.mxu0 0
        %2820 = vmatpush1.bf16.msra.mxu0 0
        %2821 = vmatprep.subr.bf16.mxu0 0
        %2822 = vmatpush1.bf16.msra.mxu0 0
        %2823 = vmatprep.subr.bf16.mxu0 0
        %2824 = vmatpush1.bf16.msra.mxu0 0
        %2825 = vmatprep.subr.bf16.mxu0 0
        %2826 = vmatpush1.bf16.msra.mxu0 0
        %2827 = vmatprep.subr.bf16.mxu0 0
        %2828 = vmatpush1.bf16.msra.mxu0 0
        %2829 = vmatprep.subr.bf16.mxu0 0
        %2830 = vmatpush1.bf16.msra.mxu0 0
        %2831 = vmatprep.subr.bf16.mxu0 0
        %2832 = vmatpush1.bf16.msra.mxu0 0
        %2833 = vmatprep.subr.bf16.mxu0 0
        %2834 = vmatpush1.bf16.msra.mxu0 0
        %2835 = vmatprep.subr.bf16.mxu0 0
        %2836 = vmatpush1.bf16.msra.mxu0 0
        %2837 = vmatprep.subr.bf16.mxu0 0
        %2838 = vmatpush1.bf16.msra.mxu0 0
        %2839 = vmatprep.mubr.bf16.mxu0 0
        %2840 = vmatmul.mubr.bf16.gmra.mrb[0].mxu0 %v2805
        %v2841 = vpop.f32.mrb[0].mxu0
        %v2842 = vadd.f32 0.0, %v2841
        %v2843 = vpop.f32.mrb[0].mxu0
        %v2844 = vpop.f32.mrb[0].mxu0
        %v2845 = vpop.f32.mrb[0].mxu0
        %2846 = vdwg.mxu0
        %v2847 = vadd.f32 %v2761, %v2842
        %v2849 = vrot.slane %v2485, 1
        %v2851 = vmax.f32 %v2485, %v2849
        %v2852 = vadd.f32 %v2851, %v2486
        %v2853 = vmax.f32 %v2852, 0.0
        %v2854 = vpack.c.bf16 %v2853, %v2853
        %s2855 = scalar_lea.vmem %s5, 160
        %v2856 = vld [vmem:[%s2855] sm:$0xf]
        %v2857 = vld [vmem:[%s2855 + $0x4] sm:$0xf]
        %v2858 = vld [vmem:[%s2855 + $0x8] sm:$0xf]
        %v2859 = vld [vmem:[%s2855 + $0xc] sm:$0xf]
        %v2860 = vld [vmem:[%s2855 + $0x10] sm:$0xf]
        %v2861 = vld [vmem:[%s2855 + $0x14] sm:$0xf]
        %v2862 = vld [vmem:[%s2855 + $0x18] sm:$0xf]
        %v2863 = vld [vmem:[%s2855 + $0x1c] sm:$0xf]
        %v2864 = vld [vmem:[%s2855 + $0x20] sm:$0xf]
        %v2865 = vld [vmem:[%s2855 + $0x24] sm:$0xf]
        %v2876 = vunpack.c.l.b16 %v2856
        %v2877 = vunpack.c.l.b16 %v2857
        %v2878 = vunpack.c.l.b16 %v2858
        %v2879 = vunpack.c.l.b16 %v2859
        %v2880 = vunpack.c.l.b16 %v2860
        %v2881 = vunpack.c.l.b16 %v2861
        %v2882 = vunpack.c.l.b16 %v2862
        %v2883 = vunpack.c.l.b16 %v2863
        %v2884 = vunpack.c.l.b16 %v2864
        %v2885 = vunpack.c.l.b16 %v2865
        %v2886 = vpack.c.b16 %v2877, %v2876
        %v2887 = vpack.c.b16 %v2879, %v2878
        %v2888 = vpack.c.b16 %v2881, %v2880
        %v2889 = vpack.c.b16 %v2883, %v2882
        %v2890 = vpack.c.b16 %v2885, %v2884
        %v2897 = vsel %vm2535, %v2854, 0
        %2899 = vmatprep.subr.bf16.mxu0 0
        %2900 = vmatpush1.bf16.msra.mxu0 %v2886
        %2901 = vmatprep.subr.bf16.mxu0 0
        %2902 = vmatpush1.bf16.msra.mxu0 %v2887
        %2903 = vmatprep.subr.bf16.mxu0 0
        %2904 = vmatpush1.bf16.msra.mxu0 %v2888
        %2905 = vmatprep.subr.bf16.mxu0 0
        %2906 = vmatpush1.bf16.msra.mxu0 %v2889
        %2907 = vmatprep.subr.bf16.mxu0 0
        %2908 = vmatpush1.bf16.msra.mxu0 %v2890
        %2909 = vmatprep.subr.bf16.mxu0 0
        %2910 = vmatpush1.bf16.msra.mxu0 0
        %2911 = vmatprep.subr.bf16.mxu0 0
        %2912 = vmatpush1.bf16.msra.mxu0 0
        %2913 = vmatprep.subr.bf16.mxu0 0
        %2914 = vmatpush1.bf16.msra.mxu0 0
        %2915 = vmatprep.subr.bf16.mxu0 0
        %2916 = vmatpush1.bf16.msra.mxu0 0
        %2917 = vmatprep.subr.bf16.mxu0 0
        %2918 = vmatpush1.bf16.msra.mxu0 0
        %2919 = vmatprep.subr.bf16.mxu0 0
        %2920 = vmatpush1.bf16.msra.mxu0 0
        %2921 = vmatprep.subr.bf16.mxu0 0
        %2922 = vmatpush1.bf16.msra.mxu0 0
        %2923 = vmatprep.subr.bf16.mxu0 0
        %2924 = vmatpush1.bf16.msra.mxu0 0
        %2925 = vmatprep.subr.bf16.mxu0 0
        %2926 = vmatpush1.bf16.msra.mxu0 0
        %2927 = vmatprep.subr.bf16.mxu0 0
        %2928 = vmatpush1.bf16.msra.mxu0 0
        %2929 = vmatprep.subr.bf16.mxu0 0
        %2930 = vmatpush1.bf16.msra.mxu0 0
        %2931 = vmatprep.mubr.bf16.mxu0 0
        %2932 = vmatmul.mubr.bf16.gmra.mrb[0].mxu0 %v2897
        %v2933 = vpop.f32.mrb[0].mxu0
        %v2934 = vadd.f32 0.0, %v2933
        %v2935 = vpop.f32.mrb[0].mxu0
        %v2936 = vpop.f32.mrb[0].mxu0
        %v2937 = vpop.f32.mrb[0].mxu0
        %2938 = vdwg.mxu0
        %v2939 = vadd.f32 %v2847, %v2934
        %v2940 = vmax.f32 %v2939, 0.0
        %v2941 = vpack.c.bf16 %v2940, %v2940
        %v2942 = vld [vmem:[%s7] sm:$0xf]
        %v2943 = vld [vmem:[%s7 + $0x4] sm:$0xf]
        %v2944 = vld [vmem:[%s7 + $0x8] sm:$0xf]
        %v2945 = vld [vmem:[%s7 + $0xc] sm:$0xf]
        %v2946 = vld [vmem:[%s7 + $0x10] sm:$0xf]
        %v2947 = vld [vmem:[%s7 + $0x14] sm:$0xf]
        %v2948 = vld [vmem:[%s7 + $0x18] sm:$0xf]
        %v2949 = vld [vmem:[%s7 + $0x1c] sm:$0xf]
        %v2950 = vld [vmem:[%s7 + $0x20] sm:$0xf]
        %v2951 = vld [vmem:[%s7 + $0x24] sm:$0xf]
        %v2952 = vld [vmem:[%s7 + $0x28] sm:$0xf]
        %v2953 = vld [vmem:[%s7 + $0x2c] sm:$0xf]
        %v2954 = vld [vmem:[%s7 + $0x30] sm:$0xf]
        %v2955 = vld [vmem:[%s7 + $0x34] sm:$0xf]
        %v2956 = vld [vmem:[%s7 + $0x38] sm:$0xf]
        %v2957 = vld [vmem:[%s8] sm:$0x1]
        %v2973 = vunpack.c.l.b16 %v2942
        %v2974 = vunpack.c.l.b16 %v2943
        %v2975 = vunpack.c.l.b16 %v2944
        %v2976 = vunpack.c.l.b16 %v2945
        %v2977 = vunpack.c.l.b16 %v2946
        %v2978 = vunpack.c.l.b16 %v2947
        %v2979 = vunpack.c.l.b16 %v2948
        %v2980 = vunpack.c.l.b16 %v2949
        %v2981 = vunpack.c.l.b16 %v2950
        %v2982 = vunpack.c.l.b16 %v2951
        %v2983 = vunpack.c.l.b16 %v2952
        %v2984 = vunpack.c.l.b16 %v2953
        %v2985 = vunpack.c.l.b16 %v2954
        %v2986 = vunpack.c.l.b16 %v2955
        %v2987 = vunpack.c.l.b16 %v2956
        %v2988 = vpack.c.b16 %v2974, %v2973
        %v2989 = vpack.c.b16 %v2976, %v2975
        %v2990 = vpack.c.b16 %v2978, %v2977
        %v2991 = vpack.c.b16 %v2980, %v2979
        %v2992 = vpack.c.b16 %v2982, %v2981
        %v2993 = vpack.c.b16 %v2984, %v2983
        %v2994 = vpack.c.b16 %v2986, %v2985
        %v2995 = vpack.c.b16 %v2987, %v2987
        %vm3003 = vcmask 982016
        %v3005 = vsel %vm3003, %v2941, 0
        %vm3007 = vcmask 1043456
        %v3009 = vsel %vm3007, %v2995, 0
        %3011 = vmatprep.subr.bf16.mxu0 0
        %3012 = vmatpush1.bf16.msra.mxu0 %v2988
        %3013 = vmatprep.subr.bf16.mxu0 0
        %3014 = vmatpush1.bf16.msra.mxu0 %v2989
        %3015 = vmatprep.subr.bf16.mxu0 0
        %3016 = vmatpush1.bf16.msra.mxu0 %v2990
        %3017 = vmatprep.subr.bf16.mxu0 0
        %3018 = vmatpush1.bf16.msra.mxu0 %v2991
        %3019 = vmatprep.subr.bf16.mxu0 0
        %3020 = vmatpush1.bf16.msra.mxu0 %v2992
        %3021 = vmatprep.subr.bf16.mxu0 0
        %3022 = vmatpush1.bf16.msra.mxu0 %v2993
        %3023 = vmatprep.subr.bf16.mxu0 0
        %3024 = vmatpush1.bf16.msra.mxu0 %v2994
        %3025 = vmatprep.subr.bf16.mxu0 0
        %3026 = vmatpush1.bf16.msra.mxu0 %v3009
        %3027 = vmatprep.subr.bf16.mxu0 0
        %3028 = vmatpush1.bf16.msra.mxu0 0
        %3029 = vmatprep.subr.bf16.mxu0 0
        %3030 = vmatpush1.bf16.msra.mxu0 0
        %3031 = vmatprep.subr.bf16.mxu0 0
        %3032 = vmatpush1.bf16.msra.mxu0 0
        %3033 = vmatprep.subr.bf16.mxu0 0
        %3034 = vmatpush1.bf16.msra.mxu0 0
        %3035 = vmatprep.subr.bf16.mxu0 0
        %3036 = vmatpush1.bf16.msra.mxu0 0
        %3037 = vmatprep.subr.bf16.mxu0 0
        %3038 = vmatpush1.bf16.msra.mxu0 0
        %3039 = vmatprep.subr.bf16.mxu0 0
        %3040 = vmatpush1.bf16.msra.mxu0 0
        %3041 = vmatprep.subr.bf16.mxu0 0
        %3042 = vmatpush1.bf16.msra.mxu0 0
        %3043 = vmatprep.mubr.bf16.mxu0 0
        %3044 = vmatmul.mubr.bf16.gmra.mrb[0].mxu0 %v3005
        %v3045 = vpop.f32.mrb[0].mxu0
        %v3046 = vadd.f32 %v2957, %v3045
        %v3047 = vpop.f32.mrb[0].mxu0
        %v3048 = vpop.f32.mrb[0].mxu0
        %v3049 = vpop.f32.mrb[0].mxu0
        %3050 = vdwg.mxu0
        %v3051 = vmax.f32 %v3046, 0.0
        %v3052 = vpack.c.bf16 %v3051, %v3051
        %v3053 = vld [vmem:[%s9] sm:$0xf]
        %v3054 = vld [vmem:[%s9 + $0x4] sm:$0xf]
        %v3055 = vld [vmem:[%s9 + $0x8] sm:$0xf]
        %v3056 = vld [vmem:[%s9 + $0xc] sm:$0xf]
        %v3057 = vld [vmem:[%s9 + $0x10] sm:$0xf]
        %v3058 = vld [vmem:[%s9 + $0x14] sm:$0xf]
        %v3059 = vld [vmem:[%s9 + $0x18] sm:$0xf]
        %v3060 = vld [vmem:[%s9 + $0x1c] sm:$0xf]
        %v3061 = vld [vmem:[%s9 + $0x20] sm:$0xf]
        %v3062 = vld [vmem:[%s9 + $0x24] sm:$0xf]
        %v3063 = vld [vmem:[%s9 + $0x28] sm:$0x3]
        %v3064 = vld [vmem:[%s10] sm:$0x1]
        %v3076 = vunpack.c.l.b16 %v3053
        %v3077 = vunpack.c.l.b16 %v3054
        %v3078 = vunpack.c.l.b16 %v3055
        %v3079 = vunpack.c.l.b16 %v3056
        %v3080 = vunpack.c.l.b16 %v3057
        %v3081 = vunpack.c.l.b16 %v3058
        %v3082 = vunpack.c.l.b16 %v3059
        %v3083 = vunpack.c.l.b16 %v3060
        %v3084 = vunpack.c.l.b16 %v3061
        %v3085 = vunpack.c.l.b16 %v3062
        %v3086 = vunpack.c.l.b16 %v3063
        %v3087 = vpack.c.b16 %v3077, %v3076
        %v3088 = vpack.c.b16 %v3079, %v3078
        %v3089 = vpack.c.b16 %v3081, %v3080
        %v3090 = vpack.c.b16 %v3083, %v3082
        %v3091 = vpack.c.b16 %v3085, %v3084
        %v3092 = vpack.c.b16 %v3086, %v3086
        %v3099 = vsel %vm1625, %v3052, 0
        %v3102 = vsel %vm1629, %v3092, 0
        %3104 = vmatprep.subr.bf16.mxu0 0
        %3105 = vmatpush1.bf16.msra.mxu0 %v3087
        %3106 = vmatprep.subr.bf16.mxu0 0
        %3107 = vmatpush1.bf16.msra.mxu0 %v3088
        %3108 = vmatprep.subr.bf16.mxu0 0
        %3109 = vmatpush1.bf16.msra.mxu0 %v3089
        %3110 = vmatprep.subr.bf16.mxu0 0
        %3111 = vmatpush1.bf16.msra.mxu0 %v3090
        %3112 = vmatprep.subr.bf16.mxu0 0
        %3113 = vmatpush1.bf16.msra.mxu0 %v3091
        %3114 = vmatprep.subr.bf16.mxu0 0
        %3115 = vmatpush1.bf16.msra.mxu0 %v3102
        %3116 = vmatprep.subr.bf16.mxu0 0
        %3117 = vmatpush1.bf16.msra.mxu0 0
        %3118 = vmatprep.subr.bf16.mxu0 0
        %3119 = vmatpush1.bf16.msra.mxu0 0
        %3120 = vmatprep.subr.bf16.mxu0 0
        %3121 = vmatpush1.bf16.msra.mxu0 0
        %3122 = vmatprep.subr.bf16.mxu0 0
        %3123 = vmatpush1.bf16.msra.mxu0 0
        %3124 = vmatprep.subr.bf16.mxu0 0
        %3125 = vmatpush1.bf16.msra.mxu0 0
        %3126 = vmatprep.subr.bf16.mxu0 0
        %3127 = vmatpush1.bf16.msra.mxu0 0
        %3128 = vmatprep.subr.bf16.mxu0 0
        %3129 = vmatpush1.bf16.msra.mxu0 0
        %3130 = vmatprep.subr.bf16.mxu0 0
        %3131 = vmatpush1.bf16.msra.mxu0 0
        %3132 = vmatprep.subr.bf16.mxu0 0
        %3133 = vmatpush1.bf16.msra.mxu0 0
        %3134 = vmatprep.subr.bf16.mxu0 0
        %3135 = vmatpush1.bf16.msra.mxu0 0
        %3136 = vmatprep.mubr.bf16.mxu0 0
        %3137 = vmatmul.mubr.bf16.gmra.mrb[0].mxu0 %v3099
        %v3138 = vpop.f32.mrb[0].mxu0
        %v3139 = vadd.f32 %v3064, %v3138
        %v3140 = vpop.f32.mrb[0].mxu0
        %v3141 = vpop.f32.mrb[0].mxu0
        %v3142 = vpop.f32.mrb[0].mxu0
        %3143 = vdwg.mxu0
        %vm3144 = vcmask 73728
        %3145 = vst.msk [vmem:[%s378] sm:$0x1] %vm3144, %v3139
        %s3146 = sand.u32 %s269, 1
        %s3147 = scalar_lea.sflag [#allocation4], %s3146
        %s3148 = sand.u32 %s269, 1
        %s3149 = scalar_lea.vmem [#allocation3], %s3148
        // Predicated region
        $region65: #{net_forward.1} parent=63 // pred_check
          %p3150 = pneg %p279
        $region66: #{net_forward.1} parent=63 // pred_check_branch
          %3152 = sbr.rel (%p3150) target = $region68
        $region67: #{net_forward.1} parent=63 // pred_region
          %s3154 = ssub.s32 16, 16
          %3155 = vsyncadd %s3147, %s3154
          %s3156 = smul.addr %s25, 16
          %s3157 = scalar_lea.hbm %s11, %s3156
          %s3159 = sshll.u32 %s3149, 4
          %s3160 = int_to_ptr.vmem [resolvable:$true] %s3159
          %3162 = dma.vmem_to_hbm [thread:$0]  %s3160, 16, %s3157, %s3147
        $region68: #{net_forward.1} parent=63 // pred_fallthru
          _
      $region64: #{net_forward.1} parent=5 // pred_fallthru
        _
      %p3163 = scmp.le.s32.totalorder 2, %s20
      // Predicated region
      $region69: #{net_forward.1} parent=5 // pred_check
        %p3164 = pneg %p3163
      $region70: #{net_forward.1} parent=5 // pred_check_branch
        %3166 = sbr.rel (%p3164) target = $region72
      $region71: #{net_forward.1} parent=5 // pred_region
        %s3167 = ssub.s32 %s20, 2
        // Predicated region
        $region73: #{net_forward.1} parent=71 // pred_check
          %p3168 = pneg %p285
        $region74: #{net_forward.1} parent=71 // pred_check_branch
          %3170 = sbr.rel (%p3168) target = $region76
        $region75: #{net_forward.1} parent=71 // pred_region
          %s3171 = sand.u32 %s270, 1
          %s3172 = scalar_lea.sflag [#allocation4], %s3171
          %s3173 = sand.u32 %s270, 1
          %s3174 = scalar_lea.vmem [#allocation3], %s3173
          %3175 = dma.done %s3172, 16
        $region76: #{net_forward.1} parent=71 // pred_fallthru
          _
      $region72: #{net_forward.1} parent=5 // pred_fallthru
        _
    $region6: #{net_forward.1} parent=1 // loop_footer
      %s24 = sadd.s32 1, %s20
    $region7: #{net_forward.1} parent=1 // loop_footer_branch
      %19 = sbr.rel target = $region3
    $region8: #{net_forward.1} parent=1 // loop_exit
      _
    %3176 = vsyncpa [#allocation4], 1
    %s3177 = scalar_lea.sflag [#allocation4], 1
    %3178 = vsyncpa %s3177, 1

</llo_original>
